<compile_context>
chip_gen: v7x
topology: tpu7x:2x2x1
jax: 0.10.0
libtpu: 0.0.40
codegen_flags: <defaults>
</compile_context>

<pallas_src>
import functools
import math

import jax
import jax.numpy as jnp
from jax.experimental import pallas as pl
from jax.experimental.pallas import tpu as pltpu


def _round_up(x, m):
    return ((x + m - 1) // m) * m


# ----------------------------------------------------------------------------
# Fused (matmul + bias + optional residual + optional ReLU) Pallas kernel
# ----------------------------------------------------------------------------
def _mm_bias_act_kernel(apply_relu, add_residual, *refs):
    """out(Cout, TM) = W(Cout, Kpad) @ P(Kpad, TM) + bias (+ residual) (+ ReLU).

    w_ref : (Cout, Kpad)  bf16   BN-scale-folded weights
    p_ref : (Kpad, TM)    bf16   im2col patch tile
    b_ref : (Cout, 1)     f32    folded BN bias (+ conv bias)
    r_ref : (Cout, TM)    bf16   residual tile            [only if add_residual]
    o_ref : (Cout, TM)    bf16
    """
    if add_residual:
        w_ref, p_ref, b_ref, r_ref, o_ref = refs
    else:
        w_ref, p_ref, b_ref, o_ref = refs

    acc = jnp.dot(w_ref[...], p_ref[...], preferred_element_type=jnp.float32)
    y = acc + b_ref[...]                       # per-channel bias (broadcast over lanes)
    if add_residual:
        y = y + r_ref[...].astype(jnp.float32)
    if apply_relu:
        y = jnp.maximum(y, 0.0)
    o_ref[...] = y.astype(o_ref.dtype)


# ----------------------------------------------------------------------------
# Wrapper: im2col (XLA glue, fused under jit) + pallas_call
# ----------------------------------------------------------------------------
def _im2col(x, KH, KW, stride, dilation, padding):
    """x: (C, N, H, W) -> patches (KH*KW*C, N*Ho*Wo), plus (Ho, Wo)."""
    C, N, H, W = x.shape
    Ho = (H + 2 * padding - dilation * (KH - 1) - 1) // stride + 1
    Wo = (W + 2 * padding - dilation * (KW - 1) - 1) // stride + 1
    xp = jnp.pad(x, ((0, 0), (0, 0), (padding, padding), (padding, padding)))
    taps = []
    for kh in range(KH):
        for kw in range(KW):
            h0 = kh * dilation
            w0 = kw * dilation
            taps.append(xp[:, :,
                           h0:h0 + stride * (Ho - 1) + 1:stride,
                           w0:w0 + stride * (Wo - 1) + 1:stride])     # (C, N, Ho, Wo)
    patches = jnp.stack(taps, axis=0)                                  # (T, C, N, Ho, Wo)
    return patches.reshape(KH * KW * C, N * Ho * Wo), Ho, Wo


def _fold_bn(p, eps=1e-5):
    """Fold inference BN into the conv. Returns Wt (Cout, K) bf16, bias (Cout,) f32."""
    KH, KW, Cin, Cout = p['w'].shape
    scale = p['gamma'] / jnp.sqrt(p['var'] + eps)                      # (Cout,)
    w = p['w'] * scale[None, None, None, :]
    bias = (p['b'] - p['mean']) * scale + p['beta']
    wt = jnp.transpose(w, (3, 0, 1, 2)).reshape(Cout, KH * KW * Cin)   # K order = (kh,kw,cin)
    return wt.astype(jnp.bfloat16), bias.astype(jnp.float32), (KH, KW)


def conv_bn_act(x, p, *, stride=1, dilation=1, padding=0, apply_relu=True,
                residual=None):
    """x: (Cin, N, H, W) bf16  ->  (Cout, N, Ho, Wo) bf16."""
    Cin, N, H, W = x.shape
    wt, bias, (KH, KW) = _fold_bn(p)
    Cout, K = wt.shape

    patches, Ho, Wo = _im2col(x, KH, KW, stride, dilation, padding)
    M = N * Ho * Wo

    # Pad contraction dim to a bf16 sublane-pack multiple (16), lane dim to the tile size.
    Kpad = _round_up(K, 16)
    if Kpad != K:
        patches = jnp.pad(patches, ((0, Kpad - K), (0, 0)))
        wt = jnp.pad(wt, ((0, 0), (0, Kpad - K)))

    # Lane tile: one grid step for small convs, 1024-lane tiles (parallel axis) otherwise.
    M128 = _round_up(M, 128)
    TM = M128 if M128 <= 1024 else 1024
    Mpad = _round_up(M, TM)
    if Mpad != M:
        patches = jnp.pad(patches, ((0, 0), (0, Mpad - M)))

    args = [wt, patches.astype(jnp.bfloat16), bias.reshape(Cout, 1)]
    in_specs = [
        pl.BlockSpec((Cout, Kpad), lambda m: (0, 0)),
        pl.BlockSpec((Kpad, TM), lambda m: (0, m)),
        pl.BlockSpec((Cout, 1), lambda m: (0, 0)),
    ]
    add_res = residual is not None
    if add_res:
        assert residual.shape == (Cout, M), (residual.shape, (Cout, M))
        r = residual.astype(jnp.bfloat16)
        if Mpad != M:
            r = jnp.pad(r, ((0, 0), (0, Mpad - M)))
        args.append(r)
        in_specs.append(pl.BlockSpec((Cout, TM), lambda m: (0, m)))

    kernel = functools.partial(_mm_bias_act_kernel, apply_relu, add_res)
    out = pl.pallas_call(
        kernel,
        out_shape=jax.ShapeDtypeStruct((Cout, Mpad), jnp.bfloat16),
        grid=(Mpad // TM,),
        in_specs=in_specs,
        out_specs=pl.BlockSpec((Cout, TM), lambda m: (0, m)),
        compiler_params=pltpu.CompilerParams(
            dimension_semantics=("parallel",)),
        cost_estimate=pl.CostEstimate(
            flops=2 * Cout * Kpad * Mpad,
            transcendentals=0,
            bytes_accessed=2 * (Cout * Kpad + Kpad * Mpad + 2 * Cout * Mpad)),
    )(*args)

    if Mpad != M:
        out = out[:, :M]
    return out.reshape(Cout, N, Ho, Wo)


# ----------------------------------------------------------------------------
# Deterministic synthetic parameters (mirrors the nn.Module __init__ shapes)
# ----------------------------------------------------------------------------
def _xavier_normal(key, kh, kw, cin, cout, gain=0.2):
    fan_in = cin * kh * kw
    fan_out = cout * kh * kw
    std = gain * math.sqrt(2.0 / (fan_in + fan_out))
    return std * jax.random.normal(key, (kh, kw, cin, cout), dtype=jnp.float32)


def _make_conv_bn(key, cin, cout, k, with_bias=False):
    k_w, k_b, k_g, k_be, k_m = jax.random.split(key, 5)
    w = _xavier_normal(k_w, k, k, cin, cout)
    if with_bias:
        bound = 1.0 / math.sqrt(cin * k * k)
        b = jax.random.uniform(k_b, (cout,), jnp.float32, -bound, bound)
    else:
        b = jnp.zeros((cout,), jnp.float32)
    # inference-mode BatchNorm with deterministic synthetic running stats
    gamma = 1.0 + 0.1 * jax.random.normal(k_g, (cout,), jnp.float32)
    beta = 0.1 * jax.random.normal(k_be, (cout,), jnp.float32)
    mean = 0.05 * jax.random.normal(k_m, (cout,), jnp.float32)
    var = jnp.ones((cout,), jnp.float32)
    return dict(w=w, b=b, gamma=gamma, beta=beta, mean=mean, var=var)


def build_resnet_v2_straight_v2(key, num_filter=8, map_num=(1, 2, 4, 8, 16),
                                block_nums=(2, 2, 2, 2), kernel_size=5,
                                stride=(1, 2, 2, 2)):
    keys = iter(jax.random.split(key, 256))
    c0 = num_filter * map_num[0]
    params = {'kernel_size': kernel_size}
    # resnet_head: Conv(3,c0,k3,s2,p1)+BN+ReLU, Conv(c0,c0,k3,s2,p1)+BN+ReLU
    params['head'] = [
        _make_conv_bn(next(keys), 3, c0, 3, with_bias=True),
        _make_conv_bn(next(keys), c0, c0, 3, with_bias=True),
    ]
    in_ch = c0
    for li in range(3):                        # layer1, layer2, layer3
        out_ch = num_filter * map_num[li]
        st = stride[li]
        blocks = []
        downsample = None
        if st != 1 or in_ch != out_ch:
            downsample = _make_conv_bn(next(keys), in_ch, out_ch, kernel_size)
        blocks.append(dict(
            conv1=_make_conv_bn(next(keys), in_ch, out_ch, kernel_size),
            conv2=_make_conv_bn(next(keys), out_ch, out_ch, kernel_size),
            downsample=downsample, stride=st, is_top=True))
        in_ch = out_ch
        for _ in range(1, block_nums[li]):
            blocks.append(dict(
                conv1=_make_conv_bn(next(keys), out_ch, out_ch, kernel_size),
                conv2=_make_conv_bn(next(keys), out_ch, out_ch, kernel_size),
                downsample=None, stride=1, is_top=False))
        params[f'layer{li + 1}'] = blocks
    return params


# ----------------------------------------------------------------------------
# Forward pass (every conv/BN/ReLU/residual-add runs inside a Pallas kernel)
# ----------------------------------------------------------------------------
def _block_geometry(blk, k):
    st = blk['stride']
    if st != 1 or blk['is_top']:
        return st, 1, (k - 1) // 2                        # conv3x3(k, stride)
    return st, 3, 3 * ((k - 1) // 2)                      # dilation_conv(k, dilation=3)


def residual_block_fwd(blk, x, k):
    st, dil, pad = _block_geometry(blk, k)
    out1 = conv_bn_act(x, blk['conv1'], stride=st, dilation=dil, padding=pad,
                       apply_relu=True)
    if blk['downsample'] is not None:
        residual = conv_bn_act(x, blk['downsample'], stride=st, dilation=1,
                               padding=(k - 1) // 2, apply_relu=False)
    else:
        residual = x
    Cr, N, Hr, Wr = residual.shape
    # out = relu(bn2(conv2(out1)) + residual)  -- fused inside the conv2 kernel
    return conv_bn_act(out1, blk['conv2'], stride=1, dilation=dil, padding=pad,
                       apply_relu=True, residual=residual.reshape(Cr, N * Hr * Wr))


def resnet_forward(params, x_nchw):
    # NCHW -> channels-first (C, N, H, W), bf16 activations between layers
    x = jnp.transpose(x_nchw, (1, 0, 2, 3)).astype(jnp.bfloat16)
    x = conv_bn_act(x, params['head'][0], stride=2, padding=1, apply_relu=True)
    x = conv_bn_act(x, params['head'][1], stride=2, padding=1, apply_relu=True)
    k = params['kernel_size']
    for lname in ('layer1', 'layer2', 'layer3'):
        for blk in params[lname]:
            x = residual_block_fwd(blk, x, k)
    return jnp.transpose(x, (1, 0, 2, 3)).astype(jnp.float32)         # -> NCHW


# ----------------------------------------------------------------------------
# Pure-JAX f32 reference (semantics check for the bf16 Pallas path)
# ----------------------------------------------------------------------------
def _ref_conv_bn_act(x, p, *, stride=1, dilation=1, padding=0, apply_relu=True,
                     residual=None, eps=1e-5):
    scale = p['gamma'] / jnp.sqrt(p['var'] + eps)
    w = p['w'] * scale[None, None, None, :]                            # HWIO
    bias = (p['b'] - p['mean']) * scale + p['beta']
    y = jax.lax.conv_general_dilated(
        x, w, window_strides=(stride, stride),
        padding=[(padding, padding), (padding, padding)],
        rhs_dilation=(dilation, dilation),
        dimension_numbers=('NCHW', 'HWIO', 'NCHW'))
    y = y + bias[None, :, None, None]
    if residual is not None:
        y = y + residual
    if apply_relu:
        y = jnp.maximum(y, 0.0)
    return y


def resnet_forward_ref(params, x):
    x = _ref_conv_bn_act(x, params['head'][0], stride=2, padding=1)
    x = _ref_conv_bn_act(x, params['head'][1], stride=2, padding=1)
    k = params['kernel_size']
    for lname in ('layer1', 'layer2', 'layer3'):
        for blk in params[lname]:
            st, dil, pad = _block_geometry(blk, k)
            out1 = _ref_conv_bn_act(x, blk['conv1'], stride=st, dilation=dil,
                                    padding=pad, apply_relu=True)
            if blk['downsample'] is not None:
                res = _ref_conv_bn_act(x, blk['downsample'], stride=st, dilation=1,
                                       padding=(k - 1) // 2, apply_relu=False)
            else:
                res = x
            x = _ref_conv_bn_act(out1, blk['conv2'], stride=1, dilation=dil,
                                 padding=pad, apply_relu=True, residual=res)
    return x


if __name__ == "__main__":
    key = jax.random.PRNGKey(0)
    pkey, xkey = jax.random.split(key)
    # small but structurally faithful config: channels 8 -> 8 -> 16 -> 32
    params = build_resnet_v2_straight_v2(pkey, num_filter=8,
                                         block_nums=(2, 2, 2, 2), kernel_size=5,
                                         stride=(1, 2, 2, 2))
    x = jax.random.normal(xkey, (2, 3, 64, 64), dtype=jnp.float32)

    fwd = jax.jit(lambda inp: resnet_forward(params, inp))
    out3 = jax.block_until_ready(fwd(x))
    # head /4, layer2 /2, layer3 /2 => total stride 16 ; channels = 8 * 4 = 32
    assert out3.shape == (2, 32, 4, 4), out3.shape
    assert bool(jnp.all(jnp.isfinite(out3)))

    # pure-JAX f32 reference; loose tolerance for the bf16 MXU path
    ref = jax.block_until_ready(jax.jit(lambda inp: resnet_forward_ref(params, inp))(x))
    err = float(jnp.max(jnp.abs(out3 - ref)))
    scale = float(jnp.max(jnp.abs(ref))) + 1e-6
    assert err <= 0.05 * scale + 0.02, ("mismatch vs f32 reference", err, scale)

    print("KERNEL_OK")
</pallas_src>

<mosaic_0001>
module attributes {stable_mosaic.version = 11 : i64} {
  func.func @_mm_bias_act_kernel(%arg0: i32, %arg1: memref<8x32xbf16, #tpu.memory_space<vmem>>, %arg2: memref<32x1024xbf16, #tpu.memory_space<vmem>>, %arg3: memref<8x1xf32, #tpu.memory_space<vmem>>, %arg4: memref<8x1024xbf16, #tpu.memory_space<vmem>>) attributes {dimension_semantics = [#tpu.dimension_semantics<parallel>], iteration_bounds = array<i64: 2>, scalar_prefetch = 0 : i64, scratch_operands = 0 : i64, tpu.core_type = #tpu.core_type<tc>, window_params = [{pipeline_mode = #tpu.pipeline_mode<synchronous>, transform_indices = @transform_0, window_bounds = array<i64: 8, 32>}, {transform_indices = @transform_1, window_bounds = array<i64: 32, 1024>}, {pipeline_mode = #tpu.pipeline_mode<synchronous>, transform_indices = @transform_2, window_bounds = array<i64: 8, 1>}, {transform_indices = @transform_3, window_bounds = array<i64: 8, 1024>}]} {
    %c0 = arith.constant 0 : index
    %c0_0 = arith.constant 0 : index
    %0 = vector.load %arg1[%c0, %c0_0] : memref<8x32xbf16, #tpu.memory_space<vmem>>, vector<8x32xbf16>
    %c0_1 = arith.constant 0 : index
    %c0_2 = arith.constant 0 : index
    %1 = vector.load %arg2[%c0_1, %c0_2] : memref<32x1024xbf16, #tpu.memory_space<vmem>>, vector<32x1024xbf16>
    %cst = arith.constant dense<0.000000e+00> : vector<8x1024xf32>
    %2 = tpu.matmul %0, %1, %cst {dimension_numbers = #tpu.dot_dimension_numbers<[1], [0], [0], [1], [0, 0, 1, 1], [], []>} : vector<8x32xbf16>, vector<32x1024xbf16>, vector<8x1024xf32> -> vector<8x1024xf32>
    %c0_3 = arith.constant 0 : index
    %c0_4 = arith.constant 0 : index
    %3 = vector.load %arg3[%c0_3, %c0_4] : memref<8x1xf32, #tpu.memory_space<vmem>>, vector<8x1xf32>
    %4 = vector.broadcast %3 : vector<8x1xf32> to vector<8x1024xf32>
    %5 = arith.addf %2, %4 : vector<8x1024xf32>
    %cst_5 = arith.constant 0.000000e+00 : f32
    %6 = vector.broadcast %cst_5 : f32 to vector<8x1024xf32>
    %7 = arith.maximumf %5, %6 : vector<8x1024xf32>
    %8 = arith.truncf %7 : vector<8x1024xf32> to vector<8x1024xbf16>
    %c0_6 = arith.constant 0 : index
    %c0_7 = arith.constant 0 : index
    %9 = vector.load %arg4[%c0_6, %c0_7] : memref<8x1024xbf16, #tpu.memory_space<vmem>>, vector<8x1024xbf16>
    tpu.vector_store %arg4[%c0_6, %c0_7], %8 {strides = array<i32>} : memref<8x1024xbf16, #tpu.memory_space<vmem>>, vector<8x1024xbf16>,
    return
  }
  func.func @transform_0(%arg0: i32) -> (i32, i32) {
    %c0_i32 = arith.constant 0 : i32
    %c0_i32_0 = arith.constant 0 : i32
    %c0_i32_1 = arith.constant 0 : i32
    return %c0_i32, %c0_i32_0 : i32, i32
  }
  func.func @transform_1(%arg0: i32) -> (i32, i32) {
    %c0_i32 = arith.constant 0 : i32
    %c0_i32_0 = arith.constant 0 : i32
    return %c0_i32, %arg0 : i32, i32
  }
  func.func @transform_2(%arg0: i32) -> (i32, i32) {
    %c0_i32 = arith.constant 0 : i32
    %c0_i32_0 = arith.constant 0 : i32
    %c0_i32_1 = arith.constant 0 : i32
    return %c0_i32, %c0_i32_0 : i32, i32
  }
  func.func @transform_3(%arg0: i32) -> (i32, i32) {
    %c0_i32 = arith.constant 0 : i32
    %c0_i32_0 = arith.constant 0 : i32
    return %c0_i32, %arg0 : i32, i32
  }
}

module attributes {stable_mosaic.version = 11 : i64} {
  func.func @_mm_bias_act_kernel(%arg0: i32, %arg1: memref<8x80xbf16, #tpu.memory_space<vmem>>, %arg2: memref<80x512xbf16, #tpu.memory_space<vmem>>, %arg3: memref<8x1xf32, #tpu.memory_space<vmem>>, %arg4: memref<8x512xbf16, #tpu.memory_space<vmem>>) attributes {dimension_semantics = [#tpu.dimension_semantics<parallel>], iteration_bounds = array<i64: 1>, scalar_prefetch = 0 : i64, scratch_operands = 0 : i64, tpu.core_type = #tpu.core_type<tc>, window_params = [{pipeline_mode = #tpu.pipeline_mode<synchronous>, transform_indices = @transform_0, window_bounds = array<i64: 8, 80>}, {transform_indices = @transform_1, window_bounds = array<i64: 80, 512>}, {pipeline_mode = #tpu.pipeline_mode<synchronous>, transform_indices = @transform_2, window_bounds = array<i64: 8, 1>}, {transform_indices = @transform_3, window_bounds = array<i64: 8, 512>}]} {
    %c0 = arith.constant 0 : index
    %c0_0 = arith.constant 0 : index
    %0 = vector.load %arg1[%c0, %c0_0] : memref<8x80xbf16, #tpu.memory_space<vmem>>, vector<8x80xbf16>
    %c0_1 = arith.constant 0 : index
    %c0_2 = arith.constant 0 : index
    %1 = vector.load %arg2[%c0_1, %c0_2] : memref<80x512xbf16, #tpu.memory_space<vmem>>, vector<80x512xbf16>
    %cst = arith.constant dense<0.000000e+00> : vector<8x512xf32>
    %2 = tpu.matmul %0, %1, %cst {dimension_numbers = #tpu.dot_dimension_numbers<[1], [0], [0], [1], [0, 0, 1, 1], [], []>} : vector<8x80xbf16>, vector<80x512xbf16>, vector<8x512xf32> -> vector<8x512xf32>
    %c0_3 = arith.constant 0 : index
    %c0_4 = arith.constant 0 : index
    %3 = vector.load %arg3[%c0_3, %c0_4] : memref<8x1xf32, #tpu.memory_space<vmem>>, vector<8x1xf32>
    %4 = vector.broadcast %3 : vector<8x1xf32> to vector<8x512xf32>
    %5 = arith.addf %2, %4 : vector<8x512xf32>
    %cst_5 = arith.constant 0.000000e+00 : f32
    %6 = vector.broadcast %cst_5 : f32 to vector<8x512xf32>
    %7 = arith.maximumf %5, %6 : vector<8x512xf32>
    %8 = arith.truncf %7 : vector<8x512xf32> to vector<8x512xbf16>
    %c0_6 = arith.constant 0 : index
    %c0_7 = arith.constant 0 : index
    %9 = vector.load %arg4[%c0_6, %c0_7] : memref<8x512xbf16, #tpu.memory_space<vmem>>, vector<8x512xbf16>
    tpu.vector_store %arg4[%c0_6, %c0_7], %8 {strides = array<i32>} : memref<8x512xbf16, #tpu.memory_space<vmem>>, vector<8x512xbf16>,
    return
  }
  func.func @transform_0(%arg0: i32) -> (i32, i32) {
    %c0_i32 = arith.constant 0 : i32
    %c0_i32_0 = arith.constant 0 : i32
    %c0_i32_1 = arith.constant 0 : i32
    return %c0_i32, %c0_i32_0 : i32, i32
  }
  func.func @transform_1(%arg0: i32) -> (i32, i32) {
    %c0_i32 = arith.constant 0 : i32
    %c0_i32_0 = arith.constant 0 : i32
    return %c0_i32, %arg0 : i32, i32
  }
  func.func @transform_2(%arg0: i32) -> (i32, i32) {
    %c0_i32 = arith.constant 0 : i32
    %c0_i32_0 = arith.constant 0 : i32
    %c0_i32_1 = arith.constant 0 : i32
    return %c0_i32, %c0_i32_0 : i32, i32
  }
  func.func @transform_3(%arg0: i32) -> (i32, i32) {
    %c0_i32 = arith.constant 0 : i32
    %c0_i32_0 = arith.constant 0 : i32
    return %c0_i32, %arg0 : i32, i32
  }
}

module attributes {stable_mosaic.version = 11 : i64} {
  func.func @_mm_bias_act_kernel(%arg0: i32, %arg1: memref<8x208xbf16, #tpu.memory_space<vmem>>, %arg2: memref<208x512xbf16, #tpu.memory_space<vmem>>, %arg3: memref<8x1xf32, #tpu.memory_space<vmem>>, %arg4: memref<8x512xbf16, #tpu.memory_space<vmem>>, %arg5: memref<8x512xbf16, #tpu.memory_space<vmem>>) attributes {dimension_semantics = [#tpu.dimension_semantics<parallel>], iteration_bounds = array<i64: 1>, scalar_prefetch = 0 : i64, scratch_operands = 0 : i64, tpu.core_type = #tpu.core_type<tc>, window_params = [{pipeline_mode = #tpu.pipeline_mode<synchronous>, transform_indices = @transform_0, window_bounds = array<i64: 8, 208>}, {transform_indices = @transform_1, window_bounds = array<i64: 208, 512>}, {pipeline_mode = #tpu.pipeline_mode<synchronous>, transform_indices = @transform_2, window_bounds = array<i64: 8, 1>}, {transform_indices = @transform_3, window_bounds = array<i64: 8, 512>}, {transform_indices = @transform_4, window_bounds = array<i64: 8, 512>}]} {
    %c0 = arith.constant 0 : index
    %c0_0 = arith.constant 0 : index
    %0 = vector.load %arg1[%c0, %c0_0] : memref<8x208xbf16, #tpu.memory_space<vmem>>, vector<8x208xbf16>
    %c0_1 = arith.constant 0 : index
    %c0_2 = arith.constant 0 : index
    %1 = vector.load %arg2[%c0_1, %c0_2] : memref<208x512xbf16, #tpu.memory_space<vmem>>, vector<208x512xbf16>
    %cst = arith.constant dense<0.000000e+00> : vector<8x512xf32>
    %2 = tpu.matmul %0, %1, %cst {dimension_numbers = #tpu.dot_dimension_numbers<[1], [0], [0], [1], [0, 0, 1, 1], [], []>} : vector<8x208xbf16>, vector<208x512xbf16>, vector<8x512xf32> -> vector<8x512xf32>
    %c0_3 = arith.constant 0 : index
    %c0_4 = arith.constant 0 : index
    %3 = vector.load %arg3[%c0_3, %c0_4] : memref<8x1xf32, #tpu.memory_space<vmem>>, vector<8x1xf32>
    %4 = vector.broadcast %3 : vector<8x1xf32> to vector<8x512xf32>
    %5 = arith.addf %2, %4 : vector<8x512xf32>
    %c0_5 = arith.constant 0 : index
    %c0_6 = arith.constant 0 : index
    %6 = vector.load %arg4[%c0_5, %c0_6] : memref<8x512xbf16, #tpu.memory_space<vmem>>, vector<8x512xbf16>
    %7 = arith.extf %6 : vector<8x512xbf16> to vector<8x512xf32>
    %8 = arith.addf %5, %7 : vector<8x512xf32>
    %cst_7 = arith.constant 0.000000e+00 : f32
    %9 = vector.broadcast %cst_7 : f32 to vector<8x512xf32>
    %10 = arith.maximumf %8, %9 : vector<8x512xf32>
    %11 = arith.truncf %10 : vector<8x512xf32> to vector<8x512xbf16>
    %c0_8 = arith.constant 0 : index
    %c0_9 = arith.constant 0 : index
    %12 = vector.load %arg5[%c0_8, %c0_9] : memref<8x512xbf16, #tpu.memory_space<vmem>>, vector<8x512xbf16>
    tpu.vector_store %arg5[%c0_8, %c0_9], %11 {strides = array<i32>} : memref<8x512xbf16, #tpu.memory_space<vmem>>, vector<8x512xbf16>,
    return
  }
  func.func @transform_0(%arg0: i32) -> (i32, i32) {
    %c0_i32 = arith.constant 0 : i32
    %c0_i32_0 = arith.constant 0 : i32
    %c0_i32_1 = arith.constant 0 : i32
    return %c0_i32, %c0_i32_0 : i32, i32
  }
  func.func @transform_1(%arg0: i32) -> (i32, i32) {
    %c0_i32 = arith.constant 0 : i32
    %c0_i32_0 = arith.constant 0 : i32
    return %c0_i32, %arg0 : i32, i32
  }
  func.func @transform_2(%arg0: i32) -> (i32, i32) {
    %c0_i32 = arith.constant 0 : i32
    %c0_i32_0 = arith.constant 0 : i32
    %c0_i32_1 = arith.constant 0 : i32
    return %c0_i32, %c0_i32_0 : i32, i32
  }
  func.func @transform_3(%arg0: i32) -> (i32, i32) {
    %c0_i32 = arith.constant 0 : i32
    %c0_i32_0 = arith.constant 0 : i32
    return %c0_i32, %arg0 : i32, i32
  }
  func.func @transform_4(%arg0: i32) -> (i32, i32) {
    %c0_i32 = arith.constant 0 : i32
    %c0_i32_0 = arith.constant 0 : i32
    return %c0_i32, %arg0 : i32, i32
  }
}

module attributes {stable_mosaic.version = 11 : i64} {
  func.func @_mm_bias_act_kernel(%arg0: i32, %arg1: memref<8x208xbf16, #tpu.memory_space<vmem>>, %arg2: memref<208x512xbf16, #tpu.memory_space<vmem>>, %arg3: memref<8x1xf32, #tpu.memory_space<vmem>>, %arg4: memref<8x512xbf16, #tpu.memory_space<vmem>>) attributes {dimension_semantics = [#tpu.dimension_semantics<parallel>], iteration_bounds = array<i64: 1>, scalar_prefetch = 0 : i64, scratch_operands = 0 : i64, tpu.core_type = #tpu.core_type<tc>, window_params = [{pipeline_mode = #tpu.pipeline_mode<synchronous>, transform_indices = @transform_0, window_bounds = array<i64: 8, 208>}, {transform_indices = @transform_1, window_bounds = array<i64: 208, 512>}, {pipeline_mode = #tpu.pipeline_mode<synchronous>, transform_indices = @transform_2, window_bounds = array<i64: 8, 1>}, {transform_indices = @transform_3, window_bounds = array<i64: 8, 512>}]} {
    %c0 = arith.constant 0 : index
    %c0_0 = arith.constant 0 : index
    %0 = vector.load %arg1[%c0, %c0_0] : memref<8x208xbf16, #tpu.memory_space<vmem>>, vector<8x208xbf16>
    %c0_1 = arith.constant 0 : index
    %c0_2 = arith.constant 0 : index
    %1 = vector.load %arg2[%c0_1, %c0_2] : memref<208x512xbf16, #tpu.memory_space<vmem>>, vector<208x512xbf16>
    %cst = arith.constant dense<0.000000e+00> : vector<8x512xf32>
    %2 = tpu.matmul %0, %1, %cst {dimension_numbers = #tpu.dot_dimension_numbers<[1], [0], [0], [1], [0, 0, 1, 1], [], []>} : vector<8x208xbf16>, vector<208x512xbf16>, vector<8x512xf32> -> vector<8x512xf32>
    %c0_3 = arith.constant 0 : index
    %c0_4 = arith.constant 0 : index
    %3 = vector.load %arg3[%c0_3, %c0_4] : memref<8x1xf32, #tpu.memory_space<vmem>>, vector<8x1xf32>
    %4 = vector.broadcast %3 : vector<8x1xf32> to vector<8x512xf32>
    %5 = arith.addf %2, %4 : vector<8x512xf32>
    %cst_5 = arith.constant 0.000000e+00 : f32
    %6 = vector.broadcast %cst_5 : f32 to vector<8x512xf32>
    %7 = arith.maximumf %5, %6 : vector<8x512xf32>
    %8 = arith.truncf %7 : vector<8x512xf32> to vector<8x512xbf16>
    %c0_6 = arith.constant 0 : index
    %c0_7 = arith.constant 0 : index
    %9 = vector.load %arg4[%c0_6, %c0_7] : memref<8x512xbf16, #tpu.memory_space<vmem>>, vector<8x512xbf16>
    tpu.vector_store %arg4[%c0_6, %c0_7], %8 {strides = array<i32>} : memref<8x512xbf16, #tpu.memory_space<vmem>>, vector<8x512xbf16>,
    return
  }
  func.func @transform_0(%arg0: i32) -> (i32, i32) {
    %c0_i32 = arith.constant 0 : i32
    %c0_i32_0 = arith.constant 0 : i32
    %c0_i32_1 = arith.constant 0 : i32
    return %c0_i32, %c0_i32_0 : i32, i32
  }
  func.func @transform_1(%arg0: i32) -> (i32, i32) {
    %c0_i32 = arith.constant 0 : i32
    %c0_i32_0 = arith.constant 0 : i32
    return %c0_i32, %arg0 : i32, i32
  }
  func.func @transform_2(%arg0: i32) -> (i32, i32) {
    %c0_i32 = arith.constant 0 : i32
    %c0_i32_0 = arith.constant 0 : i32
    %c0_i32_1 = arith.constant 0 : i32
    return %c0_i32, %c0_i32_0 : i32, i32
  }
  func.func @transform_3(%arg0: i32) -> (i32, i32) {
    %c0_i32 = arith.constant 0 : i32
    %c0_i32_0 = arith.constant 0 : i32
    return %c0_i32, %arg0 : i32, i32
  }
}

module attributes {stable_mosaic.version = 11 : i64} {
  func.func @_mm_bias_act_kernel(%arg0: i32, %arg1: memref<16x208xbf16, #tpu.memory_space<vmem>>, %arg2: memref<208x128xbf16, #tpu.memory_space<vmem>>, %arg3: memref<16x1xf32, #tpu.memory_space<vmem>>, %arg4: memref<16x128xbf16, #tpu.memory_space<vmem>>) attributes {dimension_semantics = [#tpu.dimension_semantics<parallel>], iteration_bounds = array<i64: 1>, scalar_prefetch = 0 : i64, scratch_operands = 0 : i64, tpu.core_type = #tpu.core_type<tc>, window_params = [{pipeline_mode = #tpu.pipeline_mode<synchronous>, transform_indices = @transform_0, window_bounds = array<i64: 16, 208>}, {transform_indices = @transform_1, window_bounds = array<i64: 208, 128>}, {pipeline_mode = #tpu.pipeline_mode<synchronous>, transform_indices = @transform_2, window_bounds = array<i64: 16, 1>}, {transform_indices = @transform_3, window_bounds = array<i64: 16, 128>}]} {
    %c0 = arith.constant 0 : index
    %c0_0 = arith.constant 0 : index
    %0 = vector.load %arg1[%c0, %c0_0] : memref<16x208xbf16, #tpu.memory_space<vmem>>, vector<16x208xbf16>
    %c0_1 = arith.constant 0 : index
    %c0_2 = arith.constant 0 : index
    %1 = vector.load %arg2[%c0_1, %c0_2] : memref<208x128xbf16, #tpu.memory_space<vmem>>, vector<208x128xbf16>
    %cst = arith.constant dense<0.000000e+00> : vector<16x128xf32>
    %2 = tpu.matmul %0, %1, %cst {dimension_numbers = #tpu.dot_dimension_numbers<[1], [0], [0], [1], [0, 0, 1, 1], [], []>} : vector<16x208xbf16>, vector<208x128xbf16>, vector<16x128xf32> -> vector<16x128xf32>
    %c0_3 = arith.constant 0 : index
    %c0_4 = arith.constant 0 : index
    %3 = vector.load %arg3[%c0_3, %c0_4] : memref<16x1xf32, #tpu.memory_space<vmem>>, vector<16x1xf32>
    %4 = vector.broadcast %3 : vector<16x1xf32> to vector<16x128xf32>
    %5 = arith.addf %2, %4 : vector<16x128xf32>
    %cst_5 = arith.constant 0.000000e+00 : f32
    %6 = vector.broadcast %cst_5 : f32 to vector<16x128xf32>
    %7 = arith.maximumf %5, %6 : vector<16x128xf32>
    %8 = arith.truncf %7 : vector<16x128xf32> to vector<16x128xbf16>
    %c0_6 = arith.constant 0 : index
    %c0_7 = arith.constant 0 : index
    %9 = vector.load %arg4[%c0_6, %c0_7] : memref<16x128xbf16, #tpu.memory_space<vmem>>, vector<16x128xbf16>
    tpu.vector_store %arg4[%c0_6, %c0_7], %8 {strides = array<i32>} : memref<16x128xbf16, #tpu.memory_space<vmem>>, vector<16x128xbf16>,
    return
  }
  func.func @transform_0(%arg0: i32) -> (i32, i32) {
    %c0_i32 = arith.constant 0 : i32
    %c0_i32_0 = arith.constant 0 : i32
    %c0_i32_1 = arith.constant 0 : i32
    return %c0_i32, %c0_i32_0 : i32, i32
  }
  func.func @transform_1(%arg0: i32) -> (i32, i32) {
    %c0_i32 = arith.constant 0 : i32
    %c0_i32_0 = arith.constant 0 : i32
    return %c0_i32, %arg0 : i32, i32
  }
  func.func @transform_2(%arg0: i32) -> (i32, i32) {
    %c0_i32 = arith.constant 0 : i32
    %c0_i32_0 = arith.constant 0 : i32
    %c0_i32_1 = arith.constant 0 : i32
    return %c0_i32, %c0_i32_0 : i32, i32
  }
  func.func @transform_3(%arg0: i32) -> (i32, i32) {
    %c0_i32 = arith.constant 0 : i32
    %c0_i32_0 = arith.constant 0 : i32
    return %c0_i32, %arg0 : i32, i32
  }
}

module attributes {stable_mosaic.version = 11 : i64} {
  func.func @_mm_bias_act_kernel(%arg0: i32, %arg1: memref<16x208xbf16, #tpu.memory_space<vmem>>, %arg2: memref<208x128xbf16, #tpu.memory_space<vmem>>, %arg3: memref<16x1xf32, #tpu.memory_space<vmem>>, %arg4: memref<16x128xbf16, #tpu.memory_space<vmem>>) attributes {dimension_semantics = [#tpu.dimension_semantics<parallel>], iteration_bounds = array<i64: 1>, scalar_prefetch = 0 : i64, scratch_operands = 0 : i64, tpu.core_type = #tpu.core_type<tc>, window_params = [{pipeline_mode = #tpu.pipeline_mode<synchronous>, transform_indices = @transform_0, window_bounds = array<i64: 16, 208>}, {transform_indices = @transform_1, window_bounds = array<i64: 208, 128>}, {pipeline_mode = #tpu.pipeline_mode<synchronous>, transform_indices = @transform_2, window_bounds = array<i64: 16, 1>}, {transform_indices = @transform_3, window_bounds = array<i64: 16, 128>}]} {
    %c0 = arith.constant 0 : index
    %c0_0 = arith.constant 0 : index
    %0 = vector.load %arg1[%c0, %c0_0] : memref<16x208xbf16, #tpu.memory_space<vmem>>, vector<16x208xbf16>
    %c0_1 = arith.constant 0 : index
    %c0_2 = arith.constant 0 : index
    %1 = vector.load %arg2[%c0_1, %c0_2] : memref<208x128xbf16, #tpu.memory_space<vmem>>, vector<208x128xbf16>
    %cst = arith.constant dense<0.000000e+00> : vector<16x128xf32>
    %2 = tpu.matmul %0, %1, %cst {dimension_numbers = #tpu.dot_dimension_numbers<[1], [0], [0], [1], [0, 0, 1, 1], [], []>} : vector<16x208xbf16>, vector<208x128xbf16>, vector<16x128xf32> -> vector<16x128xf32>
    %c0_3 = arith.constant 0 : index
    %c0_4 = arith.constant 0 : index
    %3 = vector.load %arg3[%c0_3, %c0_4] : memref<16x1xf32, #tpu.memory_space<vmem>>, vector<16x1xf32>
    %4 = vector.broadcast %3 : vector<16x1xf32> to vector<16x128xf32>
    %5 = arith.addf %2, %4 : vector<16x128xf32>
    %6 = arith.truncf %5 : vector<16x128xf32> to vector<16x128xbf16>
    %c0_5 = arith.constant 0 : index
    %c0_6 = arith.constant 0 : index
    %7 = vector.load %arg4[%c0_5, %c0_6] : memref<16x128xbf16, #tpu.memory_space<vmem>>, vector<16x128xbf16>
    tpu.vector_store %arg4[%c0_5, %c0_6], %6 {strides = array<i32>} : memref<16x128xbf16, #tpu.memory_space<vmem>>, vector<16x128xbf16>,
    return
  }
  func.func @transform_0(%arg0: i32) -> (i32, i32) {
    %c0_i32 = arith.constant 0 : i32
    %c0_i32_0 = arith.constant 0 : i32
    %c0_i32_1 = arith.constant 0 : i32
    return %c0_i32, %c0_i32_0 : i32, i32
  }
  func.func @transform_1(%arg0: i32) -> (i32, i32) {
    %c0_i32 = arith.constant 0 : i32
    %c0_i32_0 = arith.constant 0 : i32
    return %c0_i32, %arg0 : i32, i32
  }
  func.func @transform_2(%arg0: i32) -> (i32, i32) {
    %c0_i32 = arith.constant 0 : i32
    %c0_i32_0 = arith.constant 0 : i32
    %c0_i32_1 = arith.constant 0 : i32
    return %c0_i32, %c0_i32_0 : i32, i32
  }
  func.func @transform_3(%arg0: i32) -> (i32, i32) {
    %c0_i32 = arith.constant 0 : i32
    %c0_i32_0 = arith.constant 0 : i32
    return %c0_i32, %arg0 : i32, i32
  }
}

module attributes {stable_mosaic.version = 11 : i64} {
  func.func @_mm_bias_act_kernel(%arg0: i32, %arg1: memref<16x400xbf16, #tpu.memory_space<vmem>>, %arg2: memref<400x128xbf16, #tpu.memory_space<vmem>>, %arg3: memref<16x1xf32, #tpu.memory_space<vmem>>, %arg4: memref<16x128xbf16, #tpu.memory_space<vmem>>, %arg5: memref<16x128xbf16, #tpu.memory_space<vmem>>) attributes {dimension_semantics = [#tpu.dimension_semantics<parallel>], iteration_bounds = array<i64: 1>, scalar_prefetch = 0 : i64, scratch_operands = 0 : i64, tpu.core_type = #tpu.core_type<tc>, window_params = [{pipeline_mode = #tpu.pipeline_mode<synchronous>, transform_indices = @transform_0, window_bounds = array<i64: 16, 400>}, {transform_indices = @transform_1, window_bounds = array<i64: 400, 128>}, {pipeline_mode = #tpu.pipeline_mode<synchronous>, transform_indices = @transform_2, window_bounds = array<i64: 16, 1>}, {transform_indices = @transform_3, window_bounds = array<i64: 16, 128>}, {transform_indices = @transform_4, window_bounds = array<i64: 16, 128>}]} {
    %c0 = arith.constant 0 : index
    %c0_0 = arith.constant 0 : index
    %0 = vector.load %arg1[%c0, %c0_0] : memref<16x400xbf16, #tpu.memory_space<vmem>>, vector<16x400xbf16>
    %c0_1 = arith.constant 0 : index
    %c0_2 = arith.constant 0 : index
    %1 = vector.load %arg2[%c0_1, %c0_2] : memref<400x128xbf16, #tpu.memory_space<vmem>>, vector<400x128xbf16>
    %cst = arith.constant dense<0.000000e+00> : vector<16x128xf32>
    %2 = tpu.matmul %0, %1, %cst {dimension_numbers = #tpu.dot_dimension_numbers<[1], [0], [0], [1], [0, 0, 1, 1], [], []>} : vector<16x400xbf16>, vector<400x128xbf16>, vector<16x128xf32> -> vector<16x128xf32>
    %c0_3 = arith.constant 0 : index
    %c0_4 = arith.constant 0 : index
    %3 = vector.load %arg3[%c0_3, %c0_4] : memref<16x1xf32, #tpu.memory_space<vmem>>, vector<16x1xf32>
    %4 = vector.broadcast %3 : vector<16x1xf32> to vector<16x128xf32>
    %5 = arith.addf %2, %4 : vector<16x128xf32>
    %c0_5 = arith.constant 0 : index
    %c0_6 = arith.constant 0 : index
    %6 = vector.load %arg4[%c0_5, %c0_6] : memref<16x128xbf16, #tpu.memory_space<vmem>>, vector<16x128xbf16>
    %7 = arith.extf %6 : vector<16x128xbf16> to vector<16x128xf32>
    %8 = arith.addf %5, %7 : vector<16x128xf32>
    %cst_7 = arith.constant 0.000000e+00 : f32
    %9 = vector.broadcast %cst_7 : f32 to vector<16x128xf32>
    %10 = arith.maximumf %8, %9 : vector<16x128xf32>
    %11 = arith.truncf %10 : vector<16x128xf32> to vector<16x128xbf16>
    %c0_8 = arith.constant 0 : index
    %c0_9 = arith.constant 0 : index
    %12 = vector.load %arg5[%c0_8, %c0_9] : memref<16x128xbf16, #tpu.memory_space<vmem>>, vector<16x128xbf16>
    tpu.vector_store %arg5[%c0_8, %c0_9], %11 {strides = array<i32>} : memref<16x128xbf16, #tpu.memory_space<vmem>>, vector<16x128xbf16>,
    return
  }
  func.func @transform_0(%arg0: i32) -> (i32, i32) {
    %c0_i32 = arith.constant 0 : i32
    %c0_i32_0 = arith.constant 0 : i32
    %c0_i32_1 = arith.constant 0 : i32
    return %c0_i32, %c0_i32_0 : i32, i32
  }
  func.func @transform_1(%arg0: i32) -> (i32, i32) {
    %c0_i32 = arith.constant 0 : i32
    %c0_i32_0 = arith.constant 0 : i32
    return %c0_i32, %arg0 : i32, i32
  }
  func.func @transform_2(%arg0: i32) -> (i32, i32) {
    %c0_i32 = arith.constant 0 : i32
    %c0_i32_0 = arith.constant 0 : i32
    %c0_i32_1 = arith.constant 0 : i32
    return %c0_i32, %c0_i32_0 : i32, i32
  }
  func.func @transform_3(%arg0: i32) -> (i32, i32) {
    %c0_i32 = arith.constant 0 : i32
    %c0_i32_0 = arith.constant 0 : i32
    return %c0_i32, %arg0 : i32, i32
  }
  func.func @transform_4(%arg0: i32) -> (i32, i32) {
    %c0_i32 = arith.constant 0 : i32
    %c0_i32_0 = arith.constant 0 : i32
    return %c0_i32, %arg0 : i32, i32
  }
}

module attributes {stable_mosaic.version = 11 : i64} {
  func.func @_mm_bias_act_kernel(%arg0: i32, %arg1: memref<16x400xbf16, #tpu.memory_space<vmem>>, %arg2: memref<400x128xbf16, #tpu.memory_space<vmem>>, %arg3: memref<16x1xf32, #tpu.memory_space<vmem>>, %arg4: memref<16x128xbf16, #tpu.memory_space<vmem>>) attributes {dimension_semantics = [#tpu.dimension_semantics<parallel>], iteration_bounds = array<i64: 1>, scalar_prefetch = 0 : i64, scratch_operands = 0 : i64, tpu.core_type = #tpu.core_type<tc>, window_params = [{pipeline_mode = #tpu.pipeline_mode<synchronous>, transform_indices = @transform_0, window_bounds = array<i64: 16, 400>}, {transform_indices = @transform_1, window_bounds = array<i64: 400, 128>}, {pipeline_mode = #tpu.pipeline_mode<synchronous>, transform_indices = @transform_2, window_bounds = array<i64: 16, 1>}, {transform_indices = @transform_3, window_bounds = array<i64: 16, 128>}]} {
    %c0 = arith.constant 0 : index
    %c0_0 = arith.constant 0 : index
    %0 = vector.load %arg1[%c0, %c0_0] : memref<16x400xbf16, #tpu.memory_space<vmem>>, vector<16x400xbf16>
    %c0_1 = arith.constant 0 : index
    %c0_2 = arith.constant 0 : index
    %1 = vector.load %arg2[%c0_1, %c0_2] : memref<400x128xbf16, #tpu.memory_space<vmem>>, vector<400x128xbf16>
    %cst = arith.constant dense<0.000000e+00> : vector<16x128xf32>
    %2 = tpu.matmul %0, %1, %cst {dimension_numbers = #tpu.dot_dimension_numbers<[1], [0], [0], [1], [0, 0, 1, 1], [], []>} : vector<16x400xbf16>, vector<400x128xbf16>, vector<16x128xf32> -> vector<16x128xf32>
    %c0_3 = arith.constant 0 : index
    %c0_4 = arith.constant 0 : index
    %3 = vector.load %arg3[%c0_3, %c0_4] : memref<16x1xf32, #tpu.memory_space<vmem>>, vector<16x1xf32>
    %4 = vector.broadcast %3 : vector<16x1xf32> to vector<16x128xf32>
    %5 = arith.addf %2, %4 : vector<16x128xf32>
    %cst_5 = arith.constant 0.000000e+00 : f32
    %6 = vector.broadcast %cst_5 : f32 to vector<16x128xf32>
    %7 = arith.maximumf %5, %6 : vector<16x128xf32>
    %8 = arith.truncf %7 : vector<16x128xf32> to vector<16x128xbf16>
    %c0_6 = arith.constant 0 : index
    %c0_7 = arith.constant 0 : index
    %9 = vector.load %arg4[%c0_6, %c0_7] : memref<16x128xbf16, #tpu.memory_space<vmem>>, vector<16x128xbf16>
    tpu.vector_store %arg4[%c0_6, %c0_7], %8 {strides = array<i32>} : memref<16x128xbf16, #tpu.memory_space<vmem>>, vector<16x128xbf16>,
    return
  }
  func.func @transform_0(%arg0: i32) -> (i32, i32) {
    %c0_i32 = arith.constant 0 : i32
    %c0_i32_0 = arith.constant 0 : i32
    %c0_i32_1 = arith.constant 0 : i32
    return %c0_i32, %c0_i32_0 : i32, i32
  }
  func.func @transform_1(%arg0: i32) -> (i32, i32) {
    %c0_i32 = arith.constant 0 : i32
    %c0_i32_0 = arith.constant 0 : i32
    return %c0_i32, %arg0 : i32, i32
  }
  func.func @transform_2(%arg0: i32) -> (i32, i32) {
    %c0_i32 = arith.constant 0 : i32
    %c0_i32_0 = arith.constant 0 : i32
    %c0_i32_1 = arith.constant 0 : i32
    return %c0_i32, %c0_i32_0 : i32, i32
  }
  func.func @transform_3(%arg0: i32) -> (i32, i32) {
    %c0_i32 = arith.constant 0 : i32
    %c0_i32_0 = arith.constant 0 : i32
    return %c0_i32, %arg0 : i32, i32
  }
}

module attributes {stable_mosaic.version = 11 : i64} {
  func.func @_mm_bias_act_kernel(%arg0: i32, %arg1: memref<32x400xbf16, #tpu.memory_space<vmem>>, %arg2: memref<400x128xbf16, #tpu.memory_space<vmem>>, %arg3: memref<32x1xf32, #tpu.memory_space<vmem>>, %arg4: memref<32x128xbf16, #tpu.memory_space<vmem>>) attributes {dimension_semantics = [#tpu.dimension_semantics<parallel>], iteration_bounds = array<i64: 1>, scalar_prefetch = 0 : i64, scratch_operands = 0 : i64, tpu.core_type = #tpu.core_type<tc>, window_params = [{pipeline_mode = #tpu.pipeline_mode<synchronous>, transform_indices = @transform_0, window_bounds = array<i64: 32, 400>}, {transform_indices = @transform_1, window_bounds = array<i64: 400, 128>}, {pipeline_mode = #tpu.pipeline_mode<synchronous>, transform_indices = @transform_2, window_bounds = array<i64: 32, 1>}, {transform_indices = @transform_3, window_bounds = array<i64: 32, 128>}]} {
    %c0 = arith.constant 0 : index
    %c0_0 = arith.constant 0 : index
    %0 = vector.load %arg1[%c0, %c0_0] : memref<32x400xbf16, #tpu.memory_space<vmem>>, vector<32x400xbf16>
    %c0_1 = arith.constant 0 : index
    %c0_2 = arith.constant 0 : index
    %1 = vector.load %arg2[%c0_1, %c0_2] : memref<400x128xbf16, #tpu.memory_space<vmem>>, vector<400x128xbf16>
    %cst = arith.constant dense<0.000000e+00> : vector<32x128xf32>
    %2 = tpu.matmul %0, %1, %cst {dimension_numbers = #tpu.dot_dimension_numbers<[1], [0], [0], [1], [0, 0, 1, 1], [], []>} : vector<32x400xbf16>, vector<400x128xbf16>, vector<32x128xf32> -> vector<32x128xf32>
    %c0_3 = arith.constant 0 : index
    %c0_4 = arith.constant 0 : index
    %3 = vector.load %arg3[%c0_3, %c0_4] : memref<32x1xf32, #tpu.memory_space<vmem>>, vector<32x1xf32>
    %4 = vector.broadcast %3 : vector<32x1xf32> to vector<32x128xf32>
    %5 = arith.addf %2, %4 : vector<32x128xf32>
    %cst_5 = arith.constant 0.000000e+00 : f32
    %6 = vector.broadcast %cst_5 : f32 to vector<32x128xf32>
    %7 = arith.maximumf %5, %6 : vector<32x128xf32>
    %8 = arith.truncf %7 : vector<32x128xf32> to vector<32x128xbf16>
    %c0_6 = arith.constant 0 : index
    %c0_7 = arith.constant 0 : index
    %9 = vector.load %arg4[%c0_6, %c0_7] : memref<32x128xbf16, #tpu.memory_space<vmem>>, vector<32x128xbf16>
    tpu.vector_store %arg4[%c0_6, %c0_7], %8 {strides = array<i32>} : memref<32x128xbf16, #tpu.memory_space<vmem>>, vector<32x128xbf16>,
    return
  }
  func.func @transform_0(%arg0: i32) -> (i32, i32) {
    %c0_i32 = arith.constant 0 : i32
    %c0_i32_0 = arith.constant 0 : i32
    %c0_i32_1 = arith.constant 0 : i32
    return %c0_i32, %c0_i32_0 : i32, i32
  }
  func.func @transform_1(%arg0: i32) -> (i32, i32) {
    %c0_i32 = arith.constant 0 : i32
    %c0_i32_0 = arith.constant 0 : i32
    return %c0_i32, %arg0 : i32, i32
  }
  func.func @transform_2(%arg0: i32) -> (i32, i32) {
    %c0_i32 = arith.constant 0 : i32
    %c0_i32_0 = arith.constant 0 : i32
    %c0_i32_1 = arith.constant 0 : i32
    return %c0_i32, %c0_i32_0 : i32, i32
  }
  func.func @transform_3(%arg0: i32) -> (i32, i32) {
    %c0_i32 = arith.constant 0 : i32
    %c0_i32_0 = arith.constant 0 : i32
    return %c0_i32, %arg0 : i32, i32
  }
}

module attributes {stable_mosaic.version = 11 : i64} {
  func.func @_mm_bias_act_kernel(%arg0: i32, %arg1: memref<32x400xbf16, #tpu.memory_space<vmem>>, %arg2: memref<400x128xbf16, #tpu.memory_space<vmem>>, %arg3: memref<32x1xf32, #tpu.memory_space<vmem>>, %arg4: memref<32x128xbf16, #tpu.memory_space<vmem>>) attributes {dimension_semantics = [#tpu.dimension_semantics<parallel>], iteration_bounds = array<i64: 1>, scalar_prefetch = 0 : i64, scratch_operands = 0 : i64, tpu.core_type = #tpu.core_type<tc>, window_params = [{pipeline_mode = #tpu.pipeline_mode<synchronous>, transform_indices = @transform_0, window_bounds = array<i64: 32, 400>}, {transform_indices = @transform_1, window_bounds = array<i64: 400, 128>}, {pipeline_mode = #tpu.pipeline_mode<synchronous>, transform_indices = @transform_2, window_bounds = array<i64: 32, 1>}, {transform_indices = @transform_3, window_bounds = array<i64: 32, 128>}]} {
    %c0 = arith.constant 0 : index
    %c0_0 = arith.constant 0 : index
    %0 = vector.load %arg1[%c0, %c0_0] : memref<32x400xbf16, #tpu.memory_space<vmem>>, vector<32x400xbf16>
    %c0_1 = arith.constant 0 : index
    %c0_2 = arith.constant 0 : index
    %1 = vector.load %arg2[%c0_1, %c0_2] : memref<400x128xbf16, #tpu.memory_space<vmem>>, vector<400x128xbf16>
    %cst = arith.constant dense<0.000000e+00> : vector<32x128xf32>
    %2 = tpu.matmul %0, %1, %cst {dimension_numbers = #tpu.dot_dimension_numbers<[1], [0], [0], [1], [0, 0, 1, 1], [], []>} : vector<32x400xbf16>, vector<400x128xbf16>, vector<32x128xf32> -> vector<32x128xf32>
    %c0_3 = arith.constant 0 : index
    %c0_4 = arith.constant 0 : index
    %3 = vector.load %arg3[%c0_3, %c0_4] : memref<32x1xf32, #tpu.memory_space<vmem>>, vector<32x1xf32>
    %4 = vector.broadcast %3 : vector<32x1xf32> to vector<32x128xf32>
    %5 = arith.addf %2, %4 : vector<32x128xf32>
    %6 = arith.truncf %5 : vector<32x128xf32> to vector<32x128xbf16>
    %c0_5 = arith.constant 0 : index
    %c0_6 = arith.constant 0 : index
    %7 = vector.load %arg4[%c0_5, %c0_6] : memref<32x128xbf16, #tpu.memory_space<vmem>>, vector<32x128xbf16>
    tpu.vector_store %arg4[%c0_5, %c0_6], %6 {strides = array<i32>} : memref<32x128xbf16, #tpu.memory_space<vmem>>, vector<32x128xbf16>,
    return
  }
  func.func @transform_0(%arg0: i32) -> (i32, i32) {
    %c0_i32 = arith.constant 0 : i32
    %c0_i32_0 = arith.constant 0 : i32
    %c0_i32_1 = arith.constant 0 : i32
    return %c0_i32, %c0_i32_0 : i32, i32
  }
  func.func @transform_1(%arg0: i32) -> (i32, i32) {
    %c0_i32 = arith.constant 0 : i32
    %c0_i32_0 = arith.constant 0 : i32
    return %c0_i32, %arg0 : i32, i32
  }
  func.func @transform_2(%arg0: i32) -> (i32, i32) {
    %c0_i32 = arith.constant 0 : i32
    %c0_i32_0 = arith.constant 0 : i32
    %c0_i32_1 = arith.constant 0 : i32
    return %c0_i32, %c0_i32_0 : i32, i32
  }
  func.func @transform_3(%arg0: i32) -> (i32, i32) {
    %c0_i32 = arith.constant 0 : i32
    %c0_i32_0 = arith.constant 0 : i32
    return %c0_i32, %arg0 : i32, i32
  }
}

module attributes {stable_mosaic.version = 11 : i64} {
  func.func @_mm_bias_act_kernel(%arg0: i32, %arg1: memref<32x800xbf16, #tpu.memory_space<vmem>>, %arg2: memref<800x128xbf16, #tpu.memory_space<vmem>>, %arg3: memref<32x1xf32, #tpu.memory_space<vmem>>, %arg4: memref<32x128xbf16, #tpu.memory_space<vmem>>, %arg5: memref<32x128xbf16, #tpu.memory_space<vmem>>) attributes {dimension_semantics = [#tpu.dimension_semantics<parallel>], iteration_bounds = array<i64: 1>, scalar_prefetch = 0 : i64, scratch_operands = 0 : i64, tpu.core_type = #tpu.core_type<tc>, window_params = [{pipeline_mode = #tpu.pipeline_mode<synchronous>, transform_indices = @transform_0, window_bounds = array<i64: 32, 800>}, {transform_indices = @transform_1, window_bounds = array<i64: 800, 128>}, {pipeline_mode = #tpu.pipeline_mode<synchronous>, transform_indices = @transform_2, window_bounds = array<i64: 32, 1>}, {transform_indices = @transform_3, window_bounds = array<i64: 32, 128>}, {transform_indices = @transform_4, window_bounds = array<i64: 32, 128>}]} {
    %c0 = arith.constant 0 : index
    %c0_0 = arith.constant 0 : index
    %0 = vector.load %arg1[%c0, %c0_0] : memref<32x800xbf16, #tpu.memory_space<vmem>>, vector<32x800xbf16>
    %c0_1 = arith.constant 0 : index
    %c0_2 = arith.constant 0 : index
    %1 = vector.load %arg2[%c0_1, %c0_2] : memref<800x128xbf16, #tpu.memory_space<vmem>>, vector<800x128xbf16>
    %cst = arith.constant dense<0.000000e+00> : vector<32x128xf32>
    %2 = tpu.matmul %0, %1, %cst {dimension_numbers = #tpu.dot_dimension_numbers<[1], [0], [0], [1], [0, 0, 1, 1], [], []>} : vector<32x800xbf16>, vector<800x128xbf16>, vector<32x128xf32> -> vector<32x128xf32>
    %c0_3 = arith.constant 0 : index
    %c0_4 = arith.constant 0 : index
    %3 = vector.load %arg3[%c0_3, %c0_4] : memref<32x1xf32, #tpu.memory_space<vmem>>, vector<32x1xf32>
    %4 = vector.broadcast %3 : vector<32x1xf32> to vector<32x128xf32>
    %5 = arith.addf %2, %4 : vector<32x128xf32>
    %c0_5 = arith.constant 0 : index
    %c0_6 = arith.constant 0 : index
    %6 = vector.load %arg4[%c0_5, %c0_6] : memref<32x128xbf16, #tpu.memory_space<vmem>>, vector<32x128xbf16>
    %7 = arith.extf %6 : vector<32x128xbf16> to vector<32x128xf32>
    %8 = arith.addf %5, %7 : vector<32x128xf32>
    %cst_7 = arith.constant 0.000000e+00 : f32
    %9 = vector.broadcast %cst_7 : f32 to vector<32x128xf32>
    %10 = arith.maximumf %8, %9 : vector<32x128xf32>
    %11 = arith.truncf %10 : vector<32x128xf32> to vector<32x128xbf16>
    %c0_8 = arith.constant 0 : index
    %c0_9 = arith.constant 0 : index
    %12 = vector.load %arg5[%c0_8, %c0_9] : memref<32x128xbf16, #tpu.memory_space<vmem>>, vector<32x128xbf16>
    tpu.vector_store %arg5[%c0_8, %c0_9], %11 {strides = array<i32>} : memref<32x128xbf16, #tpu.memory_space<vmem>>, vector<32x128xbf16>,
    return
  }
  func.func @transform_0(%arg0: i32) -> (i32, i32) {
    %c0_i32 = arith.constant 0 : i32
    %c0_i32_0 = arith.constant 0 : i32
    %c0_i32_1 = arith.constant 0 : i32
    return %c0_i32, %c0_i32_0 : i32, i32
  }
  func.func @transform_1(%arg0: i32) -> (i32, i32) {
    %c0_i32 = arith.constant 0 : i32
    %c0_i32_0 = arith.constant 0 : i32
    return %c0_i32, %arg0 : i32, i32
  }
  func.func @transform_2(%arg0: i32) -> (i32, i32) {
    %c0_i32 = arith.constant 0 : i32
    %c0_i32_0 = arith.constant 0 : i32
    %c0_i32_1 = arith.constant 0 : i32
    return %c0_i32, %c0_i32_0 : i32, i32
  }
  func.func @transform_3(%arg0: i32) -> (i32, i32) {
    %c0_i32 = arith.constant 0 : i32
    %c0_i32_0 = arith.constant 0 : i32
    return %c0_i32, %arg0 : i32, i32
  }
  func.func @transform_4(%arg0: i32) -> (i32, i32) {
    %c0_i32 = arith.constant 0 : i32
    %c0_i32_0 = arith.constant 0 : i32
    return %c0_i32, %arg0 : i32, i32
  }
}

module attributes {stable_mosaic.version = 11 : i64} {
  func.func @_mm_bias_act_kernel(%arg0: i32, %arg1: memref<32x800xbf16, #tpu.memory_space<vmem>>, %arg2: memref<800x128xbf16, #tpu.memory_space<vmem>>, %arg3: memref<32x1xf32, #tpu.memory_space<vmem>>, %arg4: memref<32x128xbf16, #tpu.memory_space<vmem>>) attributes {dimension_semantics = [#tpu.dimension_semantics<parallel>], iteration_bounds = array<i64: 1>, scalar_prefetch = 0 : i64, scratch_operands = 0 : i64, tpu.core_type = #tpu.core_type<tc>, window_params = [{pipeline_mode = #tpu.pipeline_mode<synchronous>, transform_indices = @transform_0, window_bounds = array<i64: 32, 800>}, {transform_indices = @transform_1, window_bounds = array<i64: 800, 128>}, {pipeline_mode = #tpu.pipeline_mode<synchronous>, transform_indices = @transform_2, window_bounds = array<i64: 32, 1>}, {transform_indices = @transform_3, window_bounds = array<i64: 32, 128>}]} {
    %c0 = arith.constant 0 : index
    %c0_0 = arith.constant 0 : index
    %0 = vector.load %arg1[%c0, %c0_0] : memref<32x800xbf16, #tpu.memory_space<vmem>>, vector<32x800xbf16>
    %c0_1 = arith.constant 0 : index
    %c0_2 = arith.constant 0 : index
    %1 = vector.load %arg2[%c0_1, %c0_2] : memref<800x128xbf16, #tpu.memory_space<vmem>>, vector<800x128xbf16>
    %cst = arith.constant dense<0.000000e+00> : vector<32x128xf32>
    %2 = tpu.matmul %0, %1, %cst {dimension_numbers = #tpu.dot_dimension_numbers<[1], [0], [0], [1], [0, 0, 1, 1], [], []>} : vector<32x800xbf16>, vector<800x128xbf16>, vector<32x128xf32> -> vector<32x128xf32>
    %c0_3 = arith.constant 0 : index
    %c0_4 = arith.constant 0 : index
    %3 = vector.load %arg3[%c0_3, %c0_4] : memref<32x1xf32, #tpu.memory_space<vmem>>, vector<32x1xf32>
    %4 = vector.broadcast %3 : vector<32x1xf32> to vector<32x128xf32>
    %5 = arith.addf %2, %4 : vector<32x128xf32>
    %cst_5 = arith.constant 0.000000e+00 : f32
    %6 = vector.broadcast %cst_5 : f32 to vector<32x128xf32>
    %7 = arith.maximumf %5, %6 : vector<32x128xf32>
    %8 = arith.truncf %7 : vector<32x128xf32> to vector<32x128xbf16>
    %c0_6 = arith.constant 0 : index
    %c0_7 = arith.constant 0 : index
    %9 = vector.load %arg4[%c0_6, %c0_7] : memref<32x128xbf16, #tpu.memory_space<vmem>>, vector<32x128xbf16>
    tpu.vector_store %arg4[%c0_6, %c0_7], %8 {strides = array<i32>} : memref<32x128xbf16, #tpu.memory_space<vmem>>, vector<32x128xbf16>,
    return
  }
  func.func @transform_0(%arg0: i32) -> (i32, i32) {
    %c0_i32 = arith.constant 0 : i32
    %c0_i32_0 = arith.constant 0 : i32
    %c0_i32_1 = arith.constant 0 : i32
    return %c0_i32, %c0_i32_0 : i32, i32
  }
  func.func @transform_1(%arg0: i32) -> (i32, i32) {
    %c0_i32 = arith.constant 0 : i32
    %c0_i32_0 = arith.constant 0 : i32
    return %c0_i32, %arg0 : i32, i32
  }
  func.func @transform_2(%arg0: i32) -> (i32, i32) {
    %c0_i32 = arith.constant 0 : i32
    %c0_i32_0 = arith.constant 0 : i32
    %c0_i32_1 = arith.constant 0 : i32
    return %c0_i32, %c0_i32_0 : i32, i32
  }
  func.func @transform_3(%arg0: i32) -> (i32, i32) {
    %c0_i32 = arith.constant 0 : i32
    %c0_i32_0 = arith.constant 0 : i32
    return %c0_i32, %arg0 : i32, i32
  }
}

</mosaic_0001>

<llo_original>
// kernel: _lambda_.16
$region0: #{_lambda_.16}
  #allocation0 [shape = 'u32[]', space=smem, size = 0x4, offset = 0x4, fixed_abs, tag = 'smem constant byte address 0x4 - core index']
  #allocation1 [shape = 'u32[144,128]{1,0:T(1,128)}', space=vmem, size = 0x12000, scoped, tag = 'internal scratch']
  %s0 = inlined_call_operand.vmem [shape: bf16[8,32], index: 0, kind: input, shape index: {}]
  %s1 = inlined_call_operand.vmem [shape: bf16[32,2048], index: 1, kind: input, shape index: {}]
  %s2 = inlined_call_operand.vmem [shape: f32[8,1], index: 2, kind: input, shape index: {}]
  %s3 = inlined_call_operand.vmem [shape: bf16[8,2048], index: 3, kind: output, shape index: {}]
  %s4 = sld [smem:[#allocation0]]
  $region68: #{_lambda_.16} parent=0
    _
  %s6 = ssub.s32 1, %s4
  %s7 = scalar_select 0, %s6, %s4
  $region1: #{_lambda_.16} parent=0
    #allocation2 [shape = 'u8[131072]{0}', space=vmem, size = 0x20000, scoped, tag = 'input window, operand 1']
    loop: start=0, step=1, limit=4
    $region2: #{_lambda_.16} parent=1 // loop_pre_header
      _
    $region3: #{_lambda_.16} parent=1 // loop_header
      %s9 = sphi 0, %s13
      %p10 = scmp.ge.s32.totalorder %s9, 4
      %s17 = sphi 0, %s17
      %s19 = sphi 0, %s17
      %s20 = sphi 0, %s19
      %s34 = sphi 0, %s20
      %s40 = sphi 0, %s42
      %s43 = sphi 0, %s40
      %s44 = sphi 0, %s43
      %s60 = sphi 0, %s44
      %s64 = sphi 0, %s64
      %s66 = sphi 0, %s64
      %s67 = sphi 0, %s66
      %s81 = sphi 0, %s67
      %s87 = sphi 0, %s89
      %s90 = sphi 0, %s87
      %s91 = sphi 0, %s90
      %s107 = sphi 0, %s91
    $region4: #{_lambda_.16} parent=1 // loop_header_branch
      %12 = sbr.rel (%p10) target = $region8
    $region5: #{_lambda_.16} parent=1 // loop_body
      %s14 = ssub.s32 %s9, 1
      %s15 = ssub.s32 %s9, 2
      %s16 = sadd.s32 %s9, 1
      %s18 = sadd.s32 %s17, 1
      %p21 = scmp.eq.s32.totalorder %s9, 1
      %p22 = scmp.ne.s32.totalorder %s17, %s19
      %p23 = scmp.eq.s32.totalorder %s9, 0
      %p24 = por %p22, %p23
      %p25 = scmp.ne.s32.totalorder %s17, %s19
      %p26 = scmp.eq.s32.totalorder %s14, 1
      %p27 = por %p25, %p26
      %p28 = scmp.ne.s32.totalorder %s19, %s20
      %p29 = scmp.eq.s32.totalorder %s14, 0
      %p30 = por %p28, %p29
      %p31 = scmp.ne.s32.totalorder %s19, %s20
      %p32 = scmp.eq.s32.totalorder %s15, 1
      %p33 = por %p31, %p32
      %p35 = scmp.ne.s32.totalorder %s20, %s34
      %p36 = scmp.eq.s32.totalorder %s15, 0
      %p37 = por %p35, %p36
      %s38 = ssub.s32 %s9, %s16
      %p39 = scmp.eq.s32.totalorder %s38, 0
      %s41 = sadd.s32 %s40, 1
      %s42 = scalar_select %p39, %s40, %s41
      %p45 = pneg %p39
      %p46 = scmp.eq.s32.totalorder %s9, 1
      %p47 = por %p45, %p46
      %p48 = scmp.ne.s32.totalorder %s40, %s43
      %p49 = scmp.eq.s32.totalorder %s9, 0
      %p50 = por %p48, %p49
      %p51 = scmp.ne.s32.totalorder %s40, %s43
      %p52 = scmp.eq.s32.totalorder %s14, 1
      %p53 = por %p51, %p52
      %p54 = scmp.ne.s32.totalorder %s43, %s44
      %p55 = scmp.eq.s32.totalorder %s14, 0
      %p56 = por %p54, %p55
      %p57 = scmp.ne.s32.totalorder %s43, %s44
      %p58 = scmp.eq.s32.totalorder %s15, 1
      %p59 = por %p57, %p58
      %p61 = scmp.ne.s32.totalorder %s44, %s60
      %p62 = scmp.eq.s32.totalorder %s15, 0
      %p63 = por %p61, %p62
      %s65 = sadd.s32 %s64, 1
      %p68 = scmp.eq.s32.totalorder %s9, 1
      %p69 = scmp.ne.s32.totalorder %s64, %s66
      %p70 = scmp.eq.s32.totalorder %s9, 0
      %p71 = por %p69, %p70
      %p72 = scmp.ne.s32.totalorder %s64, %s66
      %p73 = scmp.eq.s32.totalorder %s14, 1
      %p74 = por %p72, %p73
      %p75 = scmp.ne.s32.totalorder %s66, %s67
      %p76 = scmp.eq.s32.totalorder %s14, 0
      %p77 = por %p75, %p76
      %p78 = scmp.ne.s32.totalorder %s66, %s67
      %p79 = scmp.eq.s32.totalorder %s15, 1
      %p80 = por %p78, %p79
      %p82 = scmp.ne.s32.totalorder %s67, %s81
      %p83 = scmp.eq.s32.totalorder %s15, 0
      %p84 = por %p82, %p83
      %s85 = ssub.s32 %s9, %s16
      %p86 = scmp.eq.s32.totalorder %s85, 0
      %s88 = sadd.s32 %s87, 1
      %s89 = scalar_select %p86, %s87, %s88
      %p92 = pneg %p86
      %p93 = scmp.eq.s32.totalorder %s9, 1
      %p94 = por %p92, %p93
      %p95 = scmp.ne.s32.totalorder %s87, %s90
      %p96 = scmp.eq.s32.totalorder %s9, 0
      %p97 = por %p95, %p96
      %p98 = scmp.ne.s32.totalorder %s87, %s90
      %p99 = scmp.eq.s32.totalorder %s14, 1
      %p100 = por %p98, %p99
      %p101 = scmp.ne.s32.totalorder %s90, %s91
      %p102 = scmp.eq.s32.totalorder %s14, 0
      %p103 = por %p101, %p102
      %p104 = scmp.ne.s32.totalorder %s90, %s91
      %p105 = scmp.eq.s32.totalorder %s15, 1
      %p106 = por %p104, %p105
      %p108 = scmp.ne.s32.totalorder %s91, %s107
      %p109 = scmp.eq.s32.totalorder %s15, 0
      %p110 = por %p108, %p109
      %p111 = scmp.le.s32.totalorder 1, %s9
      %p112 = scmp.lt.s32.totalorder %s9, 3
      %p113 = pnand %p111, %p112
      %p114 = pneg %p113
      // Predicated region
      $region9: #{_lambda_.16} parent=5 // pred_check
        _
      $region10: #{_lambda_.16} parent=5 // pred_check_branch
        %116 = sbr.rel (%p113) target = $region12
      $region11: #{_lambda_.16} parent=5 // pred_region
        %s117 = ssub.s32 %s9, 1
        // Predicated region
        $region13: #{_lambda_.16} parent=11 // pred_check
          %p118 = pneg %p30
        $region14: #{_lambda_.16} parent=11 // pred_check_branch
          %120 = sbr.rel (%p118) target = $region16
        $region15: #{_lambda_.16} parent=11 // pred_region
          _
        $region16: #{_lambda_.16} parent=11 // pred_fallthru
          _
        // Predicated region
        $region17: #{_lambda_.16} parent=11 // pred_check
          %p121 = pneg %p77
        $region18: #{_lambda_.16} parent=11 // pred_check_branch
          %123 = sbr.rel (%p121) target = $region20
        $region19: #{_lambda_.16} parent=11 // pred_region
          _
        $region20: #{_lambda_.16} parent=11 // pred_fallthru
          _
      $region12: #{_lambda_.16} parent=5 // pred_fallthru
        _
      %p124 = scmp.lt.s32.totalorder %s9, 2
      // Predicated region
      $region21: #{_lambda_.16} parent=5 // pred_check
        %p125 = pneg %p124
      $region22: #{_lambda_.16} parent=5 // pred_check_branch
        %127 = sbr.rel (%p125) target = $region24
      $region23: #{_lambda_.16} parent=5 // pred_region
        // Predicated region
        $region25: #{_lambda_.16} parent=23 // pred_check
          %p128 = pneg %p50
        $region26: #{_lambda_.16} parent=23 // pred_check_branch
          %130 = sbr.rel (%p128) target = $region28
        $region27: #{_lambda_.16} parent=23 // pred_region
          %s131 = sand.u32 %s40, 1
          %s132 = sand.u32 %s40, 1
          %s133 = smul.addr %s132, 128
          %s134 = scalar_lea.vmem [#allocation2], %s133
          %s135 = smul.u32 8, %s9
          %s136 = smul.addr %s135, 4
          %s137 = scalar_lea.vmem %s1, %s136
          // Predicated region
          $region29: #{_lambda_.16} parent=27 // pred_check
            _
          $region30: #{_lambda_.16} parent=27 // pred_check_branch
            %139 = sbr.rel (0) target = $region32
          $region31: #{_lambda_.16} parent=27 // pred_region
            // Predicated region
            $region33: #{_lambda_.16} parent=31 // pred_check
              _
            $region34: #{_lambda_.16} parent=31 // pred_check_branch
              %141 = sbr.rel (0) target = $region36
            $region35: #{_lambda_.16} parent=31 // pred_region
              loop: start=0, step=1, limit=1
              $region37: #{_lambda_.16} parent=35 // loop_pre_header
                _
              $region38: #{_lambda_.16} parent=35 // loop_header
                %s143 = sphi 0, %s147
                %p144 = scmp.ge.s32.totalorder %s143, 1
                %s148 = sphi %s137, %s137
                %s149 = sphi %s134, %s134
              $region39: #{_lambda_.16} parent=35 // loop_header_branch
                %146 = sbr.rel (%p144) target = $region43
              $region40: #{_lambda_.16} parent=35 // loop_body
                %v150 = vld [vmem:[%s148] sm:$0xff]
                %151 = vst [vmem:[%s149] sm:$0xff] %v150
                %v152 = vld [vmem:[%s148 + $0x8] sm:$0xff]
                %153 = vst [vmem:[%s149 + $0x8] sm:$0xff] %v152
                %v154 = vld [vmem:[%s148 + $0x10] sm:$0xff]
                %155 = vst [vmem:[%s149 + $0x10] sm:$0xff] %v154
                %v156 = vld [vmem:[%s148 + $0x18] sm:$0xff]
                %157 = vst [vmem:[%s149 + $0x18] sm:$0xff] %v156
                %v158 = vld [vmem:[%s148 + $0x40] sm:$0xff]
                %159 = vst [vmem:[%s149 + $0x20] sm:$0xff] %v158
                %v160 = vld [vmem:[%s148 + $0x48] sm:$0xff]
                %161 = vst [vmem:[%s149 + $0x28] sm:$0xff] %v160
                %v162 = vld [vmem:[%s148 + $0x50] sm:$0xff]
                %163 = vst [vmem:[%s149 + $0x30] sm:$0xff] %v162
                %v164 = vld [vmem:[%s148 + $0x58] sm:$0xff]
                %165 = vst [vmem:[%s149 + $0x38] sm:$0xff] %v164
                %v166 = vld [vmem:[%s148 + $0x80] sm:$0xff]
                %167 = vst [vmem:[%s149 + $0x40] sm:$0xff] %v166
                %v168 = vld [vmem:[%s148 + $0x88] sm:$0xff]
                %169 = vst [vmem:[%s149 + $0x48] sm:$0xff] %v168
                %v170 = vld [vmem:[%s148 + $0x90] sm:$0xff]
                %171 = vst [vmem:[%s149 + $0x50] sm:$0xff] %v170
                %v172 = vld [vmem:[%s148 + $0x98] sm:$0xff]
                %173 = vst [vmem:[%s149 + $0x58] sm:$0xff] %v172
                %v174 = vld [vmem:[%s148 + $0xc0] sm:$0xff]
                %175 = vst [vmem:[%s149 + $0x60] sm:$0xff] %v174
                %v176 = vld [vmem:[%s148 + $0xc8] sm:$0xff]
                %177 = vst [vmem:[%s149 + $0x68] sm:$0xff] %v176
                %v178 = vld [vmem:[%s148 + $0xd0] sm:$0xff]
                %179 = vst [vmem:[%s149 + $0x70] sm:$0xff] %v178
                %v180 = vld [vmem:[%s148 + $0xd8] sm:$0xff]
                %181 = vst [vmem:[%s149 + $0x78] sm:$0xff] %v180
              $region41: #{_lambda_.16} parent=35 // loop_footer
                %s147 = sadd.s32 1, %s143
              $region42: #{_lambda_.16} parent=35 // loop_footer_branch
                %142 = sbr.rel target = $region38
              $region43: #{_lambda_.16} parent=35 // loop_exit
                _
            $region36: #{_lambda_.16} parent=31 // pred_fallthru
              _
            // Predicated region
            $region44: #{_lambda_.16} parent=31 // pred_check
              _
            $region45: #{_lambda_.16} parent=31 // pred_check_branch
              %183 = sbr.rel target = $region47
            $region46: #{_lambda_.16} parent=31 // pred_region
              _
            $region47: #{_lambda_.16} parent=31 // pred_fallthru
              _
          $region32: #{_lambda_.16} parent=27 // pred_fallthru
            _
          %184 = vnop
        $region28: #{_lambda_.16} parent=23 // pred_fallthru
          _
      $region24: #{_lambda_.16} parent=5 // pred_fallthru
        _
      %p185 = scmp.le.s32.totalorder 1, %s9
      %p186 = scmp.lt.s32.totalorder %s9, 3
      %p187 = pnand %p185, %p186
      %p188 = pneg %p187
      // Predicated region
      $region48: #{_lambda_.16} parent=5 // pred_check
        _
      $region49: #{_lambda_.16} parent=5 // pred_check_branch
        %190 = sbr.rel (%p187) target = $region51
      $region50: #{_lambda_.16} parent=5 // pred_region
        %s191 = ssub.s32 %s9, 1
        %s192 = sand.u32 %s43, 1
        %s193 = sand.u32 %s43, 1
        %s194 = smul.addr %s193, 128
        %s195 = scalar_lea.vmem [#allocation2], %s194
        // Predicated region
        $region52: #{_lambda_.16} parent=50 // pred_check
          %p196 = pneg %p56
        $region53: #{_lambda_.16} parent=50 // pred_check_branch
          %198 = sbr.rel (%p196) target = $region55
        $region54: #{_lambda_.16} parent=50 // pred_region
          _
        $region55: #{_lambda_.16} parent=50 // pred_fallthru
          _
        %p199 = pneg %p30
        %p200 = pneg %p27
        %s201 = sand.u32 %s43, 1
        %s202 = sand.u32 %s43, 1
        %s203 = smul.addr %s202, 128
        %s204 = scalar_lea.vmem [#allocation2], %s203
        %p205 = pneg %p56
        %p206 = pneg %p53
        %p207 = pneg %p77
        %p208 = pneg %p74
        %p209 = pneg %p103
        %p210 = pneg %p100
        %s211 = smul.u32 8, %s14
        %p212 = scmp.lt.s32.totalorder %s211, 15
        %s213 = scalar_select %p212, %s211, 15
        %s214 = smul.addr %s213, 4
        %s215 = scalar_lea.vmem %s3, %s214
        %s216 = smul.u32 8, %s14
        %s217 = smul.u32 8, %s14
        %p218 = scmp.lt.s32.totalorder %s217, 15
        %s219 = scalar_select %p218, %s217, 15
        %s220 = smul.addr %s219, 4
        %s221 = scalar_lea.vmem %s3, %s220
        %s222 = smul.u32 8, %s14
        %v224 = vld [vmem:[%s0] sm:$0xf]
        %v225 = vld [vmem:[%s195] sm:$0xff]
        %v226 = vld [vmem:[%s195 + $0x8] sm:$0xff]
        %v227 = vld [vmem:[%s195 + $0x10] sm:$0xff]
        %v228 = vld [vmem:[%s195 + $0x18] sm:$0xff]
        %v229 = vld [vmem:[%s195 + $0x20] sm:$0xff]
        %v230 = vld [vmem:[%s195 + $0x28] sm:$0xff]
        %v231 = vld [vmem:[%s195 + $0x30] sm:$0xff]
        %v232 = vld [vmem:[%s195 + $0x38] sm:$0xff]
        %v233 = vld [vmem:[%s195 + $0x40] sm:$0xff]
        %v234 = vld [vmem:[%s195 + $0x48] sm:$0xff]
        %v235 = vld [vmem:[%s195 + $0x50] sm:$0xff]
        %v236 = vld [vmem:[%s195 + $0x58] sm:$0xff]
        %v237 = vld [vmem:[%s195 + $0x60] sm:$0xff]
        %v238 = vld [vmem:[%s195 + $0x68] sm:$0xff]
        %v239 = vld [vmem:[%s195 + $0x70] sm:$0xff]
        %v240 = vld [vmem:[%s195 + $0x78] sm:$0xff]
        %v241 = vld [vmem:[%s2] sm:$0xff]
        %243 = vset.pattern.permute.xlu0 0
        %244 = vperm.xlu0 %243, %v241
        %v245 = vpop.permute.xlu0 %244
        %v263 = vunpack.c.l.b16 %v225
        %v264 = vunpack.c.h.b16 %v225
        %v265 = vunpack.c.l.b16 %v226
        %v266 = vunpack.c.h.b16 %v226
        %v267 = vunpack.c.l.b16 %v227
        %v268 = vunpack.c.h.b16 %v227
        %v269 = vunpack.c.l.b16 %v228
        %v270 = vunpack.c.h.b16 %v228
        %v271 = vunpack.c.l.b16 %v229
        %v272 = vunpack.c.h.b16 %v229
        %v273 = vunpack.c.l.b16 %v230
        %v274 = vunpack.c.h.b16 %v230
        %v275 = vunpack.c.l.b16 %v231
        %v276 = vunpack.c.h.b16 %v231
        %v277 = vunpack.c.l.b16 %v232
        %v278 = vunpack.c.h.b16 %v232
        %v279 = vunpack.c.l.b16 %v233
        %v280 = vunpack.c.h.b16 %v233
        %v281 = vunpack.c.l.b16 %v234
        %v282 = vunpack.c.h.b16 %v234
        %v283 = vunpack.c.l.b16 %v235
        %v284 = vunpack.c.h.b16 %v235
        %v285 = vunpack.c.l.b16 %v236
        %v286 = vunpack.c.h.b16 %v236
        %v287 = vunpack.c.l.b16 %v237
        %v288 = vunpack.c.h.b16 %v237
        %v289 = vunpack.c.l.b16 %v238
        %v290 = vunpack.c.h.b16 %v238
        %v291 = vunpack.c.l.b16 %v239
        %v292 = vunpack.c.h.b16 %v239
        %v293 = vunpack.c.l.b16 %v240
        %v294 = vunpack.c.h.b16 %v240
        %v295 = vpack.c.b16 %v271, %v263
        %v296 = vpack.c.b16 %v272, %v264
        %v297 = vpack.c.b16 %v273, %v265
        %v298 = vpack.c.b16 %v274, %v266
        %v299 = vpack.c.b16 %v275, %v267
        %v300 = vpack.c.b16 %v276, %v268
        %v301 = vpack.c.b16 %v277, %v269
        %v302 = vpack.c.b16 %v278, %v270
        %v303 = vpack.c.b16 %v287, %v279
        %v304 = vpack.c.b16 %v288, %v280
        %v305 = vpack.c.b16 %v289, %v281
        %v306 = vpack.c.b16 %v290, %v282
        %v307 = vpack.c.b16 %v291, %v283
        %v308 = vpack.c.b16 %v292, %v284
        %v309 = vpack.c.b16 %v293, %v285
        %v310 = vpack.c.b16 %v294, %v286
        %vm327 = vcmask 261120
        %v329 = vsel %vm327, %v224, 0
        %331 = vmatprep.subr.bf16.mxu0 %v296
        %332 = vmatpush1.bf16.msra.mxu0 %v295
        %333 = vmatprep.subr.bf16.mxu0 %v304
        %334 = vmatpush1.bf16.msra.mxu0 %v303
        %335 = vmatprep.subr.bf16.mxu0 0
        %336 = vmatpush1.bf16.msra.mxu0 0
        %337 = vmatprep.subr.bf16.mxu0 0
        %338 = vmatpush1.bf16.msra.mxu0 0
        %339 = vmatprep.subr.bf16.mxu0 0
        %340 = vmatpush1.bf16.msra.mxu0 0
        %341 = vmatprep.subr.bf16.mxu0 0
        %342 = vmatpush1.bf16.msra.mxu0 0
        %343 = vmatprep.subr.bf16.mxu0 0
        %344 = vmatpush1.bf16.msra.mxu0 0
        %345 = vmatprep.subr.bf16.mxu0 0
        %346 = vmatpush1.bf16.msra.mxu0 0
        %347 = vmatprep.subr.bf16.mxu0 0
        %348 = vmatpush1.bf16.msra.mxu0 0
        %349 = vmatprep.subr.bf16.mxu0 0
        %350 = vmatpush1.bf16.msra.mxu0 0
        %351 = vmatprep.subr.bf16.mxu0 0
        %352 = vmatpush1.bf16.msra.mxu0 0
        %353 = vmatprep.subr.bf16.mxu0 0
        %354 = vmatpush1.bf16.msra.mxu0 0
        %355 = vmatprep.subr.bf16.mxu0 0
        %356 = vmatpush1.bf16.msra.mxu0 0
        %357 = vmatprep.subr.bf16.mxu0 0
        %358 = vmatpush1.bf16.msra.mxu0 0
        %359 = vmatprep.subr.bf16.mxu0 0
        %360 = vmatpush1.bf16.msra.mxu0 0
        %361 = vmatprep.subr.bf16.mxu0 0
        %362 = vmatpush1.bf16.msra.mxu0 0
        %363 = vmatprep.mubr.bf16.mxu0 0
        %364 = vmatmul.mubr.bf16.gmra.mrb[0].mxu0 %v329
        %v365 = vpop.f32.mrb[0].mxu0
        %v366 = vadd.f32 %v245, %v365
        %v367 = vpop.f32.mrb[0].mxu0
        %v368 = vadd.f32 %v245, %v367
        %v369 = vpop.f32.mrb[0].mxu0
        %v370 = vpop.f32.mrb[0].mxu0
        %371 = vdwg.mxu0
        %372 = vmatprep.subr.bf16.mxu0 %v298
        %373 = vmatpush1.bf16.msra.mxu0 %v297
        %374 = vmatprep.subr.bf16.mxu0 %v306
        %375 = vmatpush1.bf16.msra.mxu0 %v305
        %376 = vmatprep.subr.bf16.mxu0 0
        %377 = vmatpush1.bf16.msra.mxu0 0
        %378 = vmatprep.subr.bf16.mxu0 0
        %379 = vmatpush1.bf16.msra.mxu0 0
        %380 = vmatprep.subr.bf16.mxu0 0
        %381 = vmatpush1.bf16.msra.mxu0 0
        %382 = vmatprep.subr.bf16.mxu0 0
        %383 = vmatpush1.bf16.msra.mxu0 0
        %384 = vmatprep.subr.bf16.mxu0 0
        %385 = vmatpush1.bf16.msra.mxu0 0
        %386 = vmatprep.subr.bf16.mxu0 0
        %387 = vmatpush1.bf16.msra.mxu0 0
        %388 = vmatprep.subr.bf16.mxu0 0
        %389 = vmatpush1.bf16.msra.mxu0 0
        %390 = vmatprep.subr.bf16.mxu0 0
        %391 = vmatpush1.bf16.msra.mxu0 0
        %392 = vmatprep.subr.bf16.mxu0 0
        %393 = vmatpush1.bf16.msra.mxu0 0
        %394 = vmatprep.subr.bf16.mxu0 0
        %395 = vmatpush1.bf16.msra.mxu0 0
        %396 = vmatprep.subr.bf16.mxu0 0
        %397 = vmatpush1.bf16.msra.mxu0 0
        %398 = vmatprep.subr.bf16.mxu0 0
        %399 = vmatpush1.bf16.msra.mxu0 0
        %400 = vmatprep.subr.bf16.mxu0 0
        %401 = vmatpush1.bf16.msra.mxu0 0
        %402 = vmatprep.subr.bf16.mxu0 0
        %403 = vmatpush1.bf16.msra.mxu0 0
        %404 = vmatprep.mubr.bf16.mxu0 0
        %405 = vmatmul.mubr.bf16.gmra.mrb[0].mxu0 %v329
        %v406 = vpop.f32.mrb[0].mxu0
        %v407 = vadd.f32 %v245, %v406
        %v408 = vpop.f32.mrb[0].mxu0
        %v409 = vadd.f32 %v245, %v408
        %v410 = vpop.f32.mrb[0].mxu0
        %v411 = vpop.f32.mrb[0].mxu0
        %412 = vdwg.mxu0
        %413 = vmatprep.subr.bf16.mxu0 %v300
        %414 = vmatpush1.bf16.msra.mxu0 %v299
        %415 = vmatprep.subr.bf16.mxu0 %v308
        %416 = vmatpush1.bf16.msra.mxu0 %v307
        %417 = vmatprep.subr.bf16.mxu0 0
        %418 = vmatpush1.bf16.msra.mxu0 0
        %419 = vmatprep.subr.bf16.mxu0 0
        %420 = vmatpush1.bf16.msra.mxu0 0
        %421 = vmatprep.subr.bf16.mxu0 0
        %422 = vmatpush1.bf16.msra.mxu0 0
        %423 = vmatprep.subr.bf16.mxu0 0
        %424 = vmatpush1.bf16.msra.mxu0 0
        %425 = vmatprep.subr.bf16.mxu0 0
        %426 = vmatpush1.bf16.msra.mxu0 0
        %427 = vmatprep.subr.bf16.mxu0 0
        %428 = vmatpush1.bf16.msra.mxu0 0
        %429 = vmatprep.subr.bf16.mxu0 0
        %430 = vmatpush1.bf16.msra.mxu0 0
        %431 = vmatprep.subr.bf16.mxu0 0
        %432 = vmatpush1.bf16.msra.mxu0 0
        %433 = vmatprep.subr.bf16.mxu0 0
        %434 = vmatpush1.bf16.msra.mxu0 0
        %435 = vmatprep.subr.bf16.mxu0 0
        %436 = vmatpush1.bf16.msra.mxu0 0
        %437 = vmatprep.subr.bf16.mxu0 0
        %438 = vmatpush1.bf16.msra.mxu0 0
        %439 = vmatprep.subr.bf16.mxu0 0
        %440 = vmatpush1.bf16.msra.mxu0 0
        %441 = vmatprep.subr.bf16.mxu0 0
        %442 = vmatpush1.bf16.msra.mxu0 0
        %443 = vmatprep.subr.bf16.mxu0 0
        %444 = vmatpush1.bf16.msra.mxu0 0
        %445 = vmatprep.mubr.bf16.mxu0 0
        %446 = vmatmul.mubr.bf16.gmra.mrb[0].mxu0 %v329
        %v447 = vpop.f32.mrb[0].mxu0
        %v448 = vadd.f32 %v245, %v447
        %v449 = vpop.f32.mrb[0].mxu0
        %v450 = vadd.f32 %v245, %v449
        %v451 = vpop.f32.mrb[0].mxu0
        %v452 = vpop.f32.mrb[0].mxu0
        %453 = vdwg.mxu0
        %454 = vmatprep.subr.bf16.mxu0 %v302
        %455 = vmatpush1.bf16.msra.mxu0 %v301
        %456 = vmatprep.subr.bf16.mxu0 %v310
        %457 = vmatpush1.bf16.msra.mxu0 %v309
        %458 = vmatprep.subr.bf16.mxu0 0
        %459 = vmatpush1.bf16.msra.mxu0 0
        %460 = vmatprep.subr.bf16.mxu0 0
        %461 = vmatpush1.bf16.msra.mxu0 0
        %462 = vmatprep.subr.bf16.mxu0 0
        %463 = vmatpush1.bf16.msra.mxu0 0
        %464 = vmatprep.subr.bf16.mxu0 0
        %465 = vmatpush1.bf16.msra.mxu0 0
        %466 = vmatprep.subr.bf16.mxu0 0
        %467 = vmatpush1.bf16.msra.mxu0 0
        %468 = vmatprep.subr.bf16.mxu0 0
        %469 = vmatpush1.bf16.msra.mxu0 0
        %470 = vmatprep.subr.bf16.mxu0 0
        %471 = vmatpush1.bf16.msra.mxu0 0
        %472 = vmatprep.subr.bf16.mxu0 0
        %473 = vmatpush1.bf16.msra.mxu0 0
        %474 = vmatprep.subr.bf16.mxu0 0
        %475 = vmatpush1.bf16.msra.mxu0 0
        %476 = vmatprep.subr.bf16.mxu0 0
        %477 = vmatpush1.bf16.msra.mxu0 0
        %478 = vmatprep.subr.bf16.mxu0 0
        %479 = vmatpush1.bf16.msra.mxu0 0
        %480 = vmatprep.subr.bf16.mxu0 0
        %481 = vmatpush1.bf16.msra.mxu0 0
        %482 = vmatprep.subr.bf16.mxu0 0
        %483 = vmatpush1.bf16.msra.mxu0 0
        %484 = vmatprep.subr.bf16.mxu0 0
        %485 = vmatpush1.bf16.msra.mxu0 0
        %486 = vmatprep.mubr.bf16.mxu0 0
        %487 = vmatmul.mubr.bf16.gmra.mrb[0].mxu0 %v329
        %v488 = vpop.f32.mrb[0].mxu0
        %v489 = vadd.f32 %v245, %v488
        %v490 = vpop.f32.mrb[0].mxu0
        %v491 = vadd.f32 %v245, %v490
        %v492 = vpop.f32.mrb[0].mxu0
        %v493 = vpop.f32.mrb[0].mxu0
        %494 = vdwg.mxu0
        %v495 = vmax.f32 %v366, 0.0
        %v496 = vmax.f32 %v368, 0.0
        %v497 = vmax.f32 %v407, 0.0
        %v498 = vmax.f32 %v409, 0.0
        %v499 = vmax.f32 %v448, 0.0
        %v500 = vmax.f32 %v450, 0.0
        %v501 = vmax.f32 %v489, 0.0
        %v502 = vmax.f32 %v491, 0.0
        %v503 = vpack.c.bf16 %v495, %v495
        %v504 = vpack.c.bf16 %v496, %v496
        %v505 = vpack.c.bf16 %v497, %v497
        %v506 = vpack.c.bf16 %v498, %v498
        %v507 = vpack.c.bf16 %v499, %v499
        %v508 = vpack.c.bf16 %v500, %v500
        %v509 = vpack.c.bf16 %v501, %v501
        %v510 = vpack.c.bf16 %v502, %v502
        %v519 = vunpack.c.l.b16 %v503
        %v520 = vunpack.c.l.b16 %v504
        %v521 = vunpack.c.l.b16 %v505
        %v522 = vunpack.c.l.b16 %v506
        %v523 = vunpack.c.l.b16 %v507
        %v524 = vunpack.c.l.b16 %v508
        %v525 = vunpack.c.l.b16 %v509
        %v526 = vunpack.c.l.b16 %v510
        %v527 = vpack.c.b16 %v520, %v519
        %v528 = vpack.c.b16 %v522, %v521
        %v529 = vpack.c.b16 %v524, %v523
        %v530 = vpack.c.b16 %v526, %v525
        %535 = vst [vmem:[%s221] sm:$0xff] %v527
        %536 = vst [vmem:[%s221 + $0x8] sm:$0xff] %v528
        %537 = vst [vmem:[%s221 + $0x10] sm:$0xff] %v529
        %538 = vst [vmem:[%s221 + $0x18] sm:$0xff] %v530
        %s539 = smul.u32 8, %s14
        %p540 = scmp.lt.s32.totalorder %s539, 15
        %s541 = scalar_select %p540, %s539, 15
        %s542 = smul.addr %s541, 4
        %s543 = scalar_lea.vmem %s3, %s542
        // Predicated region
        $region56: #{_lambda_.16} parent=50 // pred_check
          %p544 = pneg %p100
        $region57: #{_lambda_.16} parent=50 // pred_check_branch
          %546 = sbr.rel (%p544) target = $region59
        $region58: #{_lambda_.16} parent=50 // pred_region
          %s547 = smul.u32 8, %s14
        $region59: #{_lambda_.16} parent=50 // pred_fallthru
          _
      $region51: #{_lambda_.16} parent=5 // pred_fallthru
        _
      %p548 = scmp.le.s32.totalorder 2, %s9
      // Predicated region
      $region60: #{_lambda_.16} parent=5 // pred_check
        %p549 = pneg %p548
      $region61: #{_lambda_.16} parent=5 // pred_check_branch
        %551 = sbr.rel (%p549) target = $region63
      $region62: #{_lambda_.16} parent=5 // pred_region
        %s552 = ssub.s32 %s9, 2
        // Predicated region
        $region64: #{_lambda_.16} parent=62 // pred_check
          %p553 = pneg %p106
        $region65: #{_lambda_.16} parent=62 // pred_check_branch
          %555 = sbr.rel (%p553) target = $region67
        $region66: #{_lambda_.16} parent=62 // pred_region
          %s556 = smul.u32 8, %s15
          %p557 = scmp.lt.s32.totalorder %s556, 15
          %s558 = scalar_select %p557, %s556, 15
          %s559 = smul.addr %s558, 4
          %s560 = scalar_lea.vmem %s3, %s559
        $region67: #{_lambda_.16} parent=62 // pred_fallthru
          _
      $region63: #{_lambda_.16} parent=5 // pred_fallthru
        _
    $region6: #{_lambda_.16} parent=1 // loop_footer
      %s13 = sadd.s32 1, %s9
    $region7: #{_lambda_.16} parent=1 // loop_footer_branch
      %8 = sbr.rel target = $region3
    $region8: #{_lambda_.16} parent=1 // loop_exit
      _

// kernel: _lambda_.17
$region0: #{_lambda_.17}
  #allocation0 [shape = 'u32[]', space=smem, size = 0x4, offset = 0x4, fixed_abs, tag = 'smem constant byte address 0x4 - core index']
  #allocation1 [shape = 'u32[144,128]{1,0:T(1,128)}', space=vmem, size = 0x12000, scoped, tag = 'internal scratch']
  %s0 = inlined_call_operand.vmem [shape: bf16[8,80], index: 0, kind: input, shape index: {}]
  %s1 = inlined_call_operand.vmem [shape: bf16[80,512], index: 1, kind: input, shape index: {}]
  %s2 = inlined_call_operand.vmem [shape: f32[8,1], index: 2, kind: input, shape index: {}]
  %s3 = inlined_call_operand.vmem [shape: bf16[8,512], index: 3, kind: output, shape index: {}]
  %s4 = sld [smem:[#allocation0]]
  $region22: #{_lambda_.17} parent=0
    _
  %s6 = ssub.s32 1, %s4
  %s7 = scalar_select 0, %s6, %s4
  // Predicated region
  $region2: #{_lambda_.17} parent=0 // pred_check
    _
  $region3: #{_lambda_.17} parent=0 // pred_check_branch
    %9 = sbr.rel (0) target = $region5
  $region4: #{_lambda_.17} parent=0 // pred_region
    _
  $region5: #{_lambda_.17} parent=0 // pred_fallthru
    _
  // Predicated region
  $region6: #{_lambda_.17} parent=0 // pred_check
    _
  $region7: #{_lambda_.17} parent=0 // pred_check_branch
    %11 = sbr.rel (0) target = $region9
  $region8: #{_lambda_.17} parent=0 // pred_region
    _
  $region9: #{_lambda_.17} parent=0 // pred_fallthru
    _
  // Predicated region
  $region10: #{_lambda_.17} parent=0 // pred_check
    _
  $region11: #{_lambda_.17} parent=0 // pred_check_branch
    %13 = sbr.rel (0) target = $region13
  $region12: #{_lambda_.17} parent=0 // pred_region
    _
  $region13: #{_lambda_.17} parent=0 // pred_fallthru
    _
  %v15 = vld [vmem:[%s0] sm:$0xf]
  %v16 = vld [vmem:[%s1] sm:$0xff]
  %v17 = vld [vmem:[%s1 + $0x8] sm:$0xff]
  %v18 = vld [vmem:[%s1 + $0x10] sm:$0xff]
  %v19 = vld [vmem:[%s1 + $0x18] sm:$0xff]
  %v20 = vld [vmem:[%s1 + $0x20] sm:$0xff]
  %v21 = vld [vmem:[%s1 + $0x28] sm:$0xff]
  %v22 = vld [vmem:[%s1 + $0x30] sm:$0xff]
  %v23 = vld [vmem:[%s1 + $0x38] sm:$0xff]
  %v24 = vld [vmem:[%s1 + $0x40] sm:$0xff]
  %v25 = vld [vmem:[%s1 + $0x48] sm:$0xff]
  %v26 = vld [vmem:[%s1 + $0x50] sm:$0xff]
  %v27 = vld [vmem:[%s1 + $0x58] sm:$0xff]
  %v28 = vld [vmem:[%s1 + $0x60] sm:$0xff]
  %v29 = vld [vmem:[%s1 + $0x68] sm:$0xff]
  %v30 = vld [vmem:[%s1 + $0x70] sm:$0xff]
  %v31 = vld [vmem:[%s1 + $0x78] sm:$0xff]
  %v32 = vld [vmem:[%s1 + $0x80] sm:$0xff]
  %v33 = vld [vmem:[%s1 + $0x88] sm:$0xff]
  %v34 = vld [vmem:[%s1 + $0x90] sm:$0xff]
  %v35 = vld [vmem:[%s1 + $0x98] sm:$0xff]
  %v36 = vld [vmem:[%s2] sm:$0xff]
  %38 = vset.pattern.permute.xlu0 0
  %39 = vperm.xlu0 %38, %v36
  %v40 = vpop.permute.xlu0 %39
  %v62 = vunpack.c.l.b16 %v16
  %v63 = vunpack.c.h.b16 %v16
  %v64 = vunpack.c.l.b16 %v17
  %v65 = vunpack.c.h.b16 %v17
  %v66 = vunpack.c.l.b16 %v18
  %v67 = vunpack.c.h.b16 %v18
  %v68 = vunpack.c.l.b16 %v19
  %v69 = vunpack.c.h.b16 %v19
  %v70 = vunpack.c.l.b16 %v20
  %v71 = vunpack.c.h.b16 %v20
  %v72 = vunpack.c.l.b16 %v21
  %v73 = vunpack.c.h.b16 %v21
  %v74 = vunpack.c.l.b16 %v22
  %v75 = vunpack.c.h.b16 %v22
  %v76 = vunpack.c.l.b16 %v23
  %v77 = vunpack.c.h.b16 %v23
  %v78 = vunpack.c.l.b16 %v24
  %v79 = vunpack.c.h.b16 %v24
  %v80 = vunpack.c.l.b16 %v25
  %v81 = vunpack.c.h.b16 %v25
  %v82 = vunpack.c.l.b16 %v26
  %v83 = vunpack.c.h.b16 %v26
  %v84 = vunpack.c.l.b16 %v27
  %v85 = vunpack.c.h.b16 %v27
  %v86 = vunpack.c.l.b16 %v28
  %v87 = vunpack.c.h.b16 %v28
  %v88 = vunpack.c.l.b16 %v29
  %v89 = vunpack.c.h.b16 %v29
  %v90 = vunpack.c.l.b16 %v30
  %v91 = vunpack.c.h.b16 %v30
  %v92 = vunpack.c.l.b16 %v31
  %v93 = vunpack.c.h.b16 %v31
  %v94 = vunpack.c.l.b16 %v32
  %v95 = vunpack.c.h.b16 %v32
  %v96 = vunpack.c.l.b16 %v33
  %v97 = vunpack.c.h.b16 %v33
  %v98 = vunpack.c.l.b16 %v34
  %v99 = vunpack.c.h.b16 %v34
  %v100 = vunpack.c.l.b16 %v35
  %v101 = vunpack.c.h.b16 %v35
  %v102 = vpack.c.b16 %v66, %v62
  %v103 = vpack.c.b16 %v67, %v63
  %v104 = vpack.c.b16 %v68, %v64
  %v105 = vpack.c.b16 %v69, %v65
  %v106 = vpack.c.b16 %v74, %v70
  %v107 = vpack.c.b16 %v75, %v71
  %v108 = vpack.c.b16 %v76, %v72
  %v109 = vpack.c.b16 %v77, %v73
  %v110 = vpack.c.b16 %v82, %v78
  %v111 = vpack.c.b16 %v83, %v79
  %v112 = vpack.c.b16 %v84, %v80
  %v113 = vpack.c.b16 %v85, %v81
  %v114 = vpack.c.b16 %v90, %v86
  %v115 = vpack.c.b16 %v91, %v87
  %v116 = vpack.c.b16 %v92, %v88
  %v117 = vpack.c.b16 %v93, %v89
  %v118 = vpack.c.b16 %v98, %v94
  %v119 = vpack.c.b16 %v99, %v95
  %v120 = vpack.c.b16 %v100, %v96
  %v121 = vpack.c.b16 %v101, %v97
  %vm142 = vcmask 654336
  %v144 = vsel %vm142, %v15, 0
  %146 = vmatprep.subr.bf16.mxu0 %v103
  %147 = vmatpush1.bf16.msra.mxu0 %v102
  %148 = vmatprep.subr.bf16.mxu0 %v107
  %149 = vmatpush1.bf16.msra.mxu0 %v106
  %150 = vmatprep.subr.bf16.mxu0 %v111
  %151 = vmatpush1.bf16.msra.mxu0 %v110
  %152 = vmatprep.subr.bf16.mxu0 %v115
  %153 = vmatpush1.bf16.msra.mxu0 %v114
  %154 = vmatprep.subr.bf16.mxu0 %v119
  %155 = vmatpush1.bf16.msra.mxu0 %v118
  %156 = vmatprep.subr.bf16.mxu0 0
  %157 = vmatpush1.bf16.msra.mxu0 0
  %158 = vmatprep.subr.bf16.mxu0 0
  %159 = vmatpush1.bf16.msra.mxu0 0
  %160 = vmatprep.subr.bf16.mxu0 0
  %161 = vmatpush1.bf16.msra.mxu0 0
  %162 = vmatprep.subr.bf16.mxu0 0
  %163 = vmatpush1.bf16.msra.mxu0 0
  %164 = vmatprep.subr.bf16.mxu0 0
  %165 = vmatpush1.bf16.msra.mxu0 0
  %166 = vmatprep.subr.bf16.mxu0 0
  %167 = vmatpush1.bf16.msra.mxu0 0
  %168 = vmatprep.subr.bf16.mxu0 0
  %169 = vmatpush1.bf16.msra.mxu0 0
  %170 = vmatprep.subr.bf16.mxu0 0
  %171 = vmatpush1.bf16.msra.mxu0 0
  %172 = vmatprep.subr.bf16.mxu0 0
  %173 = vmatpush1.bf16.msra.mxu0 0
  %174 = vmatprep.subr.bf16.mxu0 0
  %175 = vmatpush1.bf16.msra.mxu0 0
  %176 = vmatprep.subr.bf16.mxu0 0
  %177 = vmatpush1.bf16.msra.mxu0 0
  %178 = vmatprep.mubr.bf16.mxu0 0
  %179 = vmatmul.mubr.bf16.gmra.mrb[0].mxu0 %v144
  %v180 = vpop.f32.mrb[0].mxu0
  %v181 = vadd.f32 %v40, %v180
  %v182 = vpop.f32.mrb[0].mxu0
  %v183 = vadd.f32 %v40, %v182
  %v184 = vpop.f32.mrb[0].mxu0
  %v185 = vpop.f32.mrb[0].mxu0
  %186 = vdwg.mxu0
  %187 = vmatprep.subr.bf16.mxu0 %v105
  %188 = vmatpush1.bf16.msra.mxu0 %v104
  %189 = vmatprep.subr.bf16.mxu0 %v109
  %190 = vmatpush1.bf16.msra.mxu0 %v108
  %191 = vmatprep.subr.bf16.mxu0 %v113
  %192 = vmatpush1.bf16.msra.mxu0 %v112
  %193 = vmatprep.subr.bf16.mxu0 %v117
  %194 = vmatpush1.bf16.msra.mxu0 %v116
  %195 = vmatprep.subr.bf16.mxu0 %v121
  %196 = vmatpush1.bf16.msra.mxu0 %v120
  %197 = vmatprep.subr.bf16.mxu0 0
  %198 = vmatpush1.bf16.msra.mxu0 0
  %199 = vmatprep.subr.bf16.mxu0 0
  %200 = vmatpush1.bf16.msra.mxu0 0
  %201 = vmatprep.subr.bf16.mxu0 0
  %202 = vmatpush1.bf16.msra.mxu0 0
  %203 = vmatprep.subr.bf16.mxu0 0
  %204 = vmatpush1.bf16.msra.mxu0 0
  %205 = vmatprep.subr.bf16.mxu0 0
  %206 = vmatpush1.bf16.msra.mxu0 0
  %207 = vmatprep.subr.bf16.mxu0 0
  %208 = vmatpush1.bf16.msra.mxu0 0
  %209 = vmatprep.subr.bf16.mxu0 0
  %210 = vmatpush1.bf16.msra.mxu0 0
  %211 = vmatprep.subr.bf16.mxu0 0
  %212 = vmatpush1.bf16.msra.mxu0 0
  %213 = vmatprep.subr.bf16.mxu0 0
  %214 = vmatpush1.bf16.msra.mxu0 0
  %215 = vmatprep.subr.bf16.mxu0 0
  %216 = vmatpush1.bf16.msra.mxu0 0
  %217 = vmatprep.subr.bf16.mxu0 0
  %218 = vmatpush1.bf16.msra.mxu0 0
  %219 = vmatprep.mubr.bf16.mxu0 0
  %220 = vmatmul.mubr.bf16.gmra.mrb[0].mxu0 %v144
  %v221 = vpop.f32.mrb[0].mxu0
  %v222 = vadd.f32 %v40, %v221
  %v223 = vpop.f32.mrb[0].mxu0
  %v224 = vadd.f32 %v40, %v223
  %v225 = vpop.f32.mrb[0].mxu0
  %v226 = vpop.f32.mrb[0].mxu0
  %227 = vdwg.mxu0
  %v228 = vmax.f32 %v181, 0.0
  %v229 = vmax.f32 %v183, 0.0
  %v230 = vmax.f32 %v222, 0.0
  %v231 = vmax.f32 %v224, 0.0
  %v232 = vpack.c.bf16 %v228, %v228
  %v233 = vpack.c.bf16 %v229, %v229
  %v234 = vpack.c.bf16 %v230, %v230
  %v235 = vpack.c.bf16 %v231, %v231
  %v240 = vunpack.c.l.b16 %v232
  %v241 = vunpack.c.l.b16 %v233
  %v242 = vunpack.c.l.b16 %v234
  %v243 = vunpack.c.l.b16 %v235
  %v244 = vpack.c.b16 %v241, %v240
  %v245 = vpack.c.b16 %v243, %v242
  %248 = vst [vmem:[%s3] sm:$0xff] %v244
  %249 = vst [vmem:[%s3 + $0x8] sm:$0xff] %v245
  // Predicated region
  $region14: #{_lambda_.17} parent=0 // pred_check
    _
  $region15: #{_lambda_.17} parent=0 // pred_check_branch
    %251 = sbr.rel (0) target = $region17
  $region16: #{_lambda_.17} parent=0 // pred_region
    _
  $region17: #{_lambda_.17} parent=0 // pred_fallthru
    _
  // Predicated region
  $region18: #{_lambda_.17} parent=0 // pred_check
    _
  $region19: #{_lambda_.17} parent=0 // pred_check_branch
    %253 = sbr.rel (0) target = $region21
  $region20: #{_lambda_.17} parent=0 // pred_region
    _
  $region21: #{_lambda_.17} parent=0 // pred_fallthru
    _

// kernel: _lambda_.19
$region0: #{_lambda_.19}
  #allocation0 [shape = 'u32[]', space=smem, size = 0x4, offset = 0x4, fixed_abs, tag = 'smem constant byte address 0x4 - core index']
  #allocation1 [shape = 'u32[144,128]{1,0:T(1,128)}', space=vmem, size = 0x12000, scoped, tag = 'internal scratch']
  %s0 = inlined_call_operand.vmem [shape: bf16[8,208], index: 0, kind: input, shape index: {}]
  %s1 = inlined_call_operand.vmem [shape: bf16[208,512], index: 1, kind: input, shape index: {}]
  %s2 = inlined_call_operand.vmem [shape: f32[8,1], index: 2, kind: input, shape index: {}]
  %s3 = inlined_call_operand.vmem [shape: bf16[8,512], index: 3, kind: input, shape index: {}]
  %s4 = inlined_call_operand.vmem [shape: bf16[8,512], index: 4, kind: output, shape index: {}]
  %s5 = sld [smem:[#allocation0]]
  $region26: #{_lambda_.19} parent=0
    _
  %s7 = ssub.s32 1, %s5
  %s8 = scalar_select 0, %s7, %s5
  // Predicated region
  $region2: #{_lambda_.19} parent=0 // pred_check
    _
  $region3: #{_lambda_.19} parent=0 // pred_check_branch
    %10 = sbr.rel (0) target = $region5
  $region4: #{_lambda_.19} parent=0 // pred_region
    _
  $region5: #{_lambda_.19} parent=0 // pred_fallthru
    _
  // Predicated region
  $region6: #{_lambda_.19} parent=0 // pred_check
    _
  $region7: #{_lambda_.19} parent=0 // pred_check_branch
    %12 = sbr.rel (0) target = $region9
  $region8: #{_lambda_.19} parent=0 // pred_region
    _
  $region9: #{_lambda_.19} parent=0 // pred_fallthru
    _
  // Predicated region
  $region10: #{_lambda_.19} parent=0 // pred_check
    _
  $region11: #{_lambda_.19} parent=0 // pred_check_branch
    %14 = sbr.rel (0) target = $region13
  $region12: #{_lambda_.19} parent=0 // pred_region
    _
  $region13: #{_lambda_.19} parent=0 // pred_fallthru
    _
  // Predicated region
  $region14: #{_lambda_.19} parent=0 // pred_check
    _
  $region15: #{_lambda_.19} parent=0 // pred_check_branch
    %16 = sbr.rel (0) target = $region17
  $region16: #{_lambda_.19} parent=0 // pred_region
    _
  $region17: #{_lambda_.19} parent=0 // pred_fallthru
    _
  %v18 = vld [vmem:[%s0] sm:$0xff]
  %v19 = vld [vmem:[%s1] sm:$0xff]
  %v20 = vld [vmem:[%s1 + $0x8] sm:$0xff]
  %v21 = vld [vmem:[%s1 + $0x10] sm:$0xff]
  %v22 = vld [vmem:[%s1 + $0x18] sm:$0xff]
  %v23 = vld [vmem:[%s1 + $0x20] sm:$0xff]
  %v24 = vld [vmem:[%s1 + $0x28] sm:$0xff]
  %v25 = vld [vmem:[%s1 + $0x30] sm:$0xff]
  %v26 = vld [vmem:[%s1 + $0x38] sm:$0xff]
  %v27 = vld [vmem:[%s1 + $0x40] sm:$0xff]
  %v28 = vld [vmem:[%s1 + $0x48] sm:$0xff]
  %v29 = vld [vmem:[%s1 + $0x50] sm:$0xff]
  %v30 = vld [vmem:[%s1 + $0x58] sm:$0xff]
  %v31 = vld [vmem:[%s1 + $0x60] sm:$0xff]
  %v32 = vld [vmem:[%s1 + $0x68] sm:$0xff]
  %v33 = vld [vmem:[%s1 + $0x70] sm:$0xff]
  %v34 = vld [vmem:[%s1 + $0x78] sm:$0xff]
  %v35 = vld [vmem:[%s1 + $0x80] sm:$0xff]
  %v36 = vld [vmem:[%s1 + $0x88] sm:$0xff]
  %v37 = vld [vmem:[%s1 + $0x90] sm:$0xff]
  %v38 = vld [vmem:[%s1 + $0x98] sm:$0xff]
  %v39 = vld [vmem:[%s1 + $0xa0] sm:$0xff]
  %v40 = vld [vmem:[%s1 + $0xa8] sm:$0xff]
  %v41 = vld [vmem:[%s1 + $0xb0] sm:$0xff]
  %v42 = vld [vmem:[%s1 + $0xb8] sm:$0xff]
  %v43 = vld [vmem:[%s1 + $0xc0] sm:$0xff]
  %v44 = vld [vmem:[%s1 + $0xc8] sm:$0xff]
  %v45 = vld [vmem:[%s1 + $0xd0] sm:$0xff]
  %v46 = vld [vmem:[%s1 + $0xd8] sm:$0xff]
  %v47 = vld [vmem:[%s1 + $0xe0] sm:$0xff]
  %v48 = vld [vmem:[%s1 + $0xe8] sm:$0xff]
  %v49 = vld [vmem:[%s1 + $0xf0] sm:$0xff]
  %v50 = vld [vmem:[%s1 + $0xf8] sm:$0xff]
  %v51 = vld [vmem:[%s1 + $0x100] sm:$0xff]
  %v52 = vld [vmem:[%s1 + $0x108] sm:$0xff]
  %v53 = vld [vmem:[%s1 + $0x110] sm:$0xff]
  %v54 = vld [vmem:[%s1 + $0x118] sm:$0xff]
  %v55 = vld [vmem:[%s1 + $0x120] sm:$0xff]
  %v56 = vld [vmem:[%s1 + $0x128] sm:$0xff]
  %v57 = vld [vmem:[%s1 + $0x130] sm:$0xff]
  %v58 = vld [vmem:[%s1 + $0x138] sm:$0xff]
  %v59 = vld [vmem:[%s1 + $0x140] sm:$0xff]
  %v60 = vld [vmem:[%s1 + $0x148] sm:$0xff]
  %v61 = vld [vmem:[%s1 + $0x150] sm:$0xff]
  %v62 = vld [vmem:[%s1 + $0x158] sm:$0xff]
  %v63 = vld [vmem:[%s1 + $0x160] sm:$0xff]
  %v64 = vld [vmem:[%s1 + $0x168] sm:$0xff]
  %v65 = vld [vmem:[%s1 + $0x170] sm:$0xff]
  %v66 = vld [vmem:[%s1 + $0x178] sm:$0xff]
  %v67 = vld [vmem:[%s1 + $0x180] sm:$0xff]
  %v68 = vld [vmem:[%s1 + $0x188] sm:$0xff]
  %v69 = vld [vmem:[%s1 + $0x190] sm:$0xff]
  %v70 = vld [vmem:[%s1 + $0x198] sm:$0xff]
  %v71 = vld [vmem:[%s2] sm:$0xff]
  %73 = vset.pattern.permute.xlu0 0
  %74 = vperm.xlu0 %73, %v71
  %v75 = vpop.permute.xlu0 %74
  %v78 = vunpack.c.l.b16 %v18
  %v79 = vunpack.c.h.b16 %v18
  %v80 = vpack.c.b16 %v78, %v78
  %v81 = vpack.c.b16 %v79, %v79
  %v135 = vunpack.c.l.b16 %v19
  %v136 = vunpack.c.h.b16 %v19
  %v137 = vunpack.c.l.b16 %v20
  %v138 = vunpack.c.h.b16 %v20
  %v139 = vunpack.c.l.b16 %v21
  %v140 = vunpack.c.h.b16 %v21
  %v141 = vunpack.c.l.b16 %v22
  %v142 = vunpack.c.h.b16 %v22
  %v143 = vunpack.c.l.b16 %v23
  %v144 = vunpack.c.h.b16 %v23
  %v145 = vunpack.c.l.b16 %v24
  %v146 = vunpack.c.h.b16 %v24
  %v147 = vunpack.c.l.b16 %v25
  %v148 = vunpack.c.h.b16 %v25
  %v149 = vunpack.c.l.b16 %v26
  %v150 = vunpack.c.h.b16 %v26
  %v151 = vunpack.c.l.b16 %v27
  %v152 = vunpack.c.h.b16 %v27
  %v153 = vunpack.c.l.b16 %v28
  %v154 = vunpack.c.h.b16 %v28
  %v155 = vunpack.c.l.b16 %v29
  %v156 = vunpack.c.h.b16 %v29
  %v157 = vunpack.c.l.b16 %v30
  %v158 = vunpack.c.h.b16 %v30
  %v159 = vunpack.c.l.b16 %v31
  %v160 = vunpack.c.h.b16 %v31
  %v161 = vunpack.c.l.b16 %v32
  %v162 = vunpack.c.h.b16 %v32
  %v163 = vunpack.c.l.b16 %v33
  %v164 = vunpack.c.h.b16 %v33
  %v165 = vunpack.c.l.b16 %v34
  %v166 = vunpack.c.h.b16 %v34
  %v167 = vunpack.c.l.b16 %v35
  %v168 = vunpack.c.h.b16 %v35
  %v169 = vunpack.c.l.b16 %v36
  %v170 = vunpack.c.h.b16 %v36
  %v171 = vunpack.c.l.b16 %v37
  %v172 = vunpack.c.h.b16 %v37
  %v173 = vunpack.c.l.b16 %v38
  %v174 = vunpack.c.h.b16 %v38
  %v175 = vunpack.c.l.b16 %v39
  %v176 = vunpack.c.h.b16 %v39
  %v177 = vunpack.c.l.b16 %v40
  %v178 = vunpack.c.h.b16 %v40
  %v179 = vunpack.c.l.b16 %v41
  %v180 = vunpack.c.h.b16 %v41
  %v181 = vunpack.c.l.b16 %v42
  %v182 = vunpack.c.h.b16 %v42
  %v183 = vunpack.c.l.b16 %v43
  %v184 = vunpack.c.h.b16 %v43
  %v185 = vunpack.c.l.b16 %v44
  %v186 = vunpack.c.h.b16 %v44
  %v187 = vunpack.c.l.b16 %v45
  %v188 = vunpack.c.h.b16 %v45
  %v189 = vunpack.c.l.b16 %v46
  %v190 = vunpack.c.h.b16 %v46
  %v191 = vunpack.c.l.b16 %v47
  %v192 = vunpack.c.h.b16 %v47
  %v193 = vunpack.c.l.b16 %v48
  %v194 = vunpack.c.h.b16 %v48
  %v195 = vunpack.c.l.b16 %v49
  %v196 = vunpack.c.h.b16 %v49
  %v197 = vunpack.c.l.b16 %v50
  %v198 = vunpack.c.h.b16 %v50
  %v199 = vunpack.c.l.b16 %v51
  %v200 = vunpack.c.h.b16 %v51
  %v201 = vunpack.c.l.b16 %v52
  %v202 = vunpack.c.h.b16 %v52
  %v203 = vunpack.c.l.b16 %v53
  %v204 = vunpack.c.h.b16 %v53
  %v205 = vunpack.c.l.b16 %v54
  %v206 = vunpack.c.h.b16 %v54
  %v207 = vunpack.c.l.b16 %v55
  %v208 = vunpack.c.h.b16 %v55
  %v209 = vunpack.c.l.b16 %v56
  %v210 = vunpack.c.h.b16 %v56
  %v211 = vunpack.c.l.b16 %v57
  %v212 = vunpack.c.h.b16 %v57
  %v213 = vunpack.c.l.b16 %v58
  %v214 = vunpack.c.h.b16 %v58
  %v215 = vunpack.c.l.b16 %v59
  %v216 = vunpack.c.h.b16 %v59
  %v217 = vunpack.c.l.b16 %v60
  %v218 = vunpack.c.h.b16 %v60
  %v219 = vunpack.c.l.b16 %v61
  %v220 = vunpack.c.h.b16 %v61
  %v221 = vunpack.c.l.b16 %v62
  %v222 = vunpack.c.h.b16 %v62
  %v223 = vunpack.c.l.b16 %v63
  %v224 = vunpack.c.h.b16 %v63
  %v225 = vunpack.c.l.b16 %v64
  %v226 = vunpack.c.h.b16 %v64
  %v227 = vunpack.c.l.b16 %v65
  %v228 = vunpack.c.h.b16 %v65
  %v229 = vunpack.c.l.b16 %v66
  %v230 = vunpack.c.h.b16 %v66
  %v231 = vunpack.c.l.b16 %v67
  %v232 = vunpack.c.h.b16 %v67
  %v233 = vunpack.c.l.b16 %v68
  %v234 = vunpack.c.h.b16 %v68
  %v235 = vunpack.c.l.b16 %v69
  %v236 = vunpack.c.h.b16 %v69
  %v237 = vunpack.c.l.b16 %v70
  %v238 = vunpack.c.h.b16 %v70
  %v239 = vpack.c.b16 %v139, %v135
  %v240 = vpack.c.b16 %v140, %v136
  %v241 = vpack.c.b16 %v141, %v137
  %v242 = vpack.c.b16 %v142, %v138
  %v243 = vpack.c.b16 %v147, %v143
  %v244 = vpack.c.b16 %v148, %v144
  %v245 = vpack.c.b16 %v149, %v145
  %v246 = vpack.c.b16 %v150, %v146
  %v247 = vpack.c.b16 %v155, %v151
  %v248 = vpack.c.b16 %v156, %v152
  %v249 = vpack.c.b16 %v157, %v153
  %v250 = vpack.c.b16 %v158, %v154
  %v251 = vpack.c.b16 %v163, %v159
  %v252 = vpack.c.b16 %v164, %v160
  %v253 = vpack.c.b16 %v165, %v161
  %v254 = vpack.c.b16 %v166, %v162
  %v255 = vpack.c.b16 %v171, %v167
  %v256 = vpack.c.b16 %v172, %v168
  %v257 = vpack.c.b16 %v173, %v169
  %v258 = vpack.c.b16 %v174, %v170
  %v259 = vpack.c.b16 %v179, %v175
  %v260 = vpack.c.b16 %v180, %v176
  %v261 = vpack.c.b16 %v181, %v177
  %v262 = vpack.c.b16 %v182, %v178
  %v263 = vpack.c.b16 %v187, %v183
  %v264 = vpack.c.b16 %v188, %v184
  %v265 = vpack.c.b16 %v189, %v185
  %v266 = vpack.c.b16 %v190, %v186
  %v267 = vpack.c.b16 %v195, %v191
  %v268 = vpack.c.b16 %v196, %v192
  %v269 = vpack.c.b16 %v197, %v193
  %v270 = vpack.c.b16 %v198, %v194
  %v271 = vpack.c.b16 %v203, %v199
  %v272 = vpack.c.b16 %v204, %v200
  %v273 = vpack.c.b16 %v205, %v201
  %v274 = vpack.c.b16 %v206, %v202
  %v275 = vpack.c.b16 %v211, %v207
  %v276 = vpack.c.b16 %v212, %v208
  %v277 = vpack.c.b16 %v213, %v209
  %v278 = vpack.c.b16 %v214, %v210
  %v279 = vpack.c.b16 %v219, %v215
  %v280 = vpack.c.b16 %v220, %v216
  %v281 = vpack.c.b16 %v221, %v217
  %v282 = vpack.c.b16 %v222, %v218
  %v283 = vpack.c.b16 %v227, %v223
  %v284 = vpack.c.b16 %v228, %v224
  %v285 = vpack.c.b16 %v229, %v225
  %v286 = vpack.c.b16 %v230, %v226
  %v287 = vpack.c.b16 %v235, %v231
  %v288 = vpack.c.b16 %v236, %v232
  %v289 = vpack.c.b16 %v237, %v233
  %v290 = vpack.c.b16 %v238, %v234
  %vm343 = vcmask 654336
  %v345 = vsel %vm343, %v81, 0
  %347 = vmatprep.subr.bf16.mxu0 %v240
  %348 = vmatpush1.bf16.msra.mxu0 %v239
  %349 = vmatprep.subr.bf16.mxu0 %v244
  %350 = vmatpush1.bf16.msra.mxu0 %v243
  %351 = vmatprep.subr.bf16.mxu0 %v248
  %352 = vmatpush1.bf16.msra.mxu0 %v247
  %353 = vmatprep.subr.bf16.mxu0 %v252
  %354 = vmatpush1.bf16.msra.mxu0 %v251
  %355 = vmatprep.subr.bf16.mxu0 %v256
  %356 = vmatpush1.bf16.msra.mxu0 %v255
  %357 = vmatprep.subr.bf16.mxu0 %v260
  %358 = vmatpush1.bf16.msra.mxu0 %v259
  %359 = vmatprep.subr.bf16.mxu0 %v264
  %360 = vmatpush1.bf16.msra.mxu0 %v263
  %361 = vmatprep.subr.bf16.mxu0 %v268
  %362 = vmatpush1.bf16.msra.mxu0 %v267
  %363 = vmatprep.subr.bf16.mxu0 %v272
  %364 = vmatpush1.bf16.msra.mxu0 %v271
  %365 = vmatprep.subr.bf16.mxu0 %v276
  %366 = vmatpush1.bf16.msra.mxu0 %v275
  %367 = vmatprep.subr.bf16.mxu0 %v280
  %368 = vmatpush1.bf16.msra.mxu0 %v279
  %369 = vmatprep.subr.bf16.mxu0 %v284
  %370 = vmatpush1.bf16.msra.mxu0 %v283
  %371 = vmatprep.subr.bf16.mxu0 %v288
  %372 = vmatpush1.bf16.msra.mxu0 %v287
  %373 = vmatprep.subr.bf16.mxu0 0
  %374 = vmatpush1.bf16.msra.mxu0 0
  %375 = vmatprep.subr.bf16.mxu0 0
  %376 = vmatpush1.bf16.msra.mxu0 0
  %377 = vmatprep.subr.bf16.mxu0 0
  %378 = vmatpush1.bf16.msra.mxu0 0
  %379 = vmatprep.mubr.bf16.mxu0 %v345
  %380 = vmatmul.mubr.bf16.gmra.mrb[0].mxu0 %v80
  %v381 = vpop.f32.mrb[0].mxu0
  %v382 = vadd.f32 %v75, %v381
  %v383 = vpop.f32.mrb[0].mxu0
  %v384 = vadd.f32 %v75, %v383
  %v385 = vpop.f32.mrb[0].mxu0
  %v386 = vpop.f32.mrb[0].mxu0
  %387 = vdwg.mxu0
  %388 = vmatprep.subr.bf16.mxu0 %v242
  %389 = vmatpush1.bf16.msra.mxu0 %v241
  %390 = vmatprep.subr.bf16.mxu0 %v246
  %391 = vmatpush1.bf16.msra.mxu0 %v245
  %392 = vmatprep.subr.bf16.mxu0 %v250
  %393 = vmatpush1.bf16.msra.mxu0 %v249
  %394 = vmatprep.subr.bf16.mxu0 %v254
  %395 = vmatpush1.bf16.msra.mxu0 %v253
  %396 = vmatprep.subr.bf16.mxu0 %v258
  %397 = vmatpush1.bf16.msra.mxu0 %v257
  %398 = vmatprep.subr.bf16.mxu0 %v262
  %399 = vmatpush1.bf16.msra.mxu0 %v261
  %400 = vmatprep.subr.bf16.mxu0 %v266
  %401 = vmatpush1.bf16.msra.mxu0 %v265
  %402 = vmatprep.subr.bf16.mxu0 %v270
  %403 = vmatpush1.bf16.msra.mxu0 %v269
  %404 = vmatprep.subr.bf16.mxu0 %v274
  %405 = vmatpush1.bf16.msra.mxu0 %v273
  %406 = vmatprep.subr.bf16.mxu0 %v278
  %407 = vmatpush1.bf16.msra.mxu0 %v277
  %408 = vmatprep.subr.bf16.mxu0 %v282
  %409 = vmatpush1.bf16.msra.mxu0 %v281
  %410 = vmatprep.subr.bf16.mxu0 %v286
  %411 = vmatpush1.bf16.msra.mxu0 %v285
  %412 = vmatprep.subr.bf16.mxu0 %v290
  %413 = vmatpush1.bf16.msra.mxu0 %v289
  %414 = vmatprep.subr.bf16.mxu0 0
  %415 = vmatpush1.bf16.msra.mxu0 0
  %416 = vmatprep.subr.bf16.mxu0 0
  %417 = vmatpush1.bf16.msra.mxu0 0
  %418 = vmatprep.subr.bf16.mxu0 0
  %419 = vmatpush1.bf16.msra.mxu0 0
  %420 = vmatprep.mubr.bf16.mxu0 %v345
  %421 = vmatmul.mubr.bf16.gmra.mrb[0].mxu0 %v80
  %v422 = vpop.f32.mrb[0].mxu0
  %v423 = vadd.f32 %v75, %v422
  %v424 = vpop.f32.mrb[0].mxu0
  %v425 = vadd.f32 %v75, %v424
  %v426 = vpop.f32.mrb[0].mxu0
  %v427 = vpop.f32.mrb[0].mxu0
  %428 = vdwg.mxu0
  %v429 = vld [vmem:[%s3] sm:$0xff]
  %v430 = vld [vmem:[%s3 + $0x8] sm:$0xff]
  %v431 = vunpack.c.l.bf16 %v429
  %v432 = vunpack.c.h.bf16 %v429
  %v433 = vunpack.c.l.bf16 %v430
  %v434 = vunpack.c.h.bf16 %v430
  %v435 = vadd.f32 %v382, %v431
  %v436 = vadd.f32 %v384, %v432
  %v437 = vadd.f32 %v423, %v433
  %v438 = vadd.f32 %v425, %v434
  %v439 = vmax.f32 %v435, 0.0
  %v440 = vmax.f32 %v436, 0.0
  %v441 = vmax.f32 %v437, 0.0
  %v442 = vmax.f32 %v438, 0.0
  %v443 = vpack.c.bf16 %v439, %v439
  %v444 = vpack.c.bf16 %v440, %v440
  %v445 = vpack.c.bf16 %v441, %v441
  %v446 = vpack.c.bf16 %v442, %v442
  %v451 = vunpack.c.l.b16 %v443
  %v452 = vunpack.c.l.b16 %v444
  %v453 = vunpack.c.l.b16 %v445
  %v454 = vunpack.c.l.b16 %v446
  %v455 = vpack.c.b16 %v452, %v451
  %v456 = vpack.c.b16 %v454, %v453
  %459 = vst [vmem:[%s4] sm:$0xff] %v455
  %460 = vst [vmem:[%s4 + $0x8] sm:$0xff] %v456
  // Predicated region
  $region18: #{_lambda_.19} parent=0 // pred_check
    _
  $region19: #{_lambda_.19} parent=0 // pred_check_branch
    %462 = sbr.rel (0) target = $region21
  $region20: #{_lambda_.19} parent=0 // pred_region
    _
  $region21: #{_lambda_.19} parent=0 // pred_fallthru
    _
  // Predicated region
  $region22: #{_lambda_.19} parent=0 // pred_check
    _
  $region23: #{_lambda_.19} parent=0 // pred_check_branch
    %464 = sbr.rel (0) target = $region25
  $region24: #{_lambda_.19} parent=0 // pred_region
    _
  $region25: #{_lambda_.19} parent=0 // pred_fallthru
    _

// kernel: _lambda_.18
$region0: #{_lambda_.18}
  #allocation0 [shape = 'u32[]', space=smem, size = 0x4, offset = 0x4, fixed_abs, tag = 'smem constant byte address 0x4 - core index']
  #allocation1 [shape = 'u32[144,128]{1,0:T(1,128)}', space=vmem, size = 0x12000, scoped, tag = 'internal scratch']
  %s0 = inlined_call_operand.vmem [shape: bf16[8,208], index: 0, kind: input, shape index: {}]
  %s1 = inlined_call_operand.vmem [shape: bf16[208,512], index: 1, kind: input, shape index: {}]
  %s2 = inlined_call_operand.vmem [shape: f32[8,1], index: 2, kind: input, shape index: {}]
  %s3 = inlined_call_operand.vmem [shape: bf16[8,512], index: 3, kind: output, shape index: {}]
  %s4 = sld [smem:[#allocation0]]
  $region22: #{_lambda_.18} parent=0
    _
  %s6 = ssub.s32 1, %s4
  %s7 = scalar_select 0, %s6, %s4
  // Predicated region
  $region2: #{_lambda_.18} parent=0 // pred_check
    _
  $region3: #{_lambda_.18} parent=0 // pred_check_branch
    %9 = sbr.rel (0) target = $region5
  $region4: #{_lambda_.18} parent=0 // pred_region
    _
  $region5: #{_lambda_.18} parent=0 // pred_fallthru
    _
  // Predicated region
  $region6: #{_lambda_.18} parent=0 // pred_check
    _
  $region7: #{_lambda_.18} parent=0 // pred_check_branch
    %11 = sbr.rel (0) target = $region9
  $region8: #{_lambda_.18} parent=0 // pred_region
    _
  $region9: #{_lambda_.18} parent=0 // pred_fallthru
    _
  // Predicated region
  $region10: #{_lambda_.18} parent=0 // pred_check
    _
  $region11: #{_lambda_.18} parent=0 // pred_check_branch
    %13 = sbr.rel (0) target = $region13
  $region12: #{_lambda_.18} parent=0 // pred_region
    _
  $region13: #{_lambda_.18} parent=0 // pred_fallthru
    _
  %v15 = vld [vmem:[%s0] sm:$0xff]
  %v16 = vld [vmem:[%s1] sm:$0xff]
  %v17 = vld [vmem:[%s1 + $0x8] sm:$0xff]
  %v18 = vld [vmem:[%s1 + $0x10] sm:$0xff]
  %v19 = vld [vmem:[%s1 + $0x18] sm:$0xff]
  %v20 = vld [vmem:[%s1 + $0x20] sm:$0xff]
  %v21 = vld [vmem:[%s1 + $0x28] sm:$0xff]
  %v22 = vld [vmem:[%s1 + $0x30] sm:$0xff]
  %v23 = vld [vmem:[%s1 + $0x38] sm:$0xff]
  %v24 = vld [vmem:[%s1 + $0x40] sm:$0xff]
  %v25 = vld [vmem:[%s1 + $0x48] sm:$0xff]
  %v26 = vld [vmem:[%s1 + $0x50] sm:$0xff]
  %v27 = vld [vmem:[%s1 + $0x58] sm:$0xff]
  %v28 = vld [vmem:[%s1 + $0x60] sm:$0xff]
  %v29 = vld [vmem:[%s1 + $0x68] sm:$0xff]
  %v30 = vld [vmem:[%s1 + $0x70] sm:$0xff]
  %v31 = vld [vmem:[%s1 + $0x78] sm:$0xff]
  %v32 = vld [vmem:[%s1 + $0x80] sm:$0xff]
  %v33 = vld [vmem:[%s1 + $0x88] sm:$0xff]
  %v34 = vld [vmem:[%s1 + $0x90] sm:$0xff]
  %v35 = vld [vmem:[%s1 + $0x98] sm:$0xff]
  %v36 = vld [vmem:[%s1 + $0xa0] sm:$0xff]
  %v37 = vld [vmem:[%s1 + $0xa8] sm:$0xff]
  %v38 = vld [vmem:[%s1 + $0xb0] sm:$0xff]
  %v39 = vld [vmem:[%s1 + $0xb8] sm:$0xff]
  %v40 = vld [vmem:[%s1 + $0xc0] sm:$0xff]
  %v41 = vld [vmem:[%s1 + $0xc8] sm:$0xff]
  %v42 = vld [vmem:[%s1 + $0xd0] sm:$0xff]
  %v43 = vld [vmem:[%s1 + $0xd8] sm:$0xff]
  %v44 = vld [vmem:[%s1 + $0xe0] sm:$0xff]
  %v45 = vld [vmem:[%s1 + $0xe8] sm:$0xff]
  %v46 = vld [vmem:[%s1 + $0xf0] sm:$0xff]
  %v47 = vld [vmem:[%s1 + $0xf8] sm:$0xff]
  %v48 = vld [vmem:[%s1 + $0x100] sm:$0xff]
  %v49 = vld [vmem:[%s1 + $0x108] sm:$0xff]
  %v50 = vld [vmem:[%s1 + $0x110] sm:$0xff]
  %v51 = vld [vmem:[%s1 + $0x118] sm:$0xff]
  %v52 = vld [vmem:[%s1 + $0x120] sm:$0xff]
  %v53 = vld [vmem:[%s1 + $0x128] sm:$0xff]
  %v54 = vld [vmem:[%s1 + $0x130] sm:$0xff]
  %v55 = vld [vmem:[%s1 + $0x138] sm:$0xff]
  %v56 = vld [vmem:[%s1 + $0x140] sm:$0xff]
  %v57 = vld [vmem:[%s1 + $0x148] sm:$0xff]
  %v58 = vld [vmem:[%s1 + $0x150] sm:$0xff]
  %v59 = vld [vmem:[%s1 + $0x158] sm:$0xff]
  %v60 = vld [vmem:[%s1 + $0x160] sm:$0xff]
  %v61 = vld [vmem:[%s1 + $0x168] sm:$0xff]
  %v62 = vld [vmem:[%s1 + $0x170] sm:$0xff]
  %v63 = vld [vmem:[%s1 + $0x178] sm:$0xff]
  %v64 = vld [vmem:[%s1 + $0x180] sm:$0xff]
  %v65 = vld [vmem:[%s1 + $0x188] sm:$0xff]
  %v66 = vld [vmem:[%s1 + $0x190] sm:$0xff]
  %v67 = vld [vmem:[%s1 + $0x198] sm:$0xff]
  %v68 = vld [vmem:[%s2] sm:$0xff]
  %70 = vset.pattern.permute.xlu0 0
  %71 = vperm.xlu0 %70, %v68
  %v72 = vpop.permute.xlu0 %71
  %v75 = vunpack.c.l.b16 %v15
  %v76 = vunpack.c.h.b16 %v15
  %v77 = vpack.c.b16 %v75, %v75
  %v78 = vpack.c.b16 %v76, %v76
  %v132 = vunpack.c.l.b16 %v16
  %v133 = vunpack.c.h.b16 %v16
  %v134 = vunpack.c.l.b16 %v17
  %v135 = vunpack.c.h.b16 %v17
  %v136 = vunpack.c.l.b16 %v18
  %v137 = vunpack.c.h.b16 %v18
  %v138 = vunpack.c.l.b16 %v19
  %v139 = vunpack.c.h.b16 %v19
  %v140 = vunpack.c.l.b16 %v20
  %v141 = vunpack.c.h.b16 %v20
  %v142 = vunpack.c.l.b16 %v21
  %v143 = vunpack.c.h.b16 %v21
  %v144 = vunpack.c.l.b16 %v22
  %v145 = vunpack.c.h.b16 %v22
  %v146 = vunpack.c.l.b16 %v23
  %v147 = vunpack.c.h.b16 %v23
  %v148 = vunpack.c.l.b16 %v24
  %v149 = vunpack.c.h.b16 %v24
  %v150 = vunpack.c.l.b16 %v25
  %v151 = vunpack.c.h.b16 %v25
  %v152 = vunpack.c.l.b16 %v26
  %v153 = vunpack.c.h.b16 %v26
  %v154 = vunpack.c.l.b16 %v27
  %v155 = vunpack.c.h.b16 %v27
  %v156 = vunpack.c.l.b16 %v28
  %v157 = vunpack.c.h.b16 %v28
  %v158 = vunpack.c.l.b16 %v29
  %v159 = vunpack.c.h.b16 %v29
  %v160 = vunpack.c.l.b16 %v30
  %v161 = vunpack.c.h.b16 %v30
  %v162 = vunpack.c.l.b16 %v31
  %v163 = vunpack.c.h.b16 %v31
  %v164 = vunpack.c.l.b16 %v32
  %v165 = vunpack.c.h.b16 %v32
  %v166 = vunpack.c.l.b16 %v33
  %v167 = vunpack.c.h.b16 %v33
  %v168 = vunpack.c.l.b16 %v34
  %v169 = vunpack.c.h.b16 %v34
  %v170 = vunpack.c.l.b16 %v35
  %v171 = vunpack.c.h.b16 %v35
  %v172 = vunpack.c.l.b16 %v36
  %v173 = vunpack.c.h.b16 %v36
  %v174 = vunpack.c.l.b16 %v37
  %v175 = vunpack.c.h.b16 %v37
  %v176 = vunpack.c.l.b16 %v38
  %v177 = vunpack.c.h.b16 %v38
  %v178 = vunpack.c.l.b16 %v39
  %v179 = vunpack.c.h.b16 %v39
  %v180 = vunpack.c.l.b16 %v40
  %v181 = vunpack.c.h.b16 %v40
  %v182 = vunpack.c.l.b16 %v41
  %v183 = vunpack.c.h.b16 %v41
  %v184 = vunpack.c.l.b16 %v42
  %v185 = vunpack.c.h.b16 %v42
  %v186 = vunpack.c.l.b16 %v43
  %v187 = vunpack.c.h.b16 %v43
  %v188 = vunpack.c.l.b16 %v44
  %v189 = vunpack.c.h.b16 %v44
  %v190 = vunpack.c.l.b16 %v45
  %v191 = vunpack.c.h.b16 %v45
  %v192 = vunpack.c.l.b16 %v46
  %v193 = vunpack.c.h.b16 %v46
  %v194 = vunpack.c.l.b16 %v47
  %v195 = vunpack.c.h.b16 %v47
  %v196 = vunpack.c.l.b16 %v48
  %v197 = vunpack.c.h.b16 %v48
  %v198 = vunpack.c.l.b16 %v49
  %v199 = vunpack.c.h.b16 %v49
  %v200 = vunpack.c.l.b16 %v50
  %v201 = vunpack.c.h.b16 %v50
  %v202 = vunpack.c.l.b16 %v51
  %v203 = vunpack.c.h.b16 %v51
  %v204 = vunpack.c.l.b16 %v52
  %v205 = vunpack.c.h.b16 %v52
  %v206 = vunpack.c.l.b16 %v53
  %v207 = vunpack.c.h.b16 %v53
  %v208 = vunpack.c.l.b16 %v54
  %v209 = vunpack.c.h.b16 %v54
  %v210 = vunpack.c.l.b16 %v55
  %v211 = vunpack.c.h.b16 %v55
  %v212 = vunpack.c.l.b16 %v56
  %v213 = vunpack.c.h.b16 %v56
  %v214 = vunpack.c.l.b16 %v57
  %v215 = vunpack.c.h.b16 %v57
  %v216 = vunpack.c.l.b16 %v58
  %v217 = vunpack.c.h.b16 %v58
  %v218 = vunpack.c.l.b16 %v59
  %v219 = vunpack.c.h.b16 %v59
  %v220 = vunpack.c.l.b16 %v60
  %v221 = vunpack.c.h.b16 %v60
  %v222 = vunpack.c.l.b16 %v61
  %v223 = vunpack.c.h.b16 %v61
  %v224 = vunpack.c.l.b16 %v62
  %v225 = vunpack.c.h.b16 %v62
  %v226 = vunpack.c.l.b16 %v63
  %v227 = vunpack.c.h.b16 %v63
  %v228 = vunpack.c.l.b16 %v64
  %v229 = vunpack.c.h.b16 %v64
  %v230 = vunpack.c.l.b16 %v65
  %v231 = vunpack.c.h.b16 %v65
  %v232 = vunpack.c.l.b16 %v66
  %v233 = vunpack.c.h.b16 %v66
  %v234 = vunpack.c.l.b16 %v67
  %v235 = vunpack.c.h.b16 %v67
  %v236 = vpack.c.b16 %v136, %v132
  %v237 = vpack.c.b16 %v137, %v133
  %v238 = vpack.c.b16 %v138, %v134
  %v239 = vpack.c.b16 %v139, %v135
  %v240 = vpack.c.b16 %v144, %v140
  %v241 = vpack.c.b16 %v145, %v141
  %v242 = vpack.c.b16 %v146, %v142
  %v243 = vpack.c.b16 %v147, %v143
  %v244 = vpack.c.b16 %v152, %v148
  %v245 = vpack.c.b16 %v153, %v149
  %v246 = vpack.c.b16 %v154, %v150
  %v247 = vpack.c.b16 %v155, %v151
  %v248 = vpack.c.b16 %v160, %v156
  %v249 = vpack.c.b16 %v161, %v157
  %v250 = vpack.c.b16 %v162, %v158
  %v251 = vpack.c.b16 %v163, %v159
  %v252 = vpack.c.b16 %v168, %v164
  %v253 = vpack.c.b16 %v169, %v165
  %v254 = vpack.c.b16 %v170, %v166
  %v255 = vpack.c.b16 %v171, %v167
  %v256 = vpack.c.b16 %v176, %v172
  %v257 = vpack.c.b16 %v177, %v173
  %v258 = vpack.c.b16 %v178, %v174
  %v259 = vpack.c.b16 %v179, %v175
  %v260 = vpack.c.b16 %v184, %v180
  %v261 = vpack.c.b16 %v185, %v181
  %v262 = vpack.c.b16 %v186, %v182
  %v263 = vpack.c.b16 %v187, %v183
  %v264 = vpack.c.b16 %v192, %v188
  %v265 = vpack.c.b16 %v193, %v189
  %v266 = vpack.c.b16 %v194, %v190
  %v267 = vpack.c.b16 %v195, %v191
  %v268 = vpack.c.b16 %v200, %v196
  %v269 = vpack.c.b16 %v201, %v197
  %v270 = vpack.c.b16 %v202, %v198
  %v271 = vpack.c.b16 %v203, %v199
  %v272 = vpack.c.b16 %v208, %v204
  %v273 = vpack.c.b16 %v209, %v205
  %v274 = vpack.c.b16 %v210, %v206
  %v275 = vpack.c.b16 %v211, %v207
  %v276 = vpack.c.b16 %v216, %v212
  %v277 = vpack.c.b16 %v217, %v213
  %v278 = vpack.c.b16 %v218, %v214
  %v279 = vpack.c.b16 %v219, %v215
  %v280 = vpack.c.b16 %v224, %v220
  %v281 = vpack.c.b16 %v225, %v221
  %v282 = vpack.c.b16 %v226, %v222
  %v283 = vpack.c.b16 %v227, %v223
  %v284 = vpack.c.b16 %v232, %v228
  %v285 = vpack.c.b16 %v233, %v229
  %v286 = vpack.c.b16 %v234, %v230
  %v287 = vpack.c.b16 %v235, %v231
  %vm340 = vcmask 654336
  %v342 = vsel %vm340, %v78, 0
  %344 = vmatprep.subr.bf16.mxu0 %v237
  %345 = vmatpush1.bf16.msra.mxu0 %v236
  %346 = vmatprep.subr.bf16.mxu0 %v241
  %347 = vmatpush1.bf16.msra.mxu0 %v240
  %348 = vmatprep.subr.bf16.mxu0 %v245
  %349 = vmatpush1.bf16.msra.mxu0 %v244
  %350 = vmatprep.subr.bf16.mxu0 %v249
  %351 = vmatpush1.bf16.msra.mxu0 %v248
  %352 = vmatprep.subr.bf16.mxu0 %v253
  %353 = vmatpush1.bf16.msra.mxu0 %v252
  %354 = vmatprep.subr.bf16.mxu0 %v257
  %355 = vmatpush1.bf16.msra.mxu0 %v256
  %356 = vmatprep.subr.bf16.mxu0 %v261
  %357 = vmatpush1.bf16.msra.mxu0 %v260
  %358 = vmatprep.subr.bf16.mxu0 %v265
  %359 = vmatpush1.bf16.msra.mxu0 %v264
  %360 = vmatprep.subr.bf16.mxu0 %v269
  %361 = vmatpush1.bf16.msra.mxu0 %v268
  %362 = vmatprep.subr.bf16.mxu0 %v273
  %363 = vmatpush1.bf16.msra.mxu0 %v272
  %364 = vmatprep.subr.bf16.mxu0 %v277
  %365 = vmatpush1.bf16.msra.mxu0 %v276
  %366 = vmatprep.subr.bf16.mxu0 %v281
  %367 = vmatpush1.bf16.msra.mxu0 %v280
  %368 = vmatprep.subr.bf16.mxu0 %v285
  %369 = vmatpush1.bf16.msra.mxu0 %v284
  %370 = vmatprep.subr.bf16.mxu0 0
  %371 = vmatpush1.bf16.msra.mxu0 0
  %372 = vmatprep.subr.bf16.mxu0 0
  %373 = vmatpush1.bf16.msra.mxu0 0
  %374 = vmatprep.subr.bf16.mxu0 0
  %375 = vmatpush1.bf16.msra.mxu0 0
  %376 = vmatprep.mubr.bf16.mxu0 %v342
  %377 = vmatmul.mubr.bf16.gmra.mrb[0].mxu0 %v77
  %v378 = vpop.f32.mrb[0].mxu0
  %v379 = vadd.f32 %v72, %v378
  %v380 = vpop.f32.mrb[0].mxu0
  %v381 = vadd.f32 %v72, %v380
  %v382 = vpop.f32.mrb[0].mxu0
  %v383 = vpop.f32.mrb[0].mxu0
  %384 = vdwg.mxu0
  %385 = vmatprep.subr.bf16.mxu0 %v239
  %386 = vmatpush1.bf16.msra.mxu0 %v238
  %387 = vmatprep.subr.bf16.mxu0 %v243
  %388 = vmatpush1.bf16.msra.mxu0 %v242
  %389 = vmatprep.subr.bf16.mxu0 %v247
  %390 = vmatpush1.bf16.msra.mxu0 %v246
  %391 = vmatprep.subr.bf16.mxu0 %v251
  %392 = vmatpush1.bf16.msra.mxu0 %v250
  %393 = vmatprep.subr.bf16.mxu0 %v255
  %394 = vmatpush1.bf16.msra.mxu0 %v254
  %395 = vmatprep.subr.bf16.mxu0 %v259
  %396 = vmatpush1.bf16.msra.mxu0 %v258
  %397 = vmatprep.subr.bf16.mxu0 %v263
  %398 = vmatpush1.bf16.msra.mxu0 %v262
  %399 = vmatprep.subr.bf16.mxu0 %v267
  %400 = vmatpush1.bf16.msra.mxu0 %v266
  %401 = vmatprep.subr.bf16.mxu0 %v271
  %402 = vmatpush1.bf16.msra.mxu0 %v270
  %403 = vmatprep.subr.bf16.mxu0 %v275
  %404 = vmatpush1.bf16.msra.mxu0 %v274
  %405 = vmatprep.subr.bf16.mxu0 %v279
  %406 = vmatpush1.bf16.msra.mxu0 %v278
  %407 = vmatprep.subr.bf16.mxu0 %v283
  %408 = vmatpush1.bf16.msra.mxu0 %v282
  %409 = vmatprep.subr.bf16.mxu0 %v287
  %410 = vmatpush1.bf16.msra.mxu0 %v286
  %411 = vmatprep.subr.bf16.mxu0 0
  %412 = vmatpush1.bf16.msra.mxu0 0
  %413 = vmatprep.subr.bf16.mxu0 0
  %414 = vmatpush1.bf16.msra.mxu0 0
  %415 = vmatprep.subr.bf16.mxu0 0
  %416 = vmatpush1.bf16.msra.mxu0 0
  %417 = vmatprep.mubr.bf16.mxu0 %v342
  %418 = vmatmul.mubr.bf16.gmra.mrb[0].mxu0 %v77
  %v419 = vpop.f32.mrb[0].mxu0
  %v420 = vadd.f32 %v72, %v419
  %v421 = vpop.f32.mrb[0].mxu0
  %v422 = vadd.f32 %v72, %v421
  %v423 = vpop.f32.mrb[0].mxu0
  %v424 = vpop.f32.mrb[0].mxu0
  %425 = vdwg.mxu0
  %v426 = vmax.f32 %v379, 0.0
  %v427 = vmax.f32 %v381, 0.0
  %v428 = vmax.f32 %v420, 0.0
  %v429 = vmax.f32 %v422, 0.0
  %v430 = vpack.c.bf16 %v426, %v426
  %v431 = vpack.c.bf16 %v427, %v427
  %v432 = vpack.c.bf16 %v428, %v428
  %v433 = vpack.c.bf16 %v429, %v429
  %v438 = vunpack.c.l.b16 %v430
  %v439 = vunpack.c.l.b16 %v431
  %v440 = vunpack.c.l.b16 %v432
  %v441 = vunpack.c.l.b16 %v433
  %v442 = vpack.c.b16 %v439, %v438
  %v443 = vpack.c.b16 %v441, %v440
  %446 = vst [vmem:[%s3] sm:$0xff] %v442
  %447 = vst [vmem:[%s3 + $0x8] sm:$0xff] %v443
  // Predicated region
  $region14: #{_lambda_.18} parent=0 // pred_check
    _
  $region15: #{_lambda_.18} parent=0 // pred_check_branch
    %449 = sbr.rel (0) target = $region17
  $region16: #{_lambda_.18} parent=0 // pred_region
    _
  $region17: #{_lambda_.18} parent=0 // pred_fallthru
    _
  // Predicated region
  $region18: #{_lambda_.18} parent=0 // pred_check
    _
  $region19: #{_lambda_.18} parent=0 // pred_check_branch
    %451 = sbr.rel (0) target = $region21
  $region20: #{_lambda_.18} parent=0 // pred_region
    _
  $region21: #{_lambda_.18} parent=0 // pred_fallthru
    _

// kernel: _lambda_.22
$region0: #{_lambda_.22}
  #allocation0 [shape = 'u32[]', space=smem, size = 0x4, offset = 0x4, fixed_abs, tag = 'smem constant byte address 0x4 - core index']
  #allocation1 [shape = 'u32[144,128]{1,0:T(1,128)}', space=vmem, size = 0x12000, scoped, tag = 'internal scratch']
  %s0 = inlined_call_operand.vmem [shape: bf16[16,208], index: 0, kind: input, shape index: {}]
  %s1 = inlined_call_operand.vmem [shape: bf16[208,128], index: 1, kind: input, shape index: {}]
  %s2 = inlined_call_operand.vmem [shape: f32[16,1], index: 2, kind: input, shape index: {}]
  %s3 = inlined_call_operand.vmem [shape: bf16[16,128], index: 3, kind: output, shape index: {}]
  %s4 = sld [smem:[#allocation0]]
  $region22: #{_lambda_.22} parent=0
    _
  %s6 = ssub.s32 1, %s4
  %s7 = scalar_select 0, %s6, %s4
  // Predicated region
  $region2: #{_lambda_.22} parent=0 // pred_check
    _
  $region3: #{_lambda_.22} parent=0 // pred_check_branch
    %9 = sbr.rel (0) target = $region5
  $region4: #{_lambda_.22} parent=0 // pred_region
    _
  $region5: #{_lambda_.22} parent=0 // pred_fallthru
    _
  // Predicated region
  $region6: #{_lambda_.22} parent=0 // pred_check
    _
  $region7: #{_lambda_.22} parent=0 // pred_check_branch
    %11 = sbr.rel (0) target = $region9
  $region8: #{_lambda_.22} parent=0 // pred_region
    _
  $region9: #{_lambda_.22} parent=0 // pred_fallthru
    _
  // Predicated region
  $region10: #{_lambda_.22} parent=0 // pred_check
    _
  $region11: #{_lambda_.22} parent=0 // pred_check_branch
    %13 = sbr.rel (0) target = $region13
  $region12: #{_lambda_.22} parent=0 // pred_region
    _
  $region13: #{_lambda_.22} parent=0 // pred_fallthru
    _
  %v15 = vld [vmem:[%s0] sm:$0xff]
  %v16 = vld [vmem:[%s0 + $0x8] sm:$0xff]
  %v17 = vld [vmem:[%s1] sm:$0xf]
  %v18 = vld [vmem:[%s1 + $0x4] sm:$0xf]
  %v19 = vld [vmem:[%s1 + $0x8] sm:$0xf]
  %v20 = vld [vmem:[%s1 + $0xc] sm:$0xf]
  %v21 = vld [vmem:[%s1 + $0x10] sm:$0xf]
  %v22 = vld [vmem:[%s1 + $0x14] sm:$0xf]
  %v23 = vld [vmem:[%s1 + $0x18] sm:$0xf]
  %v24 = vld [vmem:[%s1 + $0x1c] sm:$0xf]
  %v25 = vld [vmem:[%s1 + $0x20] sm:$0xf]
  %v26 = vld [vmem:[%s1 + $0x24] sm:$0xf]
  %v27 = vld [vmem:[%s1 + $0x28] sm:$0xf]
  %v28 = vld [vmem:[%s1 + $0x2c] sm:$0xf]
  %v29 = vld [vmem:[%s1 + $0x30] sm:$0xf]
  %v30 = vld [vmem:[%s1 + $0x34] sm:$0xf]
  %v31 = vld [vmem:[%s1 + $0x38] sm:$0xf]
  %v32 = vld [vmem:[%s1 + $0x3c] sm:$0xf]
  %v33 = vld [vmem:[%s1 + $0x40] sm:$0xf]
  %v34 = vld [vmem:[%s1 + $0x44] sm:$0xf]
  %v35 = vld [vmem:[%s1 + $0x48] sm:$0xf]
  %v36 = vld [vmem:[%s1 + $0x4c] sm:$0xf]
  %v37 = vld [vmem:[%s1 + $0x50] sm:$0xf]
  %v38 = vld [vmem:[%s1 + $0x54] sm:$0xf]
  %v39 = vld [vmem:[%s1 + $0x58] sm:$0xf]
  %v40 = vld [vmem:[%s1 + $0x5c] sm:$0xf]
  %v41 = vld [vmem:[%s1 + $0x60] sm:$0xf]
  %v42 = vld [vmem:[%s1 + $0x64] sm:$0xf]
  %v43 = vld [vmem:[%s2] sm:$0xff]
  %v44 = vld [vmem:[%s2 + $0x8] sm:$0xff]
  %46 = vset.pattern.permute.xlu0 0
  %47 = vperm.xlu0 %46, %v43
  %v48 = vpop.permute.xlu0 %47
  %51 = vset.pattern.permute.xlu0 0
  %52 = vperm.xlu0 %51, %v44
  %v53 = vpop.permute.xlu0 %52
  %v57 = vunpack.c.l.b16 %v15
  %v58 = vunpack.c.h.b16 %v15
  %v59 = vunpack.c.l.b16 %v16
  %v60 = vunpack.c.h.b16 %v16
  %v61 = vpack.c.b16 %v59, %v57
  %v62 = vpack.c.b16 %v60, %v58
  %v90 = vunpack.c.l.b16 %v17
  %v91 = vunpack.c.l.b16 %v18
  %v92 = vunpack.c.l.b16 %v19
  %v93 = vunpack.c.l.b16 %v20
  %v94 = vunpack.c.l.b16 %v21
  %v95 = vunpack.c.l.b16 %v22
  %v96 = vunpack.c.l.b16 %v23
  %v97 = vunpack.c.l.b16 %v24
  %v98 = vunpack.c.l.b16 %v25
  %v99 = vunpack.c.l.b16 %v26
  %v100 = vunpack.c.l.b16 %v27
  %v101 = vunpack.c.l.b16 %v28
  %v102 = vunpack.c.l.b16 %v29
  %v103 = vunpack.c.l.b16 %v30
  %v104 = vunpack.c.l.b16 %v31
  %v105 = vunpack.c.l.b16 %v32
  %v106 = vunpack.c.l.b16 %v33
  %v107 = vunpack.c.l.b16 %v34
  %v108 = vunpack.c.l.b16 %v35
  %v109 = vunpack.c.l.b16 %v36
  %v110 = vunpack.c.l.b16 %v37
  %v111 = vunpack.c.l.b16 %v38
  %v112 = vunpack.c.l.b16 %v39
  %v113 = vunpack.c.l.b16 %v40
  %v114 = vunpack.c.l.b16 %v41
  %v115 = vunpack.c.l.b16 %v42
  %v116 = vpack.c.b16 %v91, %v90
  %v117 = vpack.c.b16 %v93, %v92
  %v118 = vpack.c.b16 %v95, %v94
  %v119 = vpack.c.b16 %v97, %v96
  %v120 = vpack.c.b16 %v99, %v98
  %v121 = vpack.c.b16 %v101, %v100
  %v122 = vpack.c.b16 %v103, %v102
  %v123 = vpack.c.b16 %v105, %v104
  %v124 = vpack.c.b16 %v107, %v106
  %v125 = vpack.c.b16 %v109, %v108
  %v126 = vpack.c.b16 %v111, %v110
  %v127 = vpack.c.b16 %v113, %v112
  %v128 = vpack.c.b16 %v115, %v114
  %vm142 = vcmask 654336
  %v144 = vsel %vm142, %v62, 0
  %146 = vmatprep.subr.bf16.mxu0 0
  %147 = vmatpush1.bf16.msra.mxu0 %v116
  %148 = vmatprep.subr.bf16.mxu0 0
  %149 = vmatpush1.bf16.msra.mxu0 %v117
  %150 = vmatprep.subr.bf16.mxu0 0
  %151 = vmatpush1.bf16.msra.mxu0 %v118
  %152 = vmatprep.subr.bf16.mxu0 0
  %153 = vmatpush1.bf16.msra.mxu0 %v119
  %154 = vmatprep.subr.bf16.mxu0 0
  %155 = vmatpush1.bf16.msra.mxu0 %v120
  %156 = vmatprep.subr.bf16.mxu0 0
  %157 = vmatpush1.bf16.msra.mxu0 %v121
  %158 = vmatprep.subr.bf16.mxu0 0
  %159 = vmatpush1.bf16.msra.mxu0 %v122
  %160 = vmatprep.subr.bf16.mxu0 0
  %161 = vmatpush1.bf16.msra.mxu0 %v123
  %162 = vmatprep.subr.bf16.mxu0 0
  %163 = vmatpush1.bf16.msra.mxu0 %v124
  %164 = vmatprep.subr.bf16.mxu0 0
  %165 = vmatpush1.bf16.msra.mxu0 %v125
  %166 = vmatprep.subr.bf16.mxu0 0
  %167 = vmatpush1.bf16.msra.mxu0 %v126
  %168 = vmatprep.subr.bf16.mxu0 0
  %169 = vmatpush1.bf16.msra.mxu0 %v127
  %170 = vmatprep.subr.bf16.mxu0 0
  %171 = vmatpush1.bf16.msra.mxu0 %v128
  %172 = vmatprep.subr.bf16.mxu0 0
  %173 = vmatpush1.bf16.msra.mxu0 0
  %174 = vmatprep.subr.bf16.mxu0 0
  %175 = vmatpush1.bf16.msra.mxu0 0
  %176 = vmatprep.subr.bf16.mxu0 0
  %177 = vmatpush1.bf16.msra.mxu0 0
  %178 = vmatprep.mubr.bf16.mxu0 %v144
  %179 = vmatmul.mubr.bf16.gmra.mrb[0].mxu0 %v61
  %v180 = vpop.f32.mrb[0].mxu0
  %v181 = vadd.f32 %v48, %v180
  %v182 = vpop.f32.mrb[0].mxu0
  %v183 = vpop.f32.mrb[0].mxu0
  %v184 = vadd.f32 %v53, %v183
  %v185 = vpop.f32.mrb[0].mxu0
  %186 = vdwg.mxu0
  %v187 = vmax.f32 %v181, 0.0
  %v188 = vmax.f32 %v184, 0.0
  %v189 = vpack.c.bf16 %v188, %v187
  %v191 = vunpack.c.l.b16 %v189
  %v192 = vunpack.c.h.b16 %v189
  %v193 = vpack.c.b16 %v191, %v191
  %v194 = vpack.c.b16 %v192, %v192
  %197 = vst [vmem:[%s3] sm:$0xf] %v193
  %198 = vst [vmem:[%s3 + $0x4] sm:$0xf] %v194
  // Predicated region
  $region14: #{_lambda_.22} parent=0 // pred_check
    _
  $region15: #{_lambda_.22} parent=0 // pred_check_branch
    %200 = sbr.rel (0) target = $region17
  $region16: #{_lambda_.22} parent=0 // pred_region
    _
  $region17: #{_lambda_.22} parent=0 // pred_fallthru
    _
  // Predicated region
  $region18: #{_lambda_.22} parent=0 // pred_check
    _
  $region19: #{_lambda_.22} parent=0 // pred_check_branch
    %202 = sbr.rel (0) target = $region21
  $region20: #{_lambda_.22} parent=0 // pred_region
    _
  $region21: #{_lambda_.22} parent=0 // pred_fallthru
    _

// kernel: _lambda_.23
$region0: #{_lambda_.23}
  #allocation0 [shape = 'u32[]', space=smem, size = 0x4, offset = 0x4, fixed_abs, tag = 'smem constant byte address 0x4 - core index']
  #allocation1 [shape = 'u32[144,128]{1,0:T(1,128)}', space=vmem, size = 0x12000, scoped, tag = 'internal scratch']
  %s0 = inlined_call_operand.vmem [shape: bf16[16,208], index: 0, kind: input, shape index: {}]
  %s1 = inlined_call_operand.vmem [shape: bf16[208,128], index: 1, kind: input, shape index: {}]
  %s2 = inlined_call_operand.vmem [shape: f32[16,1], index: 2, kind: input, shape index: {}]
  %s3 = inlined_call_operand.vmem [shape: bf16[16,128], index: 3, kind: output, shape index: {}]
  %s4 = sld [smem:[#allocation0]]
  $region22: #{_lambda_.23} parent=0
    _
  %s6 = ssub.s32 1, %s4
  %s7 = scalar_select 0, %s6, %s4
  // Predicated region
  $region2: #{_lambda_.23} parent=0 // pred_check
    _
  $region3: #{_lambda_.23} parent=0 // pred_check_branch
    %9 = sbr.rel (0) target = $region5
  $region4: #{_lambda_.23} parent=0 // pred_region
    _
  $region5: #{_lambda_.23} parent=0 // pred_fallthru
    _
  // Predicated region
  $region6: #{_lambda_.23} parent=0 // pred_check
    _
  $region7: #{_lambda_.23} parent=0 // pred_check_branch
    %11 = sbr.rel (0) target = $region9
  $region8: #{_lambda_.23} parent=0 // pred_region
    _
  $region9: #{_lambda_.23} parent=0 // pred_fallthru
    _
  // Predicated region
  $region10: #{_lambda_.23} parent=0 // pred_check
    _
  $region11: #{_lambda_.23} parent=0 // pred_check_branch
    %13 = sbr.rel (0) target = $region13
  $region12: #{_lambda_.23} parent=0 // pred_region
    _
  $region13: #{_lambda_.23} parent=0 // pred_fallthru
    _
  %v15 = vld [vmem:[%s0] sm:$0xff]
  %v16 = vld [vmem:[%s0 + $0x8] sm:$0xff]
  %v17 = vld [vmem:[%s1] sm:$0xf]
  %v18 = vld [vmem:[%s1 + $0x4] sm:$0xf]
  %v19 = vld [vmem:[%s1 + $0x8] sm:$0xf]
  %v20 = vld [vmem:[%s1 + $0xc] sm:$0xf]
  %v21 = vld [vmem:[%s1 + $0x10] sm:$0xf]
  %v22 = vld [vmem:[%s1 + $0x14] sm:$0xf]
  %v23 = vld [vmem:[%s1 + $0x18] sm:$0xf]
  %v24 = vld [vmem:[%s1 + $0x1c] sm:$0xf]
  %v25 = vld [vmem:[%s1 + $0x20] sm:$0xf]
  %v26 = vld [vmem:[%s1 + $0x24] sm:$0xf]
  %v27 = vld [vmem:[%s1 + $0x28] sm:$0xf]
  %v28 = vld [vmem:[%s1 + $0x2c] sm:$0xf]
  %v29 = vld [vmem:[%s1 + $0x30] sm:$0xf]
  %v30 = vld [vmem:[%s1 + $0x34] sm:$0xf]
  %v31 = vld [vmem:[%s1 + $0x38] sm:$0xf]
  %v32 = vld [vmem:[%s1 + $0x3c] sm:$0xf]
  %v33 = vld [vmem:[%s1 + $0x40] sm:$0xf]
  %v34 = vld [vmem:[%s1 + $0x44] sm:$0xf]
  %v35 = vld [vmem:[%s1 + $0x48] sm:$0xf]
  %v36 = vld [vmem:[%s1 + $0x4c] sm:$0xf]
  %v37 = vld [vmem:[%s1 + $0x50] sm:$0xf]
  %v38 = vld [vmem:[%s1 + $0x54] sm:$0xf]
  %v39 = vld [vmem:[%s1 + $0x58] sm:$0xf]
  %v40 = vld [vmem:[%s1 + $0x5c] sm:$0xf]
  %v41 = vld [vmem:[%s1 + $0x60] sm:$0xf]
  %v42 = vld [vmem:[%s1 + $0x64] sm:$0xf]
  %v43 = vld [vmem:[%s2] sm:$0xff]
  %v44 = vld [vmem:[%s2 + $0x8] sm:$0xff]
  %46 = vset.pattern.permute.xlu0 0
  %47 = vperm.xlu0 %46, %v43
  %v48 = vpop.permute.xlu0 %47
  %51 = vset.pattern.permute.xlu0 0
  %52 = vperm.xlu0 %51, %v44
  %v53 = vpop.permute.xlu0 %52
  %v57 = vunpack.c.l.b16 %v15
  %v58 = vunpack.c.h.b16 %v15
  %v59 = vunpack.c.l.b16 %v16
  %v60 = vunpack.c.h.b16 %v16
  %v61 = vpack.c.b16 %v59, %v57
  %v62 = vpack.c.b16 %v60, %v58
  %v90 = vunpack.c.l.b16 %v17
  %v91 = vunpack.c.l.b16 %v18
  %v92 = vunpack.c.l.b16 %v19
  %v93 = vunpack.c.l.b16 %v20
  %v94 = vunpack.c.l.b16 %v21
  %v95 = vunpack.c.l.b16 %v22
  %v96 = vunpack.c.l.b16 %v23
  %v97 = vunpack.c.l.b16 %v24
  %v98 = vunpack.c.l.b16 %v25
  %v99 = vunpack.c.l.b16 %v26
  %v100 = vunpack.c.l.b16 %v27
  %v101 = vunpack.c.l.b16 %v28
  %v102 = vunpack.c.l.b16 %v29
  %v103 = vunpack.c.l.b16 %v30
  %v104 = vunpack.c.l.b16 %v31
  %v105 = vunpack.c.l.b16 %v32
  %v106 = vunpack.c.l.b16 %v33
  %v107 = vunpack.c.l.b16 %v34
  %v108 = vunpack.c.l.b16 %v35
  %v109 = vunpack.c.l.b16 %v36
  %v110 = vunpack.c.l.b16 %v37
  %v111 = vunpack.c.l.b16 %v38
  %v112 = vunpack.c.l.b16 %v39
  %v113 = vunpack.c.l.b16 %v40
  %v114 = vunpack.c.l.b16 %v41
  %v115 = vunpack.c.l.b16 %v42
  %v116 = vpack.c.b16 %v91, %v90
  %v117 = vpack.c.b16 %v93, %v92
  %v118 = vpack.c.b16 %v95, %v94
  %v119 = vpack.c.b16 %v97, %v96
  %v120 = vpack.c.b16 %v99, %v98
  %v121 = vpack.c.b16 %v101, %v100
  %v122 = vpack.c.b16 %v103, %v102
  %v123 = vpack.c.b16 %v105, %v104
  %v124 = vpack.c.b16 %v107, %v106
  %v125 = vpack.c.b16 %v109, %v108
  %v126 = vpack.c.b16 %v111, %v110
  %v127 = vpack.c.b16 %v113, %v112
  %v128 = vpack.c.b16 %v115, %v114
  %vm142 = vcmask 654336
  %v144 = vsel %vm142, %v62, 0
  %146 = vmatprep.subr.bf16.mxu0 0
  %147 = vmatpush1.bf16.msra.mxu0 %v116
  %148 = vmatprep.subr.bf16.mxu0 0
  %149 = vmatpush1.bf16.msra.mxu0 %v117
  %150 = vmatprep.subr.bf16.mxu0 0
  %151 = vmatpush1.bf16.msra.mxu0 %v118
  %152 = vmatprep.subr.bf16.mxu0 0
  %153 = vmatpush1.bf16.msra.mxu0 %v119
  %154 = vmatprep.subr.bf16.mxu0 0
  %155 = vmatpush1.bf16.msra.mxu0 %v120
  %156 = vmatprep.subr.bf16.mxu0 0
  %157 = vmatpush1.bf16.msra.mxu0 %v121
  %158 = vmatprep.subr.bf16.mxu0 0
  %159 = vmatpush1.bf16.msra.mxu0 %v122
  %160 = vmatprep.subr.bf16.mxu0 0
  %161 = vmatpush1.bf16.msra.mxu0 %v123
  %162 = vmatprep.subr.bf16.mxu0 0
  %163 = vmatpush1.bf16.msra.mxu0 %v124
  %164 = vmatprep.subr.bf16.mxu0 0
  %165 = vmatpush1.bf16.msra.mxu0 %v125
  %166 = vmatprep.subr.bf16.mxu0 0
  %167 = vmatpush1.bf16.msra.mxu0 %v126
  %168 = vmatprep.subr.bf16.mxu0 0
  %169 = vmatpush1.bf16.msra.mxu0 %v127
  %170 = vmatprep.subr.bf16.mxu0 0
  %171 = vmatpush1.bf16.msra.mxu0 %v128
  %172 = vmatprep.subr.bf16.mxu0 0
  %173 = vmatpush1.bf16.msra.mxu0 0
  %174 = vmatprep.subr.bf16.mxu0 0
  %175 = vmatpush1.bf16.msra.mxu0 0
  %176 = vmatprep.subr.bf16.mxu0 0
  %177 = vmatpush1.bf16.msra.mxu0 0
  %178 = vmatprep.mubr.bf16.mxu0 %v144
  %179 = vmatmul.mubr.bf16.gmra.mrb[0].mxu0 %v61
  %v180 = vpop.f32.mrb[0].mxu0
  %v181 = vadd.f32 %v48, %v180
  %v182 = vpop.f32.mrb[0].mxu0
  %v183 = vpop.f32.mrb[0].mxu0
  %v184 = vadd.f32 %v53, %v183
  %v185 = vpop.f32.mrb[0].mxu0
  %186 = vdwg.mxu0
  %v187 = vpack.c.bf16 %v184, %v181
  %v189 = vunpack.c.l.b16 %v187
  %v190 = vunpack.c.h.b16 %v187
  %v191 = vpack.c.b16 %v189, %v189
  %v192 = vpack.c.b16 %v190, %v190
  %195 = vst [vmem:[%s3] sm:$0xf] %v191
  %196 = vst [vmem:[%s3 + $0x4] sm:$0xf] %v192
  // Predicated region
  $region14: #{_lambda_.23} parent=0 // pred_check
    _
  $region15: #{_lambda_.23} parent=0 // pred_check_branch
    %198 = sbr.rel (0) target = $region17
  $region16: #{_lambda_.23} parent=0 // pred_region
    _
  $region17: #{_lambda_.23} parent=0 // pred_fallthru
    _
  // Predicated region
  $region18: #{_lambda_.23} parent=0 // pred_check
    _
  $region19: #{_lambda_.23} parent=0 // pred_check_branch
    %200 = sbr.rel (0) target = $region21
  $region20: #{_lambda_.23} parent=0 // pred_region
    _
  $region21: #{_lambda_.23} parent=0 // pred_fallthru
    _

// kernel: _lambda_.24
$region0: #{_lambda_.24}
  #allocation0 [shape = 'u32[]', space=smem, size = 0x4, offset = 0x4, fixed_abs, tag = 'smem constant byte address 0x4 - core index']
  #allocation1 [shape = 'u32[144,128]{1,0:T(1,128)}', space=vmem, size = 0x12000, scoped, tag = 'internal scratch']
  %s0 = inlined_call_operand.vmem [shape: bf16[16,400], index: 0, kind: input, shape index: {}]
  %s1 = inlined_call_operand.vmem [shape: bf16[400,128], index: 1, kind: input, shape index: {}]
  %s2 = inlined_call_operand.vmem [shape: f32[16,1], index: 2, kind: input, shape index: {}]
  %s3 = inlined_call_operand.vmem [shape: bf16[16,128], index: 3, kind: input, shape index: {}]
  %s4 = inlined_call_operand.vmem [shape: bf16[16,128], index: 4, kind: output, shape index: {}]
  %s5 = sld [smem:[#allocation0]]
  $region26: #{_lambda_.24} parent=0
    _
  %s7 = ssub.s32 1, %s5
  %s8 = scalar_select 0, %s7, %s5
  // Predicated region
  $region2: #{_lambda_.24} parent=0 // pred_check
    _
  $region3: #{_lambda_.24} parent=0 // pred_check_branch
    %10 = sbr.rel (0) target = $region5
  $region4: #{_lambda_.24} parent=0 // pred_region
    _
  $region5: #{_lambda_.24} parent=0 // pred_fallthru
    _
  // Predicated region
  $region6: #{_lambda_.24} parent=0 // pred_check
    _
  $region7: #{_lambda_.24} parent=0 // pred_check_branch
    %12 = sbr.rel (0) target = $region9
  $region8: #{_lambda_.24} parent=0 // pred_region
    _
  $region9: #{_lambda_.24} parent=0 // pred_fallthru
    _
  // Predicated region
  $region10: #{_lambda_.24} parent=0 // pred_check
    _
  $region11: #{_lambda_.24} parent=0 // pred_check_branch
    %14 = sbr.rel (0) target = $region13
  $region12: #{_lambda_.24} parent=0 // pred_region
    _
  $region13: #{_lambda_.24} parent=0 // pred_fallthru
    _
  // Predicated region
  $region14: #{_lambda_.24} parent=0 // pred_check
    _
  $region15: #{_lambda_.24} parent=0 // pred_check_branch
    %16 = sbr.rel (0) target = $region17
  $region16: #{_lambda_.24} parent=0 // pred_region
    _
  $region17: #{_lambda_.24} parent=0 // pred_fallthru
    _
  %v18 = vld [vmem:[%s0] sm:$0xff]
  %v19 = vld [vmem:[%s0 + $0x8] sm:$0xff]
  %v20 = vld [vmem:[%s0 + $0x10] sm:$0xff]
  %v21 = vld [vmem:[%s0 + $0x18] sm:$0xff]
  %v22 = vld [vmem:[%s1] sm:$0xf]
  %v23 = vld [vmem:[%s1 + $0x4] sm:$0xf]
  %v24 = vld [vmem:[%s1 + $0x8] sm:$0xf]
  %v25 = vld [vmem:[%s1 + $0xc] sm:$0xf]
  %v26 = vld [vmem:[%s1 + $0x10] sm:$0xf]
  %v27 = vld [vmem:[%s1 + $0x14] sm:$0xf]
  %v28 = vld [vmem:[%s1 + $0x18] sm:$0xf]
  %v29 = vld [vmem:[%s1 + $0x1c] sm:$0xf]
  %v30 = vld [vmem:[%s1 + $0x20] sm:$0xf]
  %v31 = vld [vmem:[%s1 + $0x24] sm:$0xf]
  %v32 = vld [vmem:[%s1 + $0x28] sm:$0xf]
  %v33 = vld [vmem:[%s1 + $0x2c] sm:$0xf]
  %v34 = vld [vmem:[%s1 + $0x30] sm:$0xf]
  %v35 = vld [vmem:[%s1 + $0x34] sm:$0xf]
  %v36 = vld [vmem:[%s1 + $0x38] sm:$0xf]
  %v37 = vld [vmem:[%s1 + $0x3c] sm:$0xf]
  %v38 = vld [vmem:[%s1 + $0x40] sm:$0xf]
  %v39 = vld [vmem:[%s1 + $0x44] sm:$0xf]
  %v40 = vld [vmem:[%s1 + $0x48] sm:$0xf]
  %v41 = vld [vmem:[%s1 + $0x4c] sm:$0xf]
  %v42 = vld [vmem:[%s1 + $0x50] sm:$0xf]
  %v43 = vld [vmem:[%s1 + $0x54] sm:$0xf]
  %v44 = vld [vmem:[%s1 + $0x58] sm:$0xf]
  %v45 = vld [vmem:[%s1 + $0x5c] sm:$0xf]
  %v46 = vld [vmem:[%s1 + $0x60] sm:$0xf]
  %v47 = vld [vmem:[%s1 + $0x64] sm:$0xf]
  %v48 = vld [vmem:[%s1 + $0x68] sm:$0xf]
  %v49 = vld [vmem:[%s1 + $0x6c] sm:$0xf]
  %v50 = vld [vmem:[%s1 + $0x70] sm:$0xf]
  %v51 = vld [vmem:[%s1 + $0x74] sm:$0xf]
  %v52 = vld [vmem:[%s1 + $0x78] sm:$0xf]
  %v53 = vld [vmem:[%s1 + $0x7c] sm:$0xf]
  %v54 = vld [vmem:[%s1 + $0x80] sm:$0xf]
  %v55 = vld [vmem:[%s1 + $0x84] sm:$0xf]
  %v56 = vld [vmem:[%s1 + $0x88] sm:$0xf]
  %v57 = vld [vmem:[%s1 + $0x8c] sm:$0xf]
  %v58 = vld [vmem:[%s1 + $0x90] sm:$0xf]
  %v59 = vld [vmem:[%s1 + $0x94] sm:$0xf]
  %v60 = vld [vmem:[%s1 + $0x98] sm:$0xf]
  %v61 = vld [vmem:[%s1 + $0x9c] sm:$0xf]
  %v62 = vld [vmem:[%s1 + $0xa0] sm:$0xf]
  %v63 = vld [vmem:[%s1 + $0xa4] sm:$0xf]
  %v64 = vld [vmem:[%s1 + $0xa8] sm:$0xf]
  %v65 = vld [vmem:[%s1 + $0xac] sm:$0xf]
  %v66 = vld [vmem:[%s1 + $0xb0] sm:$0xf]
  %v67 = vld [vmem:[%s1 + $0xb4] sm:$0xf]
  %v68 = vld [vmem:[%s1 + $0xb8] sm:$0xf]
  %v69 = vld [vmem:[%s1 + $0xbc] sm:$0xf]
  %v70 = vld [vmem:[%s1 + $0xc0] sm:$0xf]
  %v71 = vld [vmem:[%s1 + $0xc4] sm:$0xf]
  %v72 = vld [vmem:[%s2] sm:$0xff]
  %v73 = vld [vmem:[%s2 + $0x8] sm:$0xff]
  %75 = vset.pattern.permute.xlu0 0
  %76 = vperm.xlu0 %75, %v72
  %v77 = vpop.permute.xlu0 %76
  %80 = vset.pattern.permute.xlu0 0
  %81 = vperm.xlu0 %80, %v73
  %v82 = vpop.permute.xlu0 %81
  %v88 = vunpack.c.l.b16 %v18
  %v89 = vunpack.c.h.b16 %v18
  %v90 = vunpack.c.l.b16 %v19
  %v91 = vunpack.c.h.b16 %v19
  %v92 = vunpack.c.l.b16 %v20
  %v93 = vunpack.c.h.b16 %v20
  %v94 = vunpack.c.l.b16 %v21
  %v95 = vunpack.c.h.b16 %v21
  %v96 = vpack.c.b16 %v92, %v88
  %v97 = vpack.c.b16 %v93, %v89
  %v98 = vpack.c.b16 %v94, %v90
  %v99 = vpack.c.b16 %v95, %v91
  %v153 = vunpack.c.l.b16 %v22
  %v154 = vunpack.c.l.b16 %v23
  %v155 = vunpack.c.l.b16 %v24
  %v156 = vunpack.c.l.b16 %v25
  %v157 = vunpack.c.l.b16 %v26
  %v158 = vunpack.c.l.b16 %v27
  %v159 = vunpack.c.l.b16 %v28
  %v160 = vunpack.c.l.b16 %v29
  %v161 = vunpack.c.l.b16 %v30
  %v162 = vunpack.c.l.b16 %v31
  %v163 = vunpack.c.l.b16 %v32
  %v164 = vunpack.c.l.b16 %v33
  %v165 = vunpack.c.l.b16 %v34
  %v166 = vunpack.c.l.b16 %v35
  %v167 = vunpack.c.l.b16 %v36
  %v168 = vunpack.c.l.b16 %v37
  %v169 = vunpack.c.l.b16 %v38
  %v170 = vunpack.c.l.b16 %v39
  %v171 = vunpack.c.l.b16 %v40
  %v172 = vunpack.c.l.b16 %v41
  %v173 = vunpack.c.l.b16 %v42
  %v174 = vunpack.c.l.b16 %v43
  %v175 = vunpack.c.l.b16 %v44
  %v176 = vunpack.c.l.b16 %v45
  %v177 = vunpack.c.l.b16 %v46
  %v178 = vunpack.c.l.b16 %v47
  %v179 = vunpack.c.l.b16 %v48
  %v180 = vunpack.c.l.b16 %v49
  %v181 = vunpack.c.l.b16 %v50
  %v182 = vunpack.c.l.b16 %v51
  %v183 = vunpack.c.l.b16 %v52
  %v184 = vunpack.c.l.b16 %v53
  %v185 = vunpack.c.l.b16 %v54
  %v186 = vunpack.c.l.b16 %v55
  %v187 = vunpack.c.l.b16 %v56
  %v188 = vunpack.c.l.b16 %v57
  %v189 = vunpack.c.l.b16 %v58
  %v190 = vunpack.c.l.b16 %v59
  %v191 = vunpack.c.l.b16 %v60
  %v192 = vunpack.c.l.b16 %v61
  %v193 = vunpack.c.l.b16 %v62
  %v194 = vunpack.c.l.b16 %v63
  %v195 = vunpack.c.l.b16 %v64
  %v196 = vunpack.c.l.b16 %v65
  %v197 = vunpack.c.l.b16 %v66
  %v198 = vunpack.c.l.b16 %v67
  %v199 = vunpack.c.l.b16 %v68
  %v200 = vunpack.c.l.b16 %v69
  %v201 = vunpack.c.l.b16 %v70
  %v202 = vunpack.c.l.b16 %v71
  %v203 = vpack.c.b16 %v154, %v153
  %v204 = vpack.c.b16 %v156, %v155
  %v205 = vpack.c.b16 %v158, %v157
  %v206 = vpack.c.b16 %v160, %v159
  %v207 = vpack.c.b16 %v162, %v161
  %v208 = vpack.c.b16 %v164, %v163
  %v209 = vpack.c.b16 %v166, %v165
  %v210 = vpack.c.b16 %v168, %v167
  %v211 = vpack.c.b16 %v170, %v169
  %v212 = vpack.c.b16 %v172, %v171
  %v213 = vpack.c.b16 %v174, %v173
  %v214 = vpack.c.b16 %v176, %v175
  %v215 = vpack.c.b16 %v178, %v177
  %v216 = vpack.c.b16 %v180, %v179
  %v217 = vpack.c.b16 %v182, %v181
  %v218 = vpack.c.b16 %v184, %v183
  %v219 = vpack.c.b16 %v186, %v185
  %v220 = vpack.c.b16 %v188, %v187
  %v221 = vpack.c.b16 %v190, %v189
  %v222 = vpack.c.b16 %v192, %v191
  %v223 = vpack.c.b16 %v194, %v193
  %v224 = vpack.c.b16 %v196, %v195
  %v225 = vpack.c.b16 %v198, %v197
  %v226 = vpack.c.b16 %v200, %v199
  %v227 = vpack.c.b16 %v202, %v201
  %vm253 = vcmask 130048
  %v255 = vsel %vm253, %v99, 0
  %257 = vmatprep.subr.bf16.mxu0 0
  %258 = vmatpush1.bf16.msra.mxu0 %v203
  %259 = vmatprep.subr.bf16.mxu0 0
  %260 = vmatpush1.bf16.msra.mxu0 %v204
  %261 = vmatprep.subr.bf16.mxu0 0
  %262 = vmatpush1.bf16.msra.mxu0 %v205
  %263 = vmatprep.subr.bf16.mxu0 0
  %264 = vmatpush1.bf16.msra.mxu0 %v206
  %265 = vmatprep.subr.bf16.mxu0 0
  %266 = vmatpush1.bf16.msra.mxu0 %v207
  %267 = vmatprep.subr.bf16.mxu0 0
  %268 = vmatpush1.bf16.msra.mxu0 %v208
  %269 = vmatprep.subr.bf16.mxu0 0
  %270 = vmatpush1.bf16.msra.mxu0 %v209
  %271 = vmatprep.subr.bf16.mxu0 0
  %272 = vmatpush1.bf16.msra.mxu0 %v210
  %273 = vmatprep.subr.bf16.mxu0 0
  %274 = vmatpush1.bf16.msra.mxu0 %v211
  %275 = vmatprep.subr.bf16.mxu0 0
  %276 = vmatpush1.bf16.msra.mxu0 %v212
  %277 = vmatprep.subr.bf16.mxu0 0
  %278 = vmatpush1.bf16.msra.mxu0 %v213
  %279 = vmatprep.subr.bf16.mxu0 0
  %280 = vmatpush1.bf16.msra.mxu0 %v214
  %281 = vmatprep.subr.bf16.mxu0 0
  %282 = vmatpush1.bf16.msra.mxu0 %v215
  %283 = vmatprep.subr.bf16.mxu0 0
  %284 = vmatpush1.bf16.msra.mxu0 %v216
  %285 = vmatprep.subr.bf16.mxu0 0
  %286 = vmatpush1.bf16.msra.mxu0 %v217
  %287 = vmatprep.subr.bf16.mxu0 0
  %288 = vmatpush1.bf16.msra.mxu0 %v218
  %289 = vmatprep.mubr.bf16.mxu0 %v97
  %290 = vmatmul.mubr.bf16.gmra.mrb[0].mxu0 %v96
  %v291 = vpop.f32.mrb[0].mxu0
  %v292 = vadd.f32 %v77, %v291
  %v293 = vpop.f32.mrb[0].mxu0
  %v294 = vpop.f32.mrb[0].mxu0
  %v295 = vadd.f32 %v82, %v294
  %v296 = vpop.f32.mrb[0].mxu0
  %297 = vdwg.mxu0
  %298 = vmatprep.subr.bf16.mxu0 0
  %299 = vmatpush1.bf16.msra.mxu0 %v219
  %300 = vmatprep.subr.bf16.mxu0 0
  %301 = vmatpush1.bf16.msra.mxu0 %v220
  %302 = vmatprep.subr.bf16.mxu0 0
  %303 = vmatpush1.bf16.msra.mxu0 %v221
  %304 = vmatprep.subr.bf16.mxu0 0
  %305 = vmatpush1.bf16.msra.mxu0 %v222
  %306 = vmatprep.subr.bf16.mxu0 0
  %307 = vmatpush1.bf16.msra.mxu0 %v223
  %308 = vmatprep.subr.bf16.mxu0 0
  %309 = vmatpush1.bf16.msra.mxu0 %v224
  %310 = vmatprep.subr.bf16.mxu0 0
  %311 = vmatpush1.bf16.msra.mxu0 %v225
  %312 = vmatprep.subr.bf16.mxu0 0
  %313 = vmatpush1.bf16.msra.mxu0 %v226
  %314 = vmatprep.subr.bf16.mxu0 0
  %315 = vmatpush1.bf16.msra.mxu0 %v227
  %316 = vmatprep.subr.bf16.mxu0 0
  %317 = vmatpush1.bf16.msra.mxu0 0
  %318 = vmatprep.subr.bf16.mxu0 0
  %319 = vmatpush1.bf16.msra.mxu0 0
  %320 = vmatprep.subr.bf16.mxu0 0
  %321 = vmatpush1.bf16.msra.mxu0 0
  %322 = vmatprep.subr.bf16.mxu0 0
  %323 = vmatpush1.bf16.msra.mxu0 0
  %324 = vmatprep.subr.bf16.mxu0 0
  %325 = vmatpush1.bf16.msra.mxu0 0
  %326 = vmatprep.subr.bf16.mxu0 0
  %327 = vmatpush1.bf16.msra.mxu0 0
  %328 = vmatprep.subr.bf16.mxu0 0
  %329 = vmatpush1.bf16.msra.mxu0 0
  %330 = vmatprep.mubr.bf16.mxu0 %v255
  %331 = vmatmul.mubr.bf16.gmra.mrb[0].mxu0 %v98
  %v332 = vpop.f32.mrb[0].mxu0
  %v333 = vadd.f32 %v292, %v332
  %v334 = vpop.f32.mrb[0].mxu0
  %v335 = vpop.f32.mrb[0].mxu0
  %v336 = vadd.f32 %v295, %v335
  %v337 = vpop.f32.mrb[0].mxu0
  %338 = vdwg.mxu0
  %v339 = vld [vmem:[%s3] sm:$0xf]
  %v340 = vld [vmem:[%s3 + $0x4] sm:$0xf]
  %v341 = vunpack.c.l.bf16 %v339
  %v342 = vunpack.c.l.bf16 %v340
  %v343 = vadd.f32 %v333, %v341
  %v344 = vadd.f32 %v336, %v342
  %v345 = vmax.f32 %v343, 0.0
  %v346 = vmax.f32 %v344, 0.0
  %v347 = vpack.c.bf16 %v346, %v345
  %v349 = vunpack.c.l.b16 %v347
  %v350 = vunpack.c.h.b16 %v347
  %v351 = vpack.c.b16 %v349, %v349
  %v352 = vpack.c.b16 %v350, %v350
  %355 = vst [vmem:[%s4] sm:$0xf] %v351
  %356 = vst [vmem:[%s4 + $0x4] sm:$0xf] %v352
  // Predicated region
  $region18: #{_lambda_.24} parent=0 // pred_check
    _
  $region19: #{_lambda_.24} parent=0 // pred_check_branch
    %358 = sbr.rel (0) target = $region21
  $region20: #{_lambda_.24} parent=0 // pred_region
    _
  $region21: #{_lambda_.24} parent=0 // pred_fallthru
    _
  // Predicated region
  $region22: #{_lambda_.24} parent=0 // pred_check
    _
  $region23: #{_lambda_.24} parent=0 // pred_check_branch
    %360 = sbr.rel (0) target = $region25
  $region24: #{_lambda_.24} parent=0 // pred_region
    _
  $region25: #{_lambda_.24} parent=0 // pred_fallthru
    _

// kernel: _lambda_.25
$region0: #{_lambda_.25}
  #allocation0 [shape = 'u32[]', space=smem, size = 0x4, offset = 0x4, fixed_abs, tag = 'smem constant byte address 0x4 - core index']
  #allocation1 [shape = 'u32[144,128]{1,0:T(1,128)}', space=vmem, size = 0x12000, scoped, tag = 'internal scratch']
  %s0 = inlined_call_operand.vmem [shape: bf16[16,400], index: 0, kind: input, shape index: {}]
  %s1 = inlined_call_operand.vmem [shape: bf16[400,128], index: 1, kind: input, shape index: {}]
  %s2 = inlined_call_operand.vmem [shape: f32[16,1], index: 2, kind: input, shape index: {}]
  %s3 = inlined_call_operand.vmem [shape: bf16[16,128], index: 3, kind: output, shape index: {}]
  %s4 = sld [smem:[#allocation0]]
  $region22: #{_lambda_.25} parent=0
    _
  %s6 = ssub.s32 1, %s4
  %s7 = scalar_select 0, %s6, %s4
  // Predicated region
  $region2: #{_lambda_.25} parent=0 // pred_check
    _
  $region3: #{_lambda_.25} parent=0 // pred_check_branch
    %9 = sbr.rel (0) target = $region5
  $region4: #{_lambda_.25} parent=0 // pred_region
    _
  $region5: #{_lambda_.25} parent=0 // pred_fallthru
    _
  // Predicated region
  $region6: #{_lambda_.25} parent=0 // pred_check
    _
  $region7: #{_lambda_.25} parent=0 // pred_check_branch
    %11 = sbr.rel (0) target = $region9
  $region8: #{_lambda_.25} parent=0 // pred_region
    _
  $region9: #{_lambda_.25} parent=0 // pred_fallthru
    _
  // Predicated region
  $region10: #{_lambda_.25} parent=0 // pred_check
    _
  $region11: #{_lambda_.25} parent=0 // pred_check_branch
    %13 = sbr.rel (0) target = $region13
  $region12: #{_lambda_.25} parent=0 // pred_region
    _
  $region13: #{_lambda_.25} parent=0 // pred_fallthru
    _
  %v15 = vld [vmem:[%s0] sm:$0xff]
  %v16 = vld [vmem:[%s0 + $0x8] sm:$0xff]
  %v17 = vld [vmem:[%s0 + $0x10] sm:$0xff]
  %v18 = vld [vmem:[%s0 + $0x18] sm:$0xff]
  %v19 = vld [vmem:[%s1] sm:$0xf]
  %v20 = vld [vmem:[%s1 + $0x4] sm:$0xf]
  %v21 = vld [vmem:[%s1 + $0x8] sm:$0xf]
  %v22 = vld [vmem:[%s1 + $0xc] sm:$0xf]
  %v23 = vld [vmem:[%s1 + $0x10] sm:$0xf]
  %v24 = vld [vmem:[%s1 + $0x14] sm:$0xf]
  %v25 = vld [vmem:[%s1 + $0x18] sm:$0xf]
  %v26 = vld [vmem:[%s1 + $0x1c] sm:$0xf]
  %v27 = vld [vmem:[%s1 + $0x20] sm:$0xf]
  %v28 = vld [vmem:[%s1 + $0x24] sm:$0xf]
  %v29 = vld [vmem:[%s1 + $0x28] sm:$0xf]
  %v30 = vld [vmem:[%s1 + $0x2c] sm:$0xf]
  %v31 = vld [vmem:[%s1 + $0x30] sm:$0xf]
  %v32 = vld [vmem:[%s1 + $0x34] sm:$0xf]
  %v33 = vld [vmem:[%s1 + $0x38] sm:$0xf]
  %v34 = vld [vmem:[%s1 + $0x3c] sm:$0xf]
  %v35 = vld [vmem:[%s1 + $0x40] sm:$0xf]
  %v36 = vld [vmem:[%s1 + $0x44] sm:$0xf]
  %v37 = vld [vmem:[%s1 + $0x48] sm:$0xf]
  %v38 = vld [vmem:[%s1 + $0x4c] sm:$0xf]
  %v39 = vld [vmem:[%s1 + $0x50] sm:$0xf]
  %v40 = vld [vmem:[%s1 + $0x54] sm:$0xf]
  %v41 = vld [vmem:[%s1 + $0x58] sm:$0xf]
  %v42 = vld [vmem:[%s1 + $0x5c] sm:$0xf]
  %v43 = vld [vmem:[%s1 + $0x60] sm:$0xf]
  %v44 = vld [vmem:[%s1 + $0x64] sm:$0xf]
  %v45 = vld [vmem:[%s1 + $0x68] sm:$0xf]
  %v46 = vld [vmem:[%s1 + $0x6c] sm:$0xf]
  %v47 = vld [vmem:[%s1 + $0x70] sm:$0xf]
  %v48 = vld [vmem:[%s1 + $0x74] sm:$0xf]
  %v49 = vld [vmem:[%s1 + $0x78] sm:$0xf]
  %v50 = vld [vmem:[%s1 + $0x7c] sm:$0xf]
  %v51 = vld [vmem:[%s1 + $0x80] sm:$0xf]
  %v52 = vld [vmem:[%s1 + $0x84] sm:$0xf]
  %v53 = vld [vmem:[%s1 + $0x88] sm:$0xf]
  %v54 = vld [vmem:[%s1 + $0x8c] sm:$0xf]
  %v55 = vld [vmem:[%s1 + $0x90] sm:$0xf]
  %v56 = vld [vmem:[%s1 + $0x94] sm:$0xf]
  %v57 = vld [vmem:[%s1 + $0x98] sm:$0xf]
  %v58 = vld [vmem:[%s1 + $0x9c] sm:$0xf]
  %v59 = vld [vmem:[%s1 + $0xa0] sm:$0xf]
  %v60 = vld [vmem:[%s1 + $0xa4] sm:$0xf]
  %v61 = vld [vmem:[%s1 + $0xa8] sm:$0xf]
  %v62 = vld [vmem:[%s1 + $0xac] sm:$0xf]
  %v63 = vld [vmem:[%s1 + $0xb0] sm:$0xf]
  %v64 = vld [vmem:[%s1 + $0xb4] sm:$0xf]
  %v65 = vld [vmem:[%s1 + $0xb8] sm:$0xf]
  %v66 = vld [vmem:[%s1 + $0xbc] sm:$0xf]
  %v67 = vld [vmem:[%s1 + $0xc0] sm:$0xf]
  %v68 = vld [vmem:[%s1 + $0xc4] sm:$0xf]
  %v69 = vld [vmem:[%s2] sm:$0xff]
  %v70 = vld [vmem:[%s2 + $0x8] sm:$0xff]
  %72 = vset.pattern.permute.xlu0 0
  %73 = vperm.xlu0 %72, %v69
  %v74 = vpop.permute.xlu0 %73
  %77 = vset.pattern.permute.xlu0 0
  %78 = vperm.xlu0 %77, %v70
  %v79 = vpop.permute.xlu0 %78
  %v85 = vunpack.c.l.b16 %v15
  %v86 = vunpack.c.h.b16 %v15
  %v87 = vunpack.c.l.b16 %v16
  %v88 = vunpack.c.h.b16 %v16
  %v89 = vunpack.c.l.b16 %v17
  %v90 = vunpack.c.h.b16 %v17
  %v91 = vunpack.c.l.b16 %v18
  %v92 = vunpack.c.h.b16 %v18
  %v93 = vpack.c.b16 %v89, %v85
  %v94 = vpack.c.b16 %v90, %v86
  %v95 = vpack.c.b16 %v91, %v87
  %v96 = vpack.c.b16 %v92, %v88
  %v150 = vunpack.c.l.b16 %v19
  %v151 = vunpack.c.l.b16 %v20
  %v152 = vunpack.c.l.b16 %v21
  %v153 = vunpack.c.l.b16 %v22
  %v154 = vunpack.c.l.b16 %v23
  %v155 = vunpack.c.l.b16 %v24
  %v156 = vunpack.c.l.b16 %v25
  %v157 = vunpack.c.l.b16 %v26
  %v158 = vunpack.c.l.b16 %v27
  %v159 = vunpack.c.l.b16 %v28
  %v160 = vunpack.c.l.b16 %v29
  %v161 = vunpack.c.l.b16 %v30
  %v162 = vunpack.c.l.b16 %v31
  %v163 = vunpack.c.l.b16 %v32
  %v164 = vunpack.c.l.b16 %v33
  %v165 = vunpack.c.l.b16 %v34
  %v166 = vunpack.c.l.b16 %v35
  %v167 = vunpack.c.l.b16 %v36
  %v168 = vunpack.c.l.b16 %v37
  %v169 = vunpack.c.l.b16 %v38
  %v170 = vunpack.c.l.b16 %v39
  %v171 = vunpack.c.l.b16 %v40
  %v172 = vunpack.c.l.b16 %v41
  %v173 = vunpack.c.l.b16 %v42
  %v174 = vunpack.c.l.b16 %v43
  %v175 = vunpack.c.l.b16 %v44
  %v176 = vunpack.c.l.b16 %v45
  %v177 = vunpack.c.l.b16 %v46
  %v178 = vunpack.c.l.b16 %v47
  %v179 = vunpack.c.l.b16 %v48
  %v180 = vunpack.c.l.b16 %v49
  %v181 = vunpack.c.l.b16 %v50
  %v182 = vunpack.c.l.b16 %v51
  %v183 = vunpack.c.l.b16 %v52
  %v184 = vunpack.c.l.b16 %v53
  %v185 = vunpack.c.l.b16 %v54
  %v186 = vunpack.c.l.b16 %v55
  %v187 = vunpack.c.l.b16 %v56
  %v188 = vunpack.c.l.b16 %v57
  %v189 = vunpack.c.l.b16 %v58
  %v190 = vunpack.c.l.b16 %v59
  %v191 = vunpack.c.l.b16 %v60
  %v192 = vunpack.c.l.b16 %v61
  %v193 = vunpack.c.l.b16 %v62
  %v194 = vunpack.c.l.b16 %v63
  %v195 = vunpack.c.l.b16 %v64
  %v196 = vunpack.c.l.b16 %v65
  %v197 = vunpack.c.l.b16 %v66
  %v198 = vunpack.c.l.b16 %v67
  %v199 = vunpack.c.l.b16 %v68
  %v200 = vpack.c.b16 %v151, %v150
  %v201 = vpack.c.b16 %v153, %v152
  %v202 = vpack.c.b16 %v155, %v154
  %v203 = vpack.c.b16 %v157, %v156
  %v204 = vpack.c.b16 %v159, %v158
  %v205 = vpack.c.b16 %v161, %v160
  %v206 = vpack.c.b16 %v163, %v162
  %v207 = vpack.c.b16 %v165, %v164
  %v208 = vpack.c.b16 %v167, %v166
  %v209 = vpack.c.b16 %v169, %v168
  %v210 = vpack.c.b16 %v171, %v170
  %v211 = vpack.c.b16 %v173, %v172
  %v212 = vpack.c.b16 %v175, %v174
  %v213 = vpack.c.b16 %v177, %v176
  %v214 = vpack.c.b16 %v179, %v178
  %v215 = vpack.c.b16 %v181, %v180
  %v216 = vpack.c.b16 %v183, %v182
  %v217 = vpack.c.b16 %v185, %v184
  %v218 = vpack.c.b16 %v187, %v186
  %v219 = vpack.c.b16 %v189, %v188
  %v220 = vpack.c.b16 %v191, %v190
  %v221 = vpack.c.b16 %v193, %v192
  %v222 = vpack.c.b16 %v195, %v194
  %v223 = vpack.c.b16 %v197, %v196
  %v224 = vpack.c.b16 %v199, %v198
  %vm250 = vcmask 130048
  %v252 = vsel %vm250, %v96, 0
  %254 = vmatprep.subr.bf16.mxu0 0
  %255 = vmatpush1.bf16.msra.mxu0 %v200
  %256 = vmatprep.subr.bf16.mxu0 0
  %257 = vmatpush1.bf16.msra.mxu0 %v201
  %258 = vmatprep.subr.bf16.mxu0 0
  %259 = vmatpush1.bf16.msra.mxu0 %v202
  %260 = vmatprep.subr.bf16.mxu0 0
  %261 = vmatpush1.bf16.msra.mxu0 %v203
  %262 = vmatprep.subr.bf16.mxu0 0
  %263 = vmatpush1.bf16.msra.mxu0 %v204
  %264 = vmatprep.subr.bf16.mxu0 0
  %265 = vmatpush1.bf16.msra.mxu0 %v205
  %266 = vmatprep.subr.bf16.mxu0 0
  %267 = vmatpush1.bf16.msra.mxu0 %v206
  %268 = vmatprep.subr.bf16.mxu0 0
  %269 = vmatpush1.bf16.msra.mxu0 %v207
  %270 = vmatprep.subr.bf16.mxu0 0
  %271 = vmatpush1.bf16.msra.mxu0 %v208
  %272 = vmatprep.subr.bf16.mxu0 0
  %273 = vmatpush1.bf16.msra.mxu0 %v209
  %274 = vmatprep.subr.bf16.mxu0 0
  %275 = vmatpush1.bf16.msra.mxu0 %v210
  %276 = vmatprep.subr.bf16.mxu0 0
  %277 = vmatpush1.bf16.msra.mxu0 %v211
  %278 = vmatprep.subr.bf16.mxu0 0
  %279 = vmatpush1.bf16.msra.mxu0 %v212
  %280 = vmatprep.subr.bf16.mxu0 0
  %281 = vmatpush1.bf16.msra.mxu0 %v213
  %282 = vmatprep.subr.bf16.mxu0 0
  %283 = vmatpush1.bf16.msra.mxu0 %v214
  %284 = vmatprep.subr.bf16.mxu0 0
  %285 = vmatpush1.bf16.msra.mxu0 %v215
  %286 = vmatprep.mubr.bf16.mxu0 %v94
  %287 = vmatmul.mubr.bf16.gmra.mrb[0].mxu0 %v93
  %v288 = vpop.f32.mrb[0].mxu0
  %v289 = vadd.f32 %v74, %v288
  %v290 = vpop.f32.mrb[0].mxu0
  %v291 = vpop.f32.mrb[0].mxu0
  %v292 = vadd.f32 %v79, %v291
  %v293 = vpop.f32.mrb[0].mxu0
  %294 = vdwg.mxu0
  %295 = vmatprep.subr.bf16.mxu0 0
  %296 = vmatpush1.bf16.msra.mxu0 %v216
  %297 = vmatprep.subr.bf16.mxu0 0
  %298 = vmatpush1.bf16.msra.mxu0 %v217
  %299 = vmatprep.subr.bf16.mxu0 0
  %300 = vmatpush1.bf16.msra.mxu0 %v218
  %301 = vmatprep.subr.bf16.mxu0 0
  %302 = vmatpush1.bf16.msra.mxu0 %v219
  %303 = vmatprep.subr.bf16.mxu0 0
  %304 = vmatpush1.bf16.msra.mxu0 %v220
  %305 = vmatprep.subr.bf16.mxu0 0
  %306 = vmatpush1.bf16.msra.mxu0 %v221
  %307 = vmatprep.subr.bf16.mxu0 0
  %308 = vmatpush1.bf16.msra.mxu0 %v222
  %309 = vmatprep.subr.bf16.mxu0 0
  %310 = vmatpush1.bf16.msra.mxu0 %v223
  %311 = vmatprep.subr.bf16.mxu0 0
  %312 = vmatpush1.bf16.msra.mxu0 %v224
  %313 = vmatprep.subr.bf16.mxu0 0
  %314 = vmatpush1.bf16.msra.mxu0 0
  %315 = vmatprep.subr.bf16.mxu0 0
  %316 = vmatpush1.bf16.msra.mxu0 0
  %317 = vmatprep.subr.bf16.mxu0 0
  %318 = vmatpush1.bf16.msra.mxu0 0
  %319 = vmatprep.subr.bf16.mxu0 0
  %320 = vmatpush1.bf16.msra.mxu0 0
  %321 = vmatprep.subr.bf16.mxu0 0
  %322 = vmatpush1.bf16.msra.mxu0 0
  %323 = vmatprep.subr.bf16.mxu0 0
  %324 = vmatpush1.bf16.msra.mxu0 0
  %325 = vmatprep.subr.bf16.mxu0 0
  %326 = vmatpush1.bf16.msra.mxu0 0
  %327 = vmatprep.mubr.bf16.mxu0 %v252
  %328 = vmatmul.mubr.bf16.gmra.mrb[0].mxu0 %v95
  %v329 = vpop.f32.mrb[0].mxu0
  %v330 = vadd.f32 %v289, %v329
  %v331 = vpop.f32.mrb[0].mxu0
  %v332 = vpop.f32.mrb[0].mxu0
  %v333 = vadd.f32 %v292, %v332
  %v334 = vpop.f32.mrb[0].mxu0
  %335 = vdwg.mxu0
  %v336 = vmax.f32 %v330, 0.0
  %v337 = vmax.f32 %v333, 0.0
  %v338 = vpack.c.bf16 %v337, %v336
  %v340 = vunpack.c.l.b16 %v338
  %v341 = vunpack.c.h.b16 %v338
  %v342 = vpack.c.b16 %v340, %v340
  %v343 = vpack.c.b16 %v341, %v341
  %346 = vst [vmem:[%s3] sm:$0xf] %v342
  %347 = vst [vmem:[%s3 + $0x4] sm:$0xf] %v343
  // Predicated region
  $region14: #{_lambda_.25} parent=0 // pred_check
    _
  $region15: #{_lambda_.25} parent=0 // pred_check_branch
    %349 = sbr.rel (0) target = $region17
  $region16: #{_lambda_.25} parent=0 // pred_region
    _
  $region17: #{_lambda_.25} parent=0 // pred_fallthru
    _
  // Predicated region
  $region18: #{_lambda_.25} parent=0 // pred_check
    _
  $region19: #{_lambda_.25} parent=0 // pred_check_branch
    %351 = sbr.rel (0) target = $region21
  $region20: #{_lambda_.25} parent=0 // pred_region
    _
  $region21: #{_lambda_.25} parent=0 // pred_fallthru
    _

// kernel: _lambda_.27
$region0: #{_lambda_.27}
  #allocation0 [shape = 'u32[]', space=smem, size = 0x4, offset = 0x4, fixed_abs, tag = 'smem constant byte address 0x4 - core index']
  #allocation1 [shape = 'u32[144,128]{1,0:T(1,128)}', space=vmem, size = 0x12000, scoped, tag = 'internal scratch']
  %s0 = inlined_call_operand.vmem [shape: bf16[32,400], index: 0, kind: input, shape index: {}]
  %s1 = inlined_call_operand.vmem [shape: bf16[400,128], index: 1, kind: input, shape index: {}]
  %s2 = inlined_call_operand.vmem [shape: f32[32,1], index: 2, kind: input, shape index: {}]
  %s3 = inlined_call_operand.vmem [shape: bf16[32,128], index: 3, kind: output, shape index: {}]
  %s4 = sld [smem:[#allocation0]]
  $region22: #{_lambda_.27} parent=0
    _
  %s6 = ssub.s32 1, %s4
  %s7 = scalar_select 0, %s6, %s4
  // Predicated region
  $region2: #{_lambda_.27} parent=0 // pred_check
    _
  $region3: #{_lambda_.27} parent=0 // pred_check_branch
    %9 = sbr.rel (0) target = $region5
  $region4: #{_lambda_.27} parent=0 // pred_region
    _
  $region5: #{_lambda_.27} parent=0 // pred_fallthru
    _
  // Predicated region
  $region6: #{_lambda_.27} parent=0 // pred_check
    _
  $region7: #{_lambda_.27} parent=0 // pred_check_branch
    %11 = sbr.rel (0) target = $region9
  $region8: #{_lambda_.27} parent=0 // pred_region
    _
  $region9: #{_lambda_.27} parent=0 // pred_fallthru
    _
  // Predicated region
  $region10: #{_lambda_.27} parent=0 // pred_check
    _
  $region11: #{_lambda_.27} parent=0 // pred_check_branch
    %13 = sbr.rel (0) target = $region13
  $region12: #{_lambda_.27} parent=0 // pred_region
    _
  $region13: #{_lambda_.27} parent=0 // pred_fallthru
    _
  %v15 = vld [vmem:[%s0] sm:$0xff]
  %v16 = vld [vmem:[%s0 + $0x8] sm:$0xff]
  %v17 = vld [vmem:[%s0 + $0x10] sm:$0xff]
  %v18 = vld [vmem:[%s0 + $0x18] sm:$0xff]
  %v19 = vld [vmem:[%s0 + $0x20] sm:$0xff]
  %v20 = vld [vmem:[%s0 + $0x28] sm:$0xff]
  %v21 = vld [vmem:[%s0 + $0x30] sm:$0xff]
  %v22 = vld [vmem:[%s0 + $0x38] sm:$0xff]
  %v23 = vld [vmem:[%s1] sm:$0xf]
  %v24 = vld [vmem:[%s1 + $0x4] sm:$0xf]
  %v25 = vld [vmem:[%s1 + $0x8] sm:$0xf]
  %v26 = vld [vmem:[%s1 + $0xc] sm:$0xf]
  %v27 = vld [vmem:[%s1 + $0x10] sm:$0xf]
  %v28 = vld [vmem:[%s1 + $0x14] sm:$0xf]
  %v29 = vld [vmem:[%s1 + $0x18] sm:$0xf]
  %v30 = vld [vmem:[%s1 + $0x1c] sm:$0xf]
  %v31 = vld [vmem:[%s1 + $0x20] sm:$0xf]
  %v32 = vld [vmem:[%s1 + $0x24] sm:$0xf]
  %v33 = vld [vmem:[%s1 + $0x28] sm:$0xf]
  %v34 = vld [vmem:[%s1 + $0x2c] sm:$0xf]
  %v35 = vld [vmem:[%s1 + $0x30] sm:$0xf]
  %v36 = vld [vmem:[%s1 + $0x34] sm:$0xf]
  %v37 = vld [vmem:[%s1 + $0x38] sm:$0xf]
  %v38 = vld [vmem:[%s1 + $0x3c] sm:$0xf]
  %v39 = vld [vmem:[%s1 + $0x40] sm:$0xf]
  %v40 = vld [vmem:[%s1 + $0x44] sm:$0xf]
  %v41 = vld [vmem:[%s1 + $0x48] sm:$0xf]
  %v42 = vld [vmem:[%s1 + $0x4c] sm:$0xf]
  %v43 = vld [vmem:[%s1 + $0x50] sm:$0xf]
  %v44 = vld [vmem:[%s1 + $0x54] sm:$0xf]
  %v45 = vld [vmem:[%s1 + $0x58] sm:$0xf]
  %v46 = vld [vmem:[%s1 + $0x5c] sm:$0xf]
  %v47 = vld [vmem:[%s1 + $0x60] sm:$0xf]
  %v48 = vld [vmem:[%s1 + $0x64] sm:$0xf]
  %v49 = vld [vmem:[%s1 + $0x68] sm:$0xf]
  %v50 = vld [vmem:[%s1 + $0x6c] sm:$0xf]
  %v51 = vld [vmem:[%s1 + $0x70] sm:$0xf]
  %v52 = vld [vmem:[%s1 + $0x74] sm:$0xf]
  %v53 = vld [vmem:[%s1 + $0x78] sm:$0xf]
  %v54 = vld [vmem:[%s1 + $0x7c] sm:$0xf]
  %v55 = vld [vmem:[%s1 + $0x80] sm:$0xf]
  %v56 = vld [vmem:[%s1 + $0x84] sm:$0xf]
  %v57 = vld [vmem:[%s1 + $0x88] sm:$0xf]
  %v58 = vld [vmem:[%s1 + $0x8c] sm:$0xf]
  %v59 = vld [vmem:[%s1 + $0x90] sm:$0xf]
  %v60 = vld [vmem:[%s1 + $0x94] sm:$0xf]
  %v61 = vld [vmem:[%s1 + $0x98] sm:$0xf]
  %v62 = vld [vmem:[%s1 + $0x9c] sm:$0xf]
  %v63 = vld [vmem:[%s1 + $0xa0] sm:$0xf]
  %v64 = vld [vmem:[%s1 + $0xa4] sm:$0xf]
  %v65 = vld [vmem:[%s1 + $0xa8] sm:$0xf]
  %v66 = vld [vmem:[%s1 + $0xac] sm:$0xf]
  %v67 = vld [vmem:[%s1 + $0xb0] sm:$0xf]
  %v68 = vld [vmem:[%s1 + $0xb4] sm:$0xf]
  %v69 = vld [vmem:[%s1 + $0xb8] sm:$0xf]
  %v70 = vld [vmem:[%s1 + $0xbc] sm:$0xf]
  %v71 = vld [vmem:[%s1 + $0xc0] sm:$0xf]
  %v72 = vld [vmem:[%s1 + $0xc4] sm:$0xf]
  %v73 = vld [vmem:[%s2] sm:$0xff]
  %v74 = vld [vmem:[%s2 + $0x8] sm:$0xff]
  %v75 = vld [vmem:[%s2 + $0x10] sm:$0xff]
  %v76 = vld [vmem:[%s2 + $0x18] sm:$0xff]
  %78 = vset.pattern.permute.xlu0 0
  %79 = vperm.xlu0 %78, %v73
  %v80 = vpop.permute.xlu0 %79
  %83 = vset.pattern.permute.xlu0 0
  %84 = vperm.xlu0 %83, %v74
  %v85 = vpop.permute.xlu0 %84
  %88 = vset.pattern.permute.xlu0 0
  %89 = vperm.xlu0 %88, %v75
  %v90 = vpop.permute.xlu0 %89
  %93 = vset.pattern.permute.xlu0 0
  %94 = vperm.xlu0 %93, %v76
  %v95 = vpop.permute.xlu0 %94
  %v105 = vunpack.c.l.b16 %v15
  %v106 = vunpack.c.h.b16 %v15
  %v107 = vunpack.c.l.b16 %v16
  %v108 = vunpack.c.h.b16 %v16
  %v109 = vunpack.c.l.b16 %v17
  %v110 = vunpack.c.h.b16 %v17
  %v111 = vunpack.c.l.b16 %v18
  %v112 = vunpack.c.h.b16 %v18
  %v113 = vunpack.c.l.b16 %v19
  %v114 = vunpack.c.h.b16 %v19
  %v115 = vunpack.c.l.b16 %v20
  %v116 = vunpack.c.h.b16 %v20
  %v117 = vunpack.c.l.b16 %v21
  %v118 = vunpack.c.h.b16 %v21
  %v119 = vunpack.c.l.b16 %v22
  %v120 = vunpack.c.h.b16 %v22
  %v121 = vpack.c.b16 %v109, %v105
  %v122 = vpack.c.b16 %v110, %v106
  %v123 = vpack.c.b16 %v111, %v107
  %v124 = vpack.c.b16 %v112, %v108
  %v125 = vpack.c.b16 %v117, %v113
  %v126 = vpack.c.b16 %v118, %v114
  %v127 = vpack.c.b16 %v119, %v115
  %v128 = vpack.c.b16 %v120, %v116
  %v185 = vunpack.c.l.b16 %v23
  %v186 = vunpack.c.l.b16 %v24
  %v187 = vunpack.c.l.b16 %v25
  %v188 = vunpack.c.l.b16 %v26
  %v189 = vunpack.c.l.b16 %v27
  %v190 = vunpack.c.l.b16 %v28
  %v191 = vunpack.c.l.b16 %v29
  %v192 = vunpack.c.l.b16 %v30
  %v193 = vunpack.c.l.b16 %v31
  %v194 = vunpack.c.l.b16 %v32
  %v195 = vunpack.c.l.b16 %v33
  %v196 = vunpack.c.l.b16 %v34
  %v197 = vunpack.c.l.b16 %v35
  %v198 = vunpack.c.l.b16 %v36
  %v199 = vunpack.c.l.b16 %v37
  %v200 = vunpack.c.l.b16 %v38
  %v201 = vunpack.c.l.b16 %v39
  %v202 = vunpack.c.l.b16 %v40
  %v203 = vunpack.c.l.b16 %v41
  %v204 = vunpack.c.l.b16 %v42
  %v205 = vunpack.c.l.b16 %v43
  %v206 = vunpack.c.l.b16 %v44
  %v207 = vunpack.c.l.b16 %v45
  %v208 = vunpack.c.l.b16 %v46
  %v209 = vunpack.c.l.b16 %v47
  %v210 = vunpack.c.l.b16 %v48
  %v211 = vunpack.c.l.b16 %v49
  %v212 = vunpack.c.l.b16 %v50
  %v213 = vunpack.c.l.b16 %v51
  %v214 = vunpack.c.l.b16 %v52
  %v215 = vunpack.c.l.b16 %v53
  %v216 = vunpack.c.l.b16 %v54
  %v217 = vunpack.c.l.b16 %v55
  %v218 = vunpack.c.l.b16 %v56
  %v219 = vunpack.c.l.b16 %v57
  %v220 = vunpack.c.l.b16 %v58
  %v221 = vunpack.c.l.b16 %v59
  %v222 = vunpack.c.l.b16 %v60
  %v223 = vunpack.c.l.b16 %v61
  %v224 = vunpack.c.l.b16 %v62
  %v225 = vunpack.c.l.b16 %v63
  %v226 = vunpack.c.l.b16 %v64
  %v227 = vunpack.c.l.b16 %v65
  %v228 = vunpack.c.l.b16 %v66
  %v229 = vunpack.c.l.b16 %v67
  %v230 = vunpack.c.l.b16 %v68
  %v231 = vunpack.c.l.b16 %v69
  %v232 = vunpack.c.l.b16 %v70
  %v233 = vunpack.c.l.b16 %v71
  %v234 = vunpack.c.l.b16 %v72
  %v235 = vpack.c.b16 %v186, %v185
  %v236 = vpack.c.b16 %v188, %v187
  %v237 = vpack.c.b16 %v190, %v189
  %v238 = vpack.c.b16 %v192, %v191
  %v239 = vpack.c.b16 %v194, %v193
  %v240 = vpack.c.b16 %v196, %v195
  %v241 = vpack.c.b16 %v198, %v197
  %v242 = vpack.c.b16 %v200, %v199
  %v243 = vpack.c.b16 %v202, %v201
  %v244 = vpack.c.b16 %v204, %v203
  %v245 = vpack.c.b16 %v206, %v205
  %v246 = vpack.c.b16 %v208, %v207
  %v247 = vpack.c.b16 %v210, %v209
  %v248 = vpack.c.b16 %v212, %v211
  %v249 = vpack.c.b16 %v214, %v213
  %v250 = vpack.c.b16 %v216, %v215
  %v251 = vpack.c.b16 %v218, %v217
  %v252 = vpack.c.b16 %v220, %v219
  %v253 = vpack.c.b16 %v222, %v221
  %v254 = vpack.c.b16 %v224, %v223
  %v255 = vpack.c.b16 %v226, %v225
  %v256 = vpack.c.b16 %v228, %v227
  %v257 = vpack.c.b16 %v230, %v229
  %v258 = vpack.c.b16 %v232, %v231
  %v259 = vpack.c.b16 %v234, %v233
  %vm285 = vcmask 130048
  %v287 = vsel %vm285, %v124, 0
  %v290 = vsel %vm285, %v128, 0
  %292 = vmatprep.subr.bf16.mxu0 0
  %293 = vmatpush1.bf16.msra.mxu0 %v235
  %294 = vmatprep.subr.bf16.mxu0 0
  %295 = vmatpush1.bf16.msra.mxu0 %v236
  %296 = vmatprep.subr.bf16.mxu0 0
  %297 = vmatpush1.bf16.msra.mxu0 %v237
  %298 = vmatprep.subr.bf16.mxu0 0
  %299 = vmatpush1.bf16.msra.mxu0 %v238
  %300 = vmatprep.subr.bf16.mxu0 0
  %301 = vmatpush1.bf16.msra.mxu0 %v239
  %302 = vmatprep.subr.bf16.mxu0 0
  %303 = vmatpush1.bf16.msra.mxu0 %v240
  %304 = vmatprep.subr.bf16.mxu0 0
  %305 = vmatpush1.bf16.msra.mxu0 %v241
  %306 = vmatprep.subr.bf16.mxu0 0
  %307 = vmatpush1.bf16.msra.mxu0 %v242
  %308 = vmatprep.subr.bf16.mxu0 0
  %309 = vmatpush1.bf16.msra.mxu0 %v243
  %310 = vmatprep.subr.bf16.mxu0 0
  %311 = vmatpush1.bf16.msra.mxu0 %v244
  %312 = vmatprep.subr.bf16.mxu0 0
  %313 = vmatpush1.bf16.msra.mxu0 %v245
  %314 = vmatprep.subr.bf16.mxu0 0
  %315 = vmatpush1.bf16.msra.mxu0 %v246
  %316 = vmatprep.subr.bf16.mxu0 0
  %317 = vmatpush1.bf16.msra.mxu0 %v247
  %318 = vmatprep.subr.bf16.mxu0 0
  %319 = vmatpush1.bf16.msra.mxu0 %v248
  %320 = vmatprep.subr.bf16.mxu0 0
  %321 = vmatpush1.bf16.msra.mxu0 %v249
  %322 = vmatprep.subr.bf16.mxu0 0
  %323 = vmatpush1.bf16.msra.mxu0 %v250
  %324 = vmatprep.mubr.bf16.mxu0 %v122
  %325 = vmatmul.mubr.bf16.gmra.mrb[0].mxu0 %v121
  %v326 = vpop.f32.mrb[0].mxu0
  %v327 = vadd.f32 %v80, %v326
  %v328 = vpop.f32.mrb[0].mxu0
  %v329 = vpop.f32.mrb[0].mxu0
  %v330 = vadd.f32 %v85, %v329
  %v331 = vpop.f32.mrb[0].mxu0
  %332 = vmatprep.mubr.bf16.mxu0 %v126
  %333 = vmatmul.mubr.bf16.gmra.mrb[0].mxu0 %v125
  %v334 = vpop.f32.mrb[0].mxu0
  %v335 = vadd.f32 %v90, %v334
  %v336 = vpop.f32.mrb[0].mxu0
  %v337 = vpop.f32.mrb[0].mxu0
  %v338 = vadd.f32 %v95, %v337
  %v339 = vpop.f32.mrb[0].mxu0
  %340 = vdwg.mxu0
  %341 = vmatprep.subr.bf16.mxu0 0
  %342 = vmatpush1.bf16.msra.mxu0 %v251
  %343 = vmatprep.subr.bf16.mxu0 0
  %344 = vmatpush1.bf16.msra.mxu0 %v252
  %345 = vmatprep.subr.bf16.mxu0 0
  %346 = vmatpush1.bf16.msra.mxu0 %v253
  %347 = vmatprep.subr.bf16.mxu0 0
  %348 = vmatpush1.bf16.msra.mxu0 %v254
  %349 = vmatprep.subr.bf16.mxu0 0
  %350 = vmatpush1.bf16.msra.mxu0 %v255
  %351 = vmatprep.subr.bf16.mxu0 0
  %352 = vmatpush1.bf16.msra.mxu0 %v256
  %353 = vmatprep.subr.bf16.mxu0 0
  %354 = vmatpush1.bf16.msra.mxu0 %v257
  %355 = vmatprep.subr.bf16.mxu0 0
  %356 = vmatpush1.bf16.msra.mxu0 %v258
  %357 = vmatprep.subr.bf16.mxu0 0
  %358 = vmatpush1.bf16.msra.mxu0 %v259
  %359 = vmatprep.subr.bf16.mxu0 0
  %360 = vmatpush1.bf16.msra.mxu0 0
  %361 = vmatprep.subr.bf16.mxu0 0
  %362 = vmatpush1.bf16.msra.mxu0 0
  %363 = vmatprep.subr.bf16.mxu0 0
  %364 = vmatpush1.bf16.msra.mxu0 0
  %365 = vmatprep.subr.bf16.mxu0 0
  %366 = vmatpush1.bf16.msra.mxu0 0
  %367 = vmatprep.subr.bf16.mxu0 0
  %368 = vmatpush1.bf16.msra.mxu0 0
  %369 = vmatprep.subr.bf16.mxu0 0
  %370 = vmatpush1.bf16.msra.mxu0 0
  %371 = vmatprep.subr.bf16.mxu0 0
  %372 = vmatpush1.bf16.msra.mxu0 0
  %373 = vmatprep.mubr.bf16.mxu0 %v287
  %374 = vmatmul.mubr.bf16.gmra.mrb[0].mxu0 %v123
  %v375 = vpop.f32.mrb[0].mxu0
  %v376 = vadd.f32 %v327, %v375
  %v377 = vpop.f32.mrb[0].mxu0
  %v378 = vpop.f32.mrb[0].mxu0
  %v379 = vadd.f32 %v330, %v378
  %v380 = vpop.f32.mrb[0].mxu0
  %381 = vmatprep.mubr.bf16.mxu0 %v290
  %382 = vmatmul.mubr.bf16.gmra.mrb[0].mxu0 %v127
  %v383 = vpop.f32.mrb[0].mxu0
  %v384 = vadd.f32 %v335, %v383
  %v385 = vpop.f32.mrb[0].mxu0
  %v386 = vpop.f32.mrb[0].mxu0
  %v387 = vadd.f32 %v338, %v386
  %v388 = vpop.f32.mrb[0].mxu0
  %389 = vdwg.mxu0
  %v390 = vmax.f32 %v376, 0.0
  %v391 = vmax.f32 %v379, 0.0
  %v392 = vmax.f32 %v384, 0.0
  %v393 = vmax.f32 %v387, 0.0
  %v394 = vpack.c.bf16 %v391, %v390
  %v395 = vpack.c.bf16 %v393, %v392
  %v398 = vunpack.c.l.b16 %v394
  %v399 = vunpack.c.h.b16 %v394
  %v400 = vunpack.c.l.b16 %v395
  %v401 = vunpack.c.h.b16 %v395
  %v402 = vpack.c.b16 %v398, %v398
  %v403 = vpack.c.b16 %v399, %v399
  %v404 = vpack.c.b16 %v400, %v400
  %v405 = vpack.c.b16 %v401, %v401
  %410 = vst [vmem:[%s3] sm:$0xf] %v402
  %411 = vst [vmem:[%s3 + $0x4] sm:$0xf] %v403
  %412 = vst [vmem:[%s3 + $0x8] sm:$0xf] %v404
  %413 = vst [vmem:[%s3 + $0xc] sm:$0xf] %v405
  // Predicated region
  $region14: #{_lambda_.27} parent=0 // pred_check
    _
  $region15: #{_lambda_.27} parent=0 // pred_check_branch
    %415 = sbr.rel (0) target = $region17
  $region16: #{_lambda_.27} parent=0 // pred_region
    _
  $region17: #{_lambda_.27} parent=0 // pred_fallthru
    _
  // Predicated region
  $region18: #{_lambda_.27} parent=0 // pred_check
    _
  $region19: #{_lambda_.27} parent=0 // pred_check_branch
    %417 = sbr.rel (0) target = $region21
  $region20: #{_lambda_.27} parent=0 // pred_region
    _
  $region21: #{_lambda_.27} parent=0 // pred_fallthru
    _

// kernel: _lambda_.28
$region0: #{_lambda_.28}
  #allocation0 [shape = 'u32[]', space=smem, size = 0x4, offset = 0x4, fixed_abs, tag = 'smem constant byte address 0x4 - core index']
  #allocation1 [shape = 'u32[144,128]{1,0:T(1,128)}', space=vmem, size = 0x12000, scoped, tag = 'internal scratch']
  %s0 = inlined_call_operand.vmem [shape: bf16[32,400], index: 0, kind: input, shape index: {}]
  %s1 = inlined_call_operand.vmem [shape: bf16[400,128], index: 1, kind: input, shape index: {}]
  %s2 = inlined_call_operand.vmem [shape: f32[32,1], index: 2, kind: input, shape index: {}]
  %s3 = inlined_call_operand.vmem [shape: bf16[32,128], index: 3, kind: output, shape index: {}]
  %s4 = sld [smem:[#allocation0]]
  $region22: #{_lambda_.28} parent=0
    _
  %s6 = ssub.s32 1, %s4
  %s7 = scalar_select 0, %s6, %s4
  // Predicated region
  $region2: #{_lambda_.28} parent=0 // pred_check
    _
  $region3: #{_lambda_.28} parent=0 // pred_check_branch
    %9 = sbr.rel (0) target = $region5
  $region4: #{_lambda_.28} parent=0 // pred_region
    _
  $region5: #{_lambda_.28} parent=0 // pred_fallthru
    _
  // Predicated region
  $region6: #{_lambda_.28} parent=0 // pred_check
    _
  $region7: #{_lambda_.28} parent=0 // pred_check_branch
    %11 = sbr.rel (0) target = $region9
  $region8: #{_lambda_.28} parent=0 // pred_region
    _
  $region9: #{_lambda_.28} parent=0 // pred_fallthru
    _
  // Predicated region
  $region10: #{_lambda_.28} parent=0 // pred_check
    _
  $region11: #{_lambda_.28} parent=0 // pred_check_branch
    %13 = sbr.rel (0) target = $region13
  $region12: #{_lambda_.28} parent=0 // pred_region
    _
  $region13: #{_lambda_.28} parent=0 // pred_fallthru
    _
  %v15 = vld [vmem:[%s0] sm:$0xff]
  %v16 = vld [vmem:[%s0 + $0x8] sm:$0xff]
  %v17 = vld [vmem:[%s0 + $0x10] sm:$0xff]
  %v18 = vld [vmem:[%s0 + $0x18] sm:$0xff]
  %v19 = vld [vmem:[%s0 + $0x20] sm:$0xff]
  %v20 = vld [vmem:[%s0 + $0x28] sm:$0xff]
  %v21 = vld [vmem:[%s0 + $0x30] sm:$0xff]
  %v22 = vld [vmem:[%s0 + $0x38] sm:$0xff]
  %v23 = vld [vmem:[%s1] sm:$0xf]
  %v24 = vld [vmem:[%s1 + $0x4] sm:$0xf]
  %v25 = vld [vmem:[%s1 + $0x8] sm:$0xf]
  %v26 = vld [vmem:[%s1 + $0xc] sm:$0xf]
  %v27 = vld [vmem:[%s1 + $0x10] sm:$0xf]
  %v28 = vld [vmem:[%s1 + $0x14] sm:$0xf]
  %v29 = vld [vmem:[%s1 + $0x18] sm:$0xf]
  %v30 = vld [vmem:[%s1 + $0x1c] sm:$0xf]
  %v31 = vld [vmem:[%s1 + $0x20] sm:$0xf]
  %v32 = vld [vmem:[%s1 + $0x24] sm:$0xf]
  %v33 = vld [vmem:[%s1 + $0x28] sm:$0xf]
  %v34 = vld [vmem:[%s1 + $0x2c] sm:$0xf]
  %v35 = vld [vmem:[%s1 + $0x30] sm:$0xf]
  %v36 = vld [vmem:[%s1 + $0x34] sm:$0xf]
  %v37 = vld [vmem:[%s1 + $0x38] sm:$0xf]
  %v38 = vld [vmem:[%s1 + $0x3c] sm:$0xf]
  %v39 = vld [vmem:[%s1 + $0x40] sm:$0xf]
  %v40 = vld [vmem:[%s1 + $0x44] sm:$0xf]
  %v41 = vld [vmem:[%s1 + $0x48] sm:$0xf]
  %v42 = vld [vmem:[%s1 + $0x4c] sm:$0xf]
  %v43 = vld [vmem:[%s1 + $0x50] sm:$0xf]
  %v44 = vld [vmem:[%s1 + $0x54] sm:$0xf]
  %v45 = vld [vmem:[%s1 + $0x58] sm:$0xf]
  %v46 = vld [vmem:[%s1 + $0x5c] sm:$0xf]
  %v47 = vld [vmem:[%s1 + $0x60] sm:$0xf]
  %v48 = vld [vmem:[%s1 + $0x64] sm:$0xf]
  %v49 = vld [vmem:[%s1 + $0x68] sm:$0xf]
  %v50 = vld [vmem:[%s1 + $0x6c] sm:$0xf]
  %v51 = vld [vmem:[%s1 + $0x70] sm:$0xf]
  %v52 = vld [vmem:[%s1 + $0x74] sm:$0xf]
  %v53 = vld [vmem:[%s1 + $0x78] sm:$0xf]
  %v54 = vld [vmem:[%s1 + $0x7c] sm:$0xf]
  %v55 = vld [vmem:[%s1 + $0x80] sm:$0xf]
  %v56 = vld [vmem:[%s1 + $0x84] sm:$0xf]
  %v57 = vld [vmem:[%s1 + $0x88] sm:$0xf]
  %v58 = vld [vmem:[%s1 + $0x8c] sm:$0xf]
  %v59 = vld [vmem:[%s1 + $0x90] sm:$0xf]
  %v60 = vld [vmem:[%s1 + $0x94] sm:$0xf]
  %v61 = vld [vmem:[%s1 + $0x98] sm:$0xf]
  %v62 = vld [vmem:[%s1 + $0x9c] sm:$0xf]
  %v63 = vld [vmem:[%s1 + $0xa0] sm:$0xf]
  %v64 = vld [vmem:[%s1 + $0xa4] sm:$0xf]
  %v65 = vld [vmem:[%s1 + $0xa8] sm:$0xf]
  %v66 = vld [vmem:[%s1 + $0xac] sm:$0xf]
  %v67 = vld [vmem:[%s1 + $0xb0] sm:$0xf]
  %v68 = vld [vmem:[%s1 + $0xb4] sm:$0xf]
  %v69 = vld [vmem:[%s1 + $0xb8] sm:$0xf]
  %v70 = vld [vmem:[%s1 + $0xbc] sm:$0xf]
  %v71 = vld [vmem:[%s1 + $0xc0] sm:$0xf]
  %v72 = vld [vmem:[%s1 + $0xc4] sm:$0xf]
  %v73 = vld [vmem:[%s2] sm:$0xff]
  %v74 = vld [vmem:[%s2 + $0x8] sm:$0xff]
  %v75 = vld [vmem:[%s2 + $0x10] sm:$0xff]
  %v76 = vld [vmem:[%s2 + $0x18] sm:$0xff]
  %78 = vset.pattern.permute.xlu0 0
  %79 = vperm.xlu0 %78, %v73
  %v80 = vpop.permute.xlu0 %79
  %83 = vset.pattern.permute.xlu0 0
  %84 = vperm.xlu0 %83, %v74
  %v85 = vpop.permute.xlu0 %84
  %88 = vset.pattern.permute.xlu0 0
  %89 = vperm.xlu0 %88, %v75
  %v90 = vpop.permute.xlu0 %89
  %93 = vset.pattern.permute.xlu0 0
  %94 = vperm.xlu0 %93, %v76
  %v95 = vpop.permute.xlu0 %94
  %v105 = vunpack.c.l.b16 %v15
  %v106 = vunpack.c.h.b16 %v15
  %v107 = vunpack.c.l.b16 %v16
  %v108 = vunpack.c.h.b16 %v16
  %v109 = vunpack.c.l.b16 %v17
  %v110 = vunpack.c.h.b16 %v17
  %v111 = vunpack.c.l.b16 %v18
  %v112 = vunpack.c.h.b16 %v18
  %v113 = vunpack.c.l.b16 %v19
  %v114 = vunpack.c.h.b16 %v19
  %v115 = vunpack.c.l.b16 %v20
  %v116 = vunpack.c.h.b16 %v20
  %v117 = vunpack.c.l.b16 %v21
  %v118 = vunpack.c.h.b16 %v21
  %v119 = vunpack.c.l.b16 %v22
  %v120 = vunpack.c.h.b16 %v22
  %v121 = vpack.c.b16 %v109, %v105
  %v122 = vpack.c.b16 %v110, %v106
  %v123 = vpack.c.b16 %v111, %v107
  %v124 = vpack.c.b16 %v112, %v108
  %v125 = vpack.c.b16 %v117, %v113
  %v126 = vpack.c.b16 %v118, %v114
  %v127 = vpack.c.b16 %v119, %v115
  %v128 = vpack.c.b16 %v120, %v116
  %v185 = vunpack.c.l.b16 %v23
  %v186 = vunpack.c.l.b16 %v24
  %v187 = vunpack.c.l.b16 %v25
  %v188 = vunpack.c.l.b16 %v26
  %v189 = vunpack.c.l.b16 %v27
  %v190 = vunpack.c.l.b16 %v28
  %v191 = vunpack.c.l.b16 %v29
  %v192 = vunpack.c.l.b16 %v30
  %v193 = vunpack.c.l.b16 %v31
  %v194 = vunpack.c.l.b16 %v32
  %v195 = vunpack.c.l.b16 %v33
  %v196 = vunpack.c.l.b16 %v34
  %v197 = vunpack.c.l.b16 %v35
  %v198 = vunpack.c.l.b16 %v36
  %v199 = vunpack.c.l.b16 %v37
  %v200 = vunpack.c.l.b16 %v38
  %v201 = vunpack.c.l.b16 %v39
  %v202 = vunpack.c.l.b16 %v40
  %v203 = vunpack.c.l.b16 %v41
  %v204 = vunpack.c.l.b16 %v42
  %v205 = vunpack.c.l.b16 %v43
  %v206 = vunpack.c.l.b16 %v44
  %v207 = vunpack.c.l.b16 %v45
  %v208 = vunpack.c.l.b16 %v46
  %v209 = vunpack.c.l.b16 %v47
  %v210 = vunpack.c.l.b16 %v48
  %v211 = vunpack.c.l.b16 %v49
  %v212 = vunpack.c.l.b16 %v50
  %v213 = vunpack.c.l.b16 %v51
  %v214 = vunpack.c.l.b16 %v52
  %v215 = vunpack.c.l.b16 %v53
  %v216 = vunpack.c.l.b16 %v54
  %v217 = vunpack.c.l.b16 %v55
  %v218 = vunpack.c.l.b16 %v56
  %v219 = vunpack.c.l.b16 %v57
  %v220 = vunpack.c.l.b16 %v58
  %v221 = vunpack.c.l.b16 %v59
  %v222 = vunpack.c.l.b16 %v60
  %v223 = vunpack.c.l.b16 %v61
  %v224 = vunpack.c.l.b16 %v62
  %v225 = vunpack.c.l.b16 %v63
  %v226 = vunpack.c.l.b16 %v64
  %v227 = vunpack.c.l.b16 %v65
  %v228 = vunpack.c.l.b16 %v66
  %v229 = vunpack.c.l.b16 %v67
  %v230 = vunpack.c.l.b16 %v68
  %v231 = vunpack.c.l.b16 %v69
  %v232 = vunpack.c.l.b16 %v70
  %v233 = vunpack.c.l.b16 %v71
  %v234 = vunpack.c.l.b16 %v72
  %v235 = vpack.c.b16 %v186, %v185
  %v236 = vpack.c.b16 %v188, %v187
  %v237 = vpack.c.b16 %v190, %v189
  %v238 = vpack.c.b16 %v192, %v191
  %v239 = vpack.c.b16 %v194, %v193
  %v240 = vpack.c.b16 %v196, %v195
  %v241 = vpack.c.b16 %v198, %v197
  %v242 = vpack.c.b16 %v200, %v199
  %v243 = vpack.c.b16 %v202, %v201
  %v244 = vpack.c.b16 %v204, %v203
  %v245 = vpack.c.b16 %v206, %v205
  %v246 = vpack.c.b16 %v208, %v207
  %v247 = vpack.c.b16 %v210, %v209
  %v248 = vpack.c.b16 %v212, %v211
  %v249 = vpack.c.b16 %v214, %v213
  %v250 = vpack.c.b16 %v216, %v215
  %v251 = vpack.c.b16 %v218, %v217
  %v252 = vpack.c.b16 %v220, %v219
  %v253 = vpack.c.b16 %v222, %v221
  %v254 = vpack.c.b16 %v224, %v223
  %v255 = vpack.c.b16 %v226, %v225
  %v256 = vpack.c.b16 %v228, %v227
  %v257 = vpack.c.b16 %v230, %v229
  %v258 = vpack.c.b16 %v232, %v231
  %v259 = vpack.c.b16 %v234, %v233
  %vm285 = vcmask 130048
  %v287 = vsel %vm285, %v124, 0
  %v290 = vsel %vm285, %v128, 0
  %292 = vmatprep.subr.bf16.mxu0 0
  %293 = vmatpush1.bf16.msra.mxu0 %v235
  %294 = vmatprep.subr.bf16.mxu0 0
  %295 = vmatpush1.bf16.msra.mxu0 %v236
  %296 = vmatprep.subr.bf16.mxu0 0
  %297 = vmatpush1.bf16.msra.mxu0 %v237
  %298 = vmatprep.subr.bf16.mxu0 0
  %299 = vmatpush1.bf16.msra.mxu0 %v238
  %300 = vmatprep.subr.bf16.mxu0 0
  %301 = vmatpush1.bf16.msra.mxu0 %v239
  %302 = vmatprep.subr.bf16.mxu0 0
  %303 = vmatpush1.bf16.msra.mxu0 %v240
  %304 = vmatprep.subr.bf16.mxu0 0
  %305 = vmatpush1.bf16.msra.mxu0 %v241
  %306 = vmatprep.subr.bf16.mxu0 0
  %307 = vmatpush1.bf16.msra.mxu0 %v242
  %308 = vmatprep.subr.bf16.mxu0 0
  %309 = vmatpush1.bf16.msra.mxu0 %v243
  %310 = vmatprep.subr.bf16.mxu0 0
  %311 = vmatpush1.bf16.msra.mxu0 %v244
  %312 = vmatprep.subr.bf16.mxu0 0
  %313 = vmatpush1.bf16.msra.mxu0 %v245
  %314 = vmatprep.subr.bf16.mxu0 0
  %315 = vmatpush1.bf16.msra.mxu0 %v246
  %316 = vmatprep.subr.bf16.mxu0 0
  %317 = vmatpush1.bf16.msra.mxu0 %v247
  %318 = vmatprep.subr.bf16.mxu0 0
  %319 = vmatpush1.bf16.msra.mxu0 %v248
  %320 = vmatprep.subr.bf16.mxu0 0
  %321 = vmatpush1.bf16.msra.mxu0 %v249
  %322 = vmatprep.subr.bf16.mxu0 0
  %323 = vmatpush1.bf16.msra.mxu0 %v250
  %324 = vmatprep.mubr.bf16.mxu0 %v122
  %325 = vmatmul.mubr.bf16.gmra.mrb[0].mxu0 %v121
  %v326 = vpop.f32.mrb[0].mxu0
  %v327 = vadd.f32 %v80, %v326
  %v328 = vpop.f32.mrb[0].mxu0
  %v329 = vpop.f32.mrb[0].mxu0
  %v330 = vadd.f32 %v85, %v329
  %v331 = vpop.f32.mrb[0].mxu0
  %332 = vmatprep.mubr.bf16.mxu0 %v126
  %333 = vmatmul.mubr.bf16.gmra.mrb[0].mxu0 %v125
  %v334 = vpop.f32.mrb[0].mxu0
  %v335 = vadd.f32 %v90, %v334
  %v336 = vpop.f32.mrb[0].mxu0
  %v337 = vpop.f32.mrb[0].mxu0
  %v338 = vadd.f32 %v95, %v337
  %v339 = vpop.f32.mrb[0].mxu0
  %340 = vdwg.mxu0
  %341 = vmatprep.subr.bf16.mxu0 0
  %342 = vmatpush1.bf16.msra.mxu0 %v251
  %343 = vmatprep.subr.bf16.mxu0 0
  %344 = vmatpush1.bf16.msra.mxu0 %v252
  %345 = vmatprep.subr.bf16.mxu0 0
  %346 = vmatpush1.bf16.msra.mxu0 %v253
  %347 = vmatprep.subr.bf16.mxu0 0
  %348 = vmatpush1.bf16.msra.mxu0 %v254
  %349 = vmatprep.subr.bf16.mxu0 0
  %350 = vmatpush1.bf16.msra.mxu0 %v255
  %351 = vmatprep.subr.bf16.mxu0 0
  %352 = vmatpush1.bf16.msra.mxu0 %v256
  %353 = vmatprep.subr.bf16.mxu0 0
  %354 = vmatpush1.bf16.msra.mxu0 %v257
  %355 = vmatprep.subr.bf16.mxu0 0
  %356 = vmatpush1.bf16.msra.mxu0 %v258
  %357 = vmatprep.subr.bf16.mxu0 0
  %358 = vmatpush1.bf16.msra.mxu0 %v259
  %359 = vmatprep.subr.bf16.mxu0 0
  %360 = vmatpush1.bf16.msra.mxu0 0
  %361 = vmatprep.subr.bf16.mxu0 0
  %362 = vmatpush1.bf16.msra.mxu0 0
  %363 = vmatprep.subr.bf16.mxu0 0
  %364 = vmatpush1.bf16.msra.mxu0 0
  %365 = vmatprep.subr.bf16.mxu0 0
  %366 = vmatpush1.bf16.msra.mxu0 0
  %367 = vmatprep.subr.bf16.mxu0 0
  %368 = vmatpush1.bf16.msra.mxu0 0
  %369 = vmatprep.subr.bf16.mxu0 0
  %370 = vmatpush1.bf16.msra.mxu0 0
  %371 = vmatprep.subr.bf16.mxu0 0
  %372 = vmatpush1.bf16.msra.mxu0 0
  %373 = vmatprep.mubr.bf16.mxu0 %v287
  %374 = vmatmul.mubr.bf16.gmra.mrb[0].mxu0 %v123
  %v375 = vpop.f32.mrb[0].mxu0
  %v376 = vadd.f32 %v327, %v375
  %v377 = vpop.f32.mrb[0].mxu0
  %v378 = vpop.f32.mrb[0].mxu0
  %v379 = vadd.f32 %v330, %v378
  %v380 = vpop.f32.mrb[0].mxu0
  %381 = vmatprep.mubr.bf16.mxu0 %v290
  %382 = vmatmul.mubr.bf16.gmra.mrb[0].mxu0 %v127
  %v383 = vpop.f32.mrb[0].mxu0
  %v384 = vadd.f32 %v335, %v383
  %v385 = vpop.f32.mrb[0].mxu0
  %v386 = vpop.f32.mrb[0].mxu0
  %v387 = vadd.f32 %v338, %v386
  %v388 = vpop.f32.mrb[0].mxu0
  %389 = vdwg.mxu0
  %v390 = vpack.c.bf16 %v379, %v376
  %v391 = vpack.c.bf16 %v387, %v384
  %v394 = vunpack.c.l.b16 %v390
  %v395 = vunpack.c.h.b16 %v390
  %v396 = vunpack.c.l.b16 %v391
  %v397 = vunpack.c.h.b16 %v391
  %v398 = vpack.c.b16 %v394, %v394
  %v399 = vpack.c.b16 %v395, %v395
  %v400 = vpack.c.b16 %v396, %v396
  %v401 = vpack.c.b16 %v397, %v397
  %406 = vst [vmem:[%s3] sm:$0xf] %v398
  %407 = vst [vmem:[%s3 + $0x4] sm:$0xf] %v399
  %408 = vst [vmem:[%s3 + $0x8] sm:$0xf] %v400
  %409 = vst [vmem:[%s3 + $0xc] sm:$0xf] %v401
  // Predicated region
  $region14: #{_lambda_.28} parent=0 // pred_check
    _
  $region15: #{_lambda_.28} parent=0 // pred_check_branch
    %411 = sbr.rel (0) target = $region17
  $region16: #{_lambda_.28} parent=0 // pred_region
    _
  $region17: #{_lambda_.28} parent=0 // pred_fallthru
    _
  // Predicated region
  $region18: #{_lambda_.28} parent=0 // pred_check
    _
  $region19: #{_lambda_.28} parent=0 // pred_check_branch
    %413 = sbr.rel (0) target = $region21
  $region20: #{_lambda_.28} parent=0 // pred_region
    _
  $region21: #{_lambda_.28} parent=0 // pred_fallthru
    _

// kernel: _lambda_.29
$region0: #{_lambda_.29}
  #allocation0 [shape = 'u32[]', space=smem, size = 0x4, offset = 0x4, fixed_abs, tag = 'smem constant byte address 0x4 - core index']
  #allocation1 [shape = 'u32[144,128]{1,0:T(1,128)}', space=vmem, size = 0x12000, scoped, tag = 'internal scratch']
  %s0 = inlined_call_operand.vmem [shape: bf16[32,800], index: 0, kind: input, shape index: {}]
  %s1 = inlined_call_operand.vmem [shape: bf16[800,128], index: 1, kind: input, shape index: {}]
  %s2 = inlined_call_operand.vmem [shape: f32[32,1], index: 2, kind: input, shape index: {}]
  %s3 = inlined_call_operand.vmem [shape: bf16[32,128], index: 3, kind: input, shape index: {}]
  %s4 = inlined_call_operand.vmem [shape: bf16[32,128], index: 4, kind: output, shape index: {}]
  %s5 = sld [smem:[#allocation0]]
  $region26: #{_lambda_.29} parent=0
    _
  %s7 = ssub.s32 1, %s5
  %s8 = scalar_select 0, %s7, %s5
  // Predicated region
  $region2: #{_lambda_.29} parent=0 // pred_check
    _
  $region3: #{_lambda_.29} parent=0 // pred_check_branch
    %10 = sbr.rel (0) target = $region5
  $region4: #{_lambda_.29} parent=0 // pred_region
    _
  $region5: #{_lambda_.29} parent=0 // pred_fallthru
    _
  // Predicated region
  $region6: #{_lambda_.29} parent=0 // pred_check
    _
  $region7: #{_lambda_.29} parent=0 // pred_check_branch
    %12 = sbr.rel (0) target = $region9
  $region8: #{_lambda_.29} parent=0 // pred_region
    _
  $region9: #{_lambda_.29} parent=0 // pred_fallthru
    _
  // Predicated region
  $region10: #{_lambda_.29} parent=0 // pred_check
    _
  $region11: #{_lambda_.29} parent=0 // pred_check_branch
    %14 = sbr.rel (0) target = $region13
  $region12: #{_lambda_.29} parent=0 // pred_region
    _
  $region13: #{_lambda_.29} parent=0 // pred_fallthru
    _
  // Predicated region
  $region14: #{_lambda_.29} parent=0 // pred_check
    _
  $region15: #{_lambda_.29} parent=0 // pred_check_branch
    %16 = sbr.rel (0) target = $region17
  $region16: #{_lambda_.29} parent=0 // pred_region
    _
  $region17: #{_lambda_.29} parent=0 // pred_fallthru
    _
  %v18 = vld [vmem:[%s0] sm:$0xff]
  %v19 = vld [vmem:[%s0 + $0x8] sm:$0xff]
  %v20 = vld [vmem:[%s0 + $0x10] sm:$0xff]
  %v21 = vld [vmem:[%s0 + $0x18] sm:$0xf]
  %v22 = vld [vmem:[%s0 + $0x1c] sm:$0xff]
  %v23 = vld [vmem:[%s0 + $0x24] sm:$0xff]
  %v24 = vld [vmem:[%s0 + $0x2c] sm:$0xff]
  %v25 = vld [vmem:[%s0 + $0x34] sm:$0xf]
  %v26 = vld [vmem:[%s0 + $0x38] sm:$0xff]
  %v27 = vld [vmem:[%s0 + $0x40] sm:$0xff]
  %v28 = vld [vmem:[%s0 + $0x48] sm:$0xff]
  %v29 = vld [vmem:[%s0 + $0x50] sm:$0xf]
  %v30 = vld [vmem:[%s0 + $0x54] sm:$0xff]
  %v31 = vld [vmem:[%s0 + $0x5c] sm:$0xff]
  %v32 = vld [vmem:[%s0 + $0x64] sm:$0xff]
  %v33 = vld [vmem:[%s0 + $0x6c] sm:$0xf]
  %v34 = vld [vmem:[%s1] sm:$0xf]
  %v35 = vld [vmem:[%s1 + $0x4] sm:$0xf]
  %v36 = vld [vmem:[%s1 + $0x8] sm:$0xf]
  %v37 = vld [vmem:[%s1 + $0xc] sm:$0xf]
  %v38 = vld [vmem:[%s1 + $0x10] sm:$0xf]
  %v39 = vld [vmem:[%s1 + $0x14] sm:$0xf]
  %v40 = vld [vmem:[%s1 + $0x18] sm:$0xf]
  %v41 = vld [vmem:[%s1 + $0x1c] sm:$0xf]
  %v42 = vld [vmem:[%s1 + $0x20] sm:$0xf]
  %v43 = vld [vmem:[%s1 + $0x24] sm:$0xf]
  %v44 = vld [vmem:[%s1 + $0x28] sm:$0xf]
  %v45 = vld [vmem:[%s1 + $0x2c] sm:$0xf]
  %v46 = vld [vmem:[%s1 + $0x30] sm:$0xf]
  %v47 = vld [vmem:[%s1 + $0x34] sm:$0xf]
  %v48 = vld [vmem:[%s1 + $0x38] sm:$0xf]
  %v49 = vld [vmem:[%s1 + $0x3c] sm:$0xf]
  %v50 = vld [vmem:[%s1 + $0x40] sm:$0xf]
  %v51 = vld [vmem:[%s1 + $0x44] sm:$0xf]
  %v52 = vld [vmem:[%s1 + $0x48] sm:$0xf]
  %v53 = vld [vmem:[%s1 + $0x4c] sm:$0xf]
  %v54 = vld [vmem:[%s1 + $0x50] sm:$0xf]
  %v55 = vld [vmem:[%s1 + $0x54] sm:$0xf]
  %v56 = vld [vmem:[%s1 + $0x58] sm:$0xf]
  %v57 = vld [vmem:[%s1 + $0x5c] sm:$0xf]
  %v58 = vld [vmem:[%s1 + $0x60] sm:$0xf]
  %v59 = vld [vmem:[%s1 + $0x64] sm:$0xf]
  %v60 = vld [vmem:[%s1 + $0x68] sm:$0xf]
  %v61 = vld [vmem:[%s1 + $0x6c] sm:$0xf]
  %v62 = vld [vmem:[%s1 + $0x70] sm:$0xf]
  %v63 = vld [vmem:[%s1 + $0x74] sm:$0xf]
  %v64 = vld [vmem:[%s1 + $0x78] sm:$0xf]
  %v65 = vld [vmem:[%s1 + $0x7c] sm:$0xf]
  %v66 = vld [vmem:[%s1 + $0x80] sm:$0xf]
  %v67 = vld [vmem:[%s1 + $0x84] sm:$0xf]
  %v68 = vld [vmem:[%s1 + $0x88] sm:$0xf]
  %v69 = vld [vmem:[%s1 + $0x8c] sm:$0xf]
  %v70 = vld [vmem:[%s1 + $0x90] sm:$0xf]
  %v71 = vld [vmem:[%s1 + $0x94] sm:$0xf]
  %v72 = vld [vmem:[%s1 + $0x98] sm:$0xf]
  %v73 = vld [vmem:[%s1 + $0x9c] sm:$0xf]
  %v74 = vld [vmem:[%s1 + $0xa0] sm:$0xf]
  %v75 = vld [vmem:[%s1 + $0xa4] sm:$0xf]
  %v76 = vld [vmem:[%s1 + $0xa8] sm:$0xf]
  %v77 = vld [vmem:[%s1 + $0xac] sm:$0xf]
  %v78 = vld [vmem:[%s1 + $0xb0] sm:$0xf]
  %v79 = vld [vmem:[%s1 + $0xb4] sm:$0xf]
  %v80 = vld [vmem:[%s1 + $0xb8] sm:$0xf]
  %v81 = vld [vmem:[%s1 + $0xbc] sm:$0xf]
  %v82 = vld [vmem:[%s1 + $0xc0] sm:$0xf]
  %v83 = vld [vmem:[%s1 + $0xc4] sm:$0xf]
  %v84 = vld [vmem:[%s1 + $0xc8] sm:$0xf]
  %v85 = vld [vmem:[%s1 + $0xcc] sm:$0xf]
  %v86 = vld [vmem:[%s1 + $0xd0] sm:$0xf]
  %v87 = vld [vmem:[%s1 + $0xd4] sm:$0xf]
  %v88 = vld [vmem:[%s1 + $0xd8] sm:$0xf]
  %v89 = vld [vmem:[%s1 + $0xdc] sm:$0xf]
  %v90 = vld [vmem:[%s1 + $0xe0] sm:$0xf]
  %v91 = vld [vmem:[%s1 + $0xe4] sm:$0xf]
  %v92 = vld [vmem:[%s1 + $0xe8] sm:$0xf]
  %v93 = vld [vmem:[%s1 + $0xec] sm:$0xf]
  %v94 = vld [vmem:[%s1 + $0xf0] sm:$0xf]
  %v95 = vld [vmem:[%s1 + $0xf4] sm:$0xf]
  %v96 = vld [vmem:[%s1 + $0xf8] sm:$0xf]
  %v97 = vld [vmem:[%s1 + $0xfc] sm:$0xf]
  %v98 = vld [vmem:[%s1 + $0x100] sm:$0xf]
  %v99 = vld [vmem:[%s1 + $0x104] sm:$0xf]
  %v100 = vld [vmem:[%s1 + $0x108] sm:$0xf]
  %v101 = vld [vmem:[%s1 + $0x10c] sm:$0xf]
  %v102 = vld [vmem:[%s1 + $0x110] sm:$0xf]
  %v103 = vld [vmem:[%s1 + $0x114] sm:$0xf]
  %v104 = vld [vmem:[%s1 + $0x118] sm:$0xf]
  %v105 = vld [vmem:[%s1 + $0x11c] sm:$0xf]
  %v106 = vld [vmem:[%s1 + $0x120] sm:$0xf]
  %v107 = vld [vmem:[%s1 + $0x124] sm:$0xf]
  %v108 = vld [vmem:[%s1 + $0x128] sm:$0xf]
  %v109 = vld [vmem:[%s1 + $0x12c] sm:$0xf]
  %v110 = vld [vmem:[%s1 + $0x130] sm:$0xf]
  %v111 = vld [vmem:[%s1 + $0x134] sm:$0xf]
  %v112 = vld [vmem:[%s1 + $0x138] sm:$0xf]
  %v113 = vld [vmem:[%s1 + $0x13c] sm:$0xf]
  %v114 = vld [vmem:[%s1 + $0x140] sm:$0xf]
  %v115 = vld [vmem:[%s1 + $0x144] sm:$0xf]
  %v116 = vld [vmem:[%s1 + $0x148] sm:$0xf]
  %v117 = vld [vmem:[%s1 + $0x14c] sm:$0xf]
  %v118 = vld [vmem:[%s1 + $0x150] sm:$0xf]
  %v119 = vld [vmem:[%s1 + $0x154] sm:$0xf]
  %v120 = vld [vmem:[%s1 + $0x158] sm:$0xf]
  %v121 = vld [vmem:[%s1 + $0x15c] sm:$0xf]
  %v122 = vld [vmem:[%s1 + $0x160] sm:$0xf]
  %v123 = vld [vmem:[%s1 + $0x164] sm:$0xf]
  %v124 = vld [vmem:[%s1 + $0x168] sm:$0xf]
  %v125 = vld [vmem:[%s1 + $0x16c] sm:$0xf]
  %v126 = vld [vmem:[%s1 + $0x170] sm:$0xf]
  %v127 = vld [vmem:[%s1 + $0x174] sm:$0xf]
  %v128 = vld [vmem:[%s1 + $0x178] sm:$0xf]
  %v129 = vld [vmem:[%s1 + $0x17c] sm:$0xf]
  %v130 = vld [vmem:[%s1 + $0x180] sm:$0xf]
  %v131 = vld [vmem:[%s1 + $0x184] sm:$0xf]
  %v132 = vld [vmem:[%s1 + $0x188] sm:$0xf]
  %v133 = vld [vmem:[%s1 + $0x18c] sm:$0xf]
  %v134 = vld [vmem:[%s2] sm:$0xff]
  %v135 = vld [vmem:[%s2 + $0x8] sm:$0xff]
  %v136 = vld [vmem:[%s2 + $0x10] sm:$0xff]
  %v137 = vld [vmem:[%s2 + $0x18] sm:$0xff]
  %139 = vset.pattern.permute.xlu0 0
  %140 = vperm.xlu0 %139, %v134
  %v141 = vpop.permute.xlu0 %140
  %144 = vset.pattern.permute.xlu0 0
  %145 = vperm.xlu0 %144, %v135
  %v146 = vpop.permute.xlu0 %145
  %149 = vset.pattern.permute.xlu0 0
  %150 = vperm.xlu0 %149, %v136
  %v151 = vpop.permute.xlu0 %150
  %154 = vset.pattern.permute.xlu0 0
  %155 = vperm.xlu0 %154, %v137
  %v156 = vpop.permute.xlu0 %155
  %v174 = vunpack.c.l.b16 %v18
  %v175 = vunpack.c.h.b16 %v18
  %v176 = vunpack.c.l.b16 %v19
  %v177 = vunpack.c.h.b16 %v19
  %v178 = vunpack.c.l.b16 %v20
  %v179 = vunpack.c.h.b16 %v20
  %v180 = vunpack.c.l.b16 %v21
  %v181 = vunpack.c.l.b16 %v22
  %v182 = vunpack.c.h.b16 %v22
  %v183 = vunpack.c.l.b16 %v23
  %v184 = vunpack.c.h.b16 %v23
  %v185 = vunpack.c.l.b16 %v24
  %v186 = vunpack.c.h.b16 %v24
  %v187 = vunpack.c.l.b16 %v25
  %v188 = vunpack.c.l.b16 %v26
  %v189 = vunpack.c.h.b16 %v26
  %v190 = vunpack.c.l.b16 %v27
  %v191 = vunpack.c.h.b16 %v27
  %v192 = vunpack.c.l.b16 %v28
  %v193 = vunpack.c.h.b16 %v28
  %v194 = vunpack.c.l.b16 %v29
  %v195 = vunpack.c.l.b16 %v30
  %v196 = vunpack.c.h.b16 %v30
  %v197 = vunpack.c.l.b16 %v31
  %v198 = vunpack.c.h.b16 %v31
  %v199 = vunpack.c.l.b16 %v32
  %v200 = vunpack.c.h.b16 %v32
  %v201 = vunpack.c.l.b16 %v33
  %v202 = vpack.c.b16 %v181, %v174
  %v203 = vpack.c.b16 %v182, %v175
  %v204 = vpack.c.b16 %v183, %v176
  %v205 = vpack.c.b16 %v184, %v177
  %v206 = vpack.c.b16 %v185, %v178
  %v207 = vpack.c.b16 %v186, %v179
  %v208 = vpack.c.b16 %v187, %v180
  %v209 = vpack.c.b16 %v195, %v188
  %v210 = vpack.c.b16 %v196, %v189
  %v211 = vpack.c.b16 %v197, %v190
  %v212 = vpack.c.b16 %v198, %v191
  %v213 = vpack.c.b16 %v199, %v192
  %v214 = vpack.c.b16 %v200, %v193
  %v215 = vpack.c.b16 %v201, %v194
  %v328 = vunpack.c.l.b16 %v34
  %v329 = vunpack.c.l.b16 %v35
  %v330 = vunpack.c.l.b16 %v36
  %v331 = vunpack.c.l.b16 %v37
  %v332 = vunpack.c.l.b16 %v38
  %v333 = vunpack.c.l.b16 %v39
  %v334 = vunpack.c.l.b16 %v40
  %v335 = vunpack.c.l.b16 %v41
  %v336 = vunpack.c.l.b16 %v42
  %v337 = vunpack.c.l.b16 %v43
  %v338 = vunpack.c.l.b16 %v44
  %v339 = vunpack.c.l.b16 %v45
  %v340 = vunpack.c.l.b16 %v46
  %v341 = vunpack.c.l.b16 %v47
  %v342 = vunpack.c.l.b16 %v48
  %v343 = vunpack.c.l.b16 %v49
  %v344 = vunpack.c.l.b16 %v50
  %v345 = vunpack.c.l.b16 %v51
  %v346 = vunpack.c.l.b16 %v52
  %v347 = vunpack.c.l.b16 %v53
  %v348 = vunpack.c.l.b16 %v54
  %v349 = vunpack.c.l.b16 %v55
  %v350 = vunpack.c.l.b16 %v56
  %v351 = vunpack.c.l.b16 %v57
  %v352 = vunpack.c.l.b16 %v58
  %v353 = vunpack.c.l.b16 %v59
  %v354 = vunpack.c.l.b16 %v60
  %v355 = vunpack.c.l.b16 %v61
  %v356 = vunpack.c.l.b16 %v62
  %v357 = vunpack.c.l.b16 %v63
  %v358 = vunpack.c.l.b16 %v64
  %v359 = vunpack.c.l.b16 %v65
  %v360 = vunpack.c.l.b16 %v66
  %v361 = vunpack.c.l.b16 %v67
  %v362 = vunpack.c.l.b16 %v68
  %v363 = vunpack.c.l.b16 %v69
  %v364 = vunpack.c.l.b16 %v70
  %v365 = vunpack.c.l.b16 %v71
  %v366 = vunpack.c.l.b16 %v72
  %v367 = vunpack.c.l.b16 %v73
  %v368 = vunpack.c.l.b16 %v74
  %v369 = vunpack.c.l.b16 %v75
  %v370 = vunpack.c.l.b16 %v76
  %v371 = vunpack.c.l.b16 %v77
  %v372 = vunpack.c.l.b16 %v78
  %v373 = vunpack.c.l.b16 %v79
  %v374 = vunpack.c.l.b16 %v80
  %v375 = vunpack.c.l.b16 %v81
  %v376 = vunpack.c.l.b16 %v82
  %v377 = vunpack.c.l.b16 %v83
  %v378 = vunpack.c.l.b16 %v84
  %v379 = vunpack.c.l.b16 %v85
  %v380 = vunpack.c.l.b16 %v86
  %v381 = vunpack.c.l.b16 %v87
  %v382 = vunpack.c.l.b16 %v88
  %v383 = vunpack.c.l.b16 %v89
  %v384 = vunpack.c.l.b16 %v90
  %v385 = vunpack.c.l.b16 %v91
  %v386 = vunpack.c.l.b16 %v92
  %v387 = vunpack.c.l.b16 %v93
  %v388 = vunpack.c.l.b16 %v94
  %v389 = vunpack.c.l.b16 %v95
  %v390 = vunpack.c.l.b16 %v96
  %v391 = vunpack.c.l.b16 %v97
  %v392 = vunpack.c.l.b16 %v98
  %v393 = vunpack.c.l.b16 %v99
  %v394 = vunpack.c.l.b16 %v100
  %v395 = vunpack.c.l.b16 %v101
  %v396 = vunpack.c.l.b16 %v102
  %v397 = vunpack.c.l.b16 %v103
  %v398 = vunpack.c.l.b16 %v104
  %v399 = vunpack.c.l.b16 %v105
  %v400 = vunpack.c.l.b16 %v106
  %v401 = vunpack.c.l.b16 %v107
  %v402 = vunpack.c.l.b16 %v108
  %v403 = vunpack.c.l.b16 %v109
  %v404 = vunpack.c.l.b16 %v110
  %v405 = vunpack.c.l.b16 %v111
  %v406 = vunpack.c.l.b16 %v112
  %v407 = vunpack.c.l.b16 %v113
  %v408 = vunpack.c.l.b16 %v114
  %v409 = vunpack.c.l.b16 %v115
  %v410 = vunpack.c.l.b16 %v116
  %v411 = vunpack.c.l.b16 %v117
  %v412 = vunpack.c.l.b16 %v118
  %v413 = vunpack.c.l.b16 %v119
  %v414 = vunpack.c.l.b16 %v120
  %v415 = vunpack.c.l.b16 %v121
  %v416 = vunpack.c.l.b16 %v122
  %v417 = vunpack.c.l.b16 %v123
  %v418 = vunpack.c.l.b16 %v124
  %v419 = vunpack.c.l.b16 %v125
  %v420 = vunpack.c.l.b16 %v126
  %v421 = vunpack.c.l.b16 %v127
  %v422 = vunpack.c.l.b16 %v128
  %v423 = vunpack.c.l.b16 %v129
  %v424 = vunpack.c.l.b16 %v130
  %v425 = vunpack.c.l.b16 %v131
  %v426 = vunpack.c.l.b16 %v132
  %v427 = vunpack.c.l.b16 %v133
  %v428 = vpack.c.b16 %v329, %v328
  %v429 = vpack.c.b16 %v331, %v330
  %v430 = vpack.c.b16 %v333, %v332
  %v431 = vpack.c.b16 %v335, %v334
  %v432 = vpack.c.b16 %v337, %v336
  %v433 = vpack.c.b16 %v339, %v338
  %v434 = vpack.c.b16 %v341, %v340
  %v435 = vpack.c.b16 %v343, %v342
  %v436 = vpack.c.b16 %v345, %v344
  %v437 = vpack.c.b16 %v347, %v346
  %v438 = vpack.c.b16 %v349, %v348
  %v439 = vpack.c.b16 %v351, %v350
  %v440 = vpack.c.b16 %v353, %v352
  %v441 = vpack.c.b16 %v355, %v354
  %v442 = vpack.c.b16 %v357, %v356
  %v443 = vpack.c.b16 %v359, %v358
  %v444 = vpack.c.b16 %v361, %v360
  %v445 = vpack.c.b16 %v363, %v362
  %v446 = vpack.c.b16 %v365, %v364
  %v447 = vpack.c.b16 %v367, %v366
  %v448 = vpack.c.b16 %v369, %v368
  %v449 = vpack.c.b16 %v371, %v370
  %v450 = vpack.c.b16 %v373, %v372
  %v451 = vpack.c.b16 %v375, %v374
  %v452 = vpack.c.b16 %v377, %v376
  %v453 = vpack.c.b16 %v379, %v378
  %v454 = vpack.c.b16 %v381, %v380
  %v455 = vpack.c.b16 %v383, %v382
  %v456 = vpack.c.b16 %v385, %v384
  %v457 = vpack.c.b16 %v387, %v386
  %v458 = vpack.c.b16 %v389, %v388
  %v459 = vpack.c.b16 %v391, %v390
  %v460 = vpack.c.b16 %v393, %v392
  %v461 = vpack.c.b16 %v395, %v394
  %v462 = vpack.c.b16 %v397, %v396
  %v463 = vpack.c.b16 %v399, %v398
  %v464 = vpack.c.b16 %v401, %v400
  %v465 = vpack.c.b16 %v403, %v402
  %v466 = vpack.c.b16 %v405, %v404
  %v467 = vpack.c.b16 %v407, %v406
  %v468 = vpack.c.b16 %v409, %v408
  %v469 = vpack.c.b16 %v411, %v410
  %v470 = vpack.c.b16 %v413, %v412
  %v471 = vpack.c.b16 %v415, %v414
  %v472 = vpack.c.b16 %v417, %v416
  %v473 = vpack.c.b16 %v419, %v418
  %v474 = vpack.c.b16 %v421, %v420
  %v475 = vpack.c.b16 %v423, %v422
  %v476 = vpack.c.b16 %v425, %v424
  %v477 = vpack.c.b16 %v427, %v426
  %vm528 = vcmask 261120
  %v530 = vsel %vm528, %v208, 0
  %v533 = vsel %vm528, %v215, 0
  %535 = vmatprep.subr.bf16.mxu0 0
  %536 = vmatpush1.bf16.msra.mxu0 %v428
  %537 = vmatprep.subr.bf16.mxu0 0
  %538 = vmatpush1.bf16.msra.mxu0 %v429
  %539 = vmatprep.subr.bf16.mxu0 0
  %540 = vmatpush1.bf16.msra.mxu0 %v430
  %541 = vmatprep.subr.bf16.mxu0 0
  %542 = vmatpush1.bf16.msra.mxu0 %v431
  %543 = vmatprep.subr.bf16.mxu0 0
  %544 = vmatpush1.bf16.msra.mxu0 %v432
  %545 = vmatprep.subr.bf16.mxu0 0
  %546 = vmatpush1.bf16.msra.mxu0 %v433
  %547 = vmatprep.subr.bf16.mxu0 0
  %548 = vmatpush1.bf16.msra.mxu0 %v434
  %549 = vmatprep.subr.bf16.mxu0 0
  %550 = vmatpush1.bf16.msra.mxu0 %v435
  %551 = vmatprep.subr.bf16.mxu0 0
  %552 = vmatpush1.bf16.msra.mxu0 %v436
  %553 = vmatprep.subr.bf16.mxu0 0
  %554 = vmatpush1.bf16.msra.mxu0 %v437
  %555 = vmatprep.subr.bf16.mxu0 0
  %556 = vmatpush1.bf16.msra.mxu0 %v438
  %557 = vmatprep.subr.bf16.mxu0 0
  %558 = vmatpush1.bf16.msra.mxu0 %v439
  %559 = vmatprep.subr.bf16.mxu0 0
  %560 = vmatpush1.bf16.msra.mxu0 %v440
  %561 = vmatprep.subr.bf16.mxu0 0
  %562 = vmatpush1.bf16.msra.mxu0 %v441
  %563 = vmatprep.subr.bf16.mxu0 0
  %564 = vmatpush1.bf16.msra.mxu0 %v442
  %565 = vmatprep.subr.bf16.mxu0 0
  %566 = vmatpush1.bf16.msra.mxu0 %v443
  %567 = vmatprep.mubr.bf16.mxu0 %v203
  %568 = vmatmul.mubr.bf16.gmra.mrb[0].mxu0 %v202
  %v569 = vpop.f32.mrb[0].mxu0
  %v570 = vadd.f32 %v141, %v569
  %v571 = vpop.f32.mrb[0].mxu0
  %v572 = vpop.f32.mrb[0].mxu0
  %v573 = vadd.f32 %v146, %v572
  %v574 = vpop.f32.mrb[0].mxu0
  %575 = vmatprep.mubr.bf16.mxu0 %v210
  %576 = vmatmul.mubr.bf16.gmra.mrb[0].mxu0 %v209
  %v577 = vpop.f32.mrb[0].mxu0
  %v578 = vadd.f32 %v151, %v577
  %v579 = vpop.f32.mrb[0].mxu0
  %v580 = vpop.f32.mrb[0].mxu0
  %v581 = vadd.f32 %v156, %v580
  %v582 = vpop.f32.mrb[0].mxu0
  %583 = vdwg.mxu0
  %584 = vmatprep.subr.bf16.mxu0 0
  %585 = vmatpush1.bf16.msra.mxu0 %v444
  %586 = vmatprep.subr.bf16.mxu0 0
  %587 = vmatpush1.bf16.msra.mxu0 %v445
  %588 = vmatprep.subr.bf16.mxu0 0
  %589 = vmatpush1.bf16.msra.mxu0 %v446
  %590 = vmatprep.subr.bf16.mxu0 0
  %591 = vmatpush1.bf16.msra.mxu0 %v447
  %592 = vmatprep.subr.bf16.mxu0 0
  %593 = vmatpush1.bf16.msra.mxu0 %v448
  %594 = vmatprep.subr.bf16.mxu0 0
  %595 = vmatpush1.bf16.msra.mxu0 %v449
  %596 = vmatprep.subr.bf16.mxu0 0
  %597 = vmatpush1.bf16.msra.mxu0 %v450
  %598 = vmatprep.subr.bf16.mxu0 0
  %599 = vmatpush1.bf16.msra.mxu0 %v451
  %600 = vmatprep.subr.bf16.mxu0 0
  %601 = vmatpush1.bf16.msra.mxu0 %v452
  %602 = vmatprep.subr.bf16.mxu0 0
  %603 = vmatpush1.bf16.msra.mxu0 %v453
  %604 = vmatprep.subr.bf16.mxu0 0
  %605 = vmatpush1.bf16.msra.mxu0 %v454
  %606 = vmatprep.subr.bf16.mxu0 0
  %607 = vmatpush1.bf16.msra.mxu0 %v455
  %608 = vmatprep.subr.bf16.mxu0 0
  %609 = vmatpush1.bf16.msra.mxu0 %v456
  %610 = vmatprep.subr.bf16.mxu0 0
  %611 = vmatpush1.bf16.msra.mxu0 %v457
  %612 = vmatprep.subr.bf16.mxu0 0
  %613 = vmatpush1.bf16.msra.mxu0 %v458
  %614 = vmatprep.subr.bf16.mxu0 0
  %615 = vmatpush1.bf16.msra.mxu0 %v459
  %616 = vmatprep.mubr.bf16.mxu0 %v205
  %617 = vmatmul.mubr.bf16.gmra.mrb[0].mxu0 %v204
  %v618 = vpop.f32.mrb[0].mxu0
  %v619 = vadd.f32 %v570, %v618
  %v620 = vpop.f32.mrb[0].mxu0
  %v621 = vpop.f32.mrb[0].mxu0
  %v622 = vadd.f32 %v573, %v621
  %v623 = vpop.f32.mrb[0].mxu0
  %624 = vmatprep.mubr.bf16.mxu0 %v212
  %625 = vmatmul.mubr.bf16.gmra.mrb[0].mxu0 %v211
  %v626 = vpop.f32.mrb[0].mxu0
  %v627 = vadd.f32 %v578, %v626
  %v628 = vpop.f32.mrb[0].mxu0
  %v629 = vpop.f32.mrb[0].mxu0
  %v630 = vadd.f32 %v581, %v629
  %v631 = vpop.f32.mrb[0].mxu0
  %632 = vdwg.mxu0
  %633 = vmatprep.subr.bf16.mxu0 0
  %634 = vmatpush1.bf16.msra.mxu0 %v460
  %635 = vmatprep.subr.bf16.mxu0 0
  %636 = vmatpush1.bf16.msra.mxu0 %v461
  %637 = vmatprep.subr.bf16.mxu0 0
  %638 = vmatpush1.bf16.msra.mxu0 %v462
  %639 = vmatprep.subr.bf16.mxu0 0
  %640 = vmatpush1.bf16.msra.mxu0 %v463
  %641 = vmatprep.subr.bf16.mxu0 0
  %642 = vmatpush1.bf16.msra.mxu0 %v464
  %643 = vmatprep.subr.bf16.mxu0 0
  %644 = vmatpush1.bf16.msra.mxu0 %v465
  %645 = vmatprep.subr.bf16.mxu0 0
  %646 = vmatpush1.bf16.msra.mxu0 %v466
  %647 = vmatprep.subr.bf16.mxu0 0
  %648 = vmatpush1.bf16.msra.mxu0 %v467
  %649 = vmatprep.subr.bf16.mxu0 0
  %650 = vmatpush1.bf16.msra.mxu0 %v468
  %651 = vmatprep.subr.bf16.mxu0 0
  %652 = vmatpush1.bf16.msra.mxu0 %v469
  %653 = vmatprep.subr.bf16.mxu0 0
  %654 = vmatpush1.bf16.msra.mxu0 %v470
  %655 = vmatprep.subr.bf16.mxu0 0
  %656 = vmatpush1.bf16.msra.mxu0 %v471
  %657 = vmatprep.subr.bf16.mxu0 0
  %658 = vmatpush1.bf16.msra.mxu0 %v472
  %659 = vmatprep.subr.bf16.mxu0 0
  %660 = vmatpush1.bf16.msra.mxu0 %v473
  %661 = vmatprep.subr.bf16.mxu0 0
  %662 = vmatpush1.bf16.msra.mxu0 %v474
  %663 = vmatprep.subr.bf16.mxu0 0
  %664 = vmatpush1.bf16.msra.mxu0 %v475
  %665 = vmatprep.mubr.bf16.mxu0 %v207
  %666 = vmatmul.mubr.bf16.gmra.mrb[0].mxu0 %v206
  %v667 = vpop.f32.mrb[0].mxu0
  %v668 = vadd.f32 %v619, %v667
  %v669 = vpop.f32.mrb[0].mxu0
  %v670 = vpop.f32.mrb[0].mxu0
  %v671 = vadd.f32 %v622, %v670
  %v672 = vpop.f32.mrb[0].mxu0
  %673 = vmatprep.mubr.bf16.mxu0 %v214
  %674 = vmatmul.mubr.bf16.gmra.mrb[0].mxu0 %v213
  %v675 = vpop.f32.mrb[0].mxu0
  %v676 = vadd.f32 %v627, %v675
  %v677 = vpop.f32.mrb[0].mxu0
  %v678 = vpop.f32.mrb[0].mxu0
  %v679 = vadd.f32 %v630, %v678
  %v680 = vpop.f32.mrb[0].mxu0
  %681 = vdwg.mxu0
  %682 = vmatprep.subr.bf16.mxu0 0
  %683 = vmatpush1.bf16.msra.mxu0 %v476
  %684 = vmatprep.subr.bf16.mxu0 0
  %685 = vmatpush1.bf16.msra.mxu0 %v477
  %686 = vmatprep.subr.bf16.mxu0 0
  %687 = vmatpush1.bf16.msra.mxu0 0
  %688 = vmatprep.subr.bf16.mxu0 0
  %689 = vmatpush1.bf16.msra.mxu0 0
  %690 = vmatprep.subr.bf16.mxu0 0
  %691 = vmatpush1.bf16.msra.mxu0 0
  %692 = vmatprep.subr.bf16.mxu0 0
  %693 = vmatpush1.bf16.msra.mxu0 0
  %694 = vmatprep.subr.bf16.mxu0 0
  %695 = vmatpush1.bf16.msra.mxu0 0
  %696 = vmatprep.subr.bf16.mxu0 0
  %697 = vmatpush1.bf16.msra.mxu0 0
  %698 = vmatprep.subr.bf16.mxu0 0
  %699 = vmatpush1.bf16.msra.mxu0 0
  %700 = vmatprep.subr.bf16.mxu0 0
  %701 = vmatpush1.bf16.msra.mxu0 0
  %702 = vmatprep.subr.bf16.mxu0 0
  %703 = vmatpush1.bf16.msra.mxu0 0
  %704 = vmatprep.subr.bf16.mxu0 0
  %705 = vmatpush1.bf16.msra.mxu0 0
  %706 = vmatprep.subr.bf16.mxu0 0
  %707 = vmatpush1.bf16.msra.mxu0 0
  %708 = vmatprep.subr.bf16.mxu0 0
  %709 = vmatpush1.bf16.msra.mxu0 0
  %710 = vmatprep.subr.bf16.mxu0 0
  %711 = vmatpush1.bf16.msra.mxu0 0
  %712 = vmatprep.subr.bf16.mxu0 0
  %713 = vmatpush1.bf16.msra.mxu0 0
  %714 = vmatprep.mubr.bf16.mxu0 0
  %715 = vmatmul.mubr.bf16.gmra.mrb[0].mxu0 %v530
  %v716 = vpop.f32.mrb[0].mxu0
  %v717 = vadd.f32 %v668, %v716
  %v718 = vpop.f32.mrb[0].mxu0
  %v719 = vpop.f32.mrb[0].mxu0
  %v720 = vadd.f32 %v671, %v719
  %v721 = vpop.f32.mrb[0].mxu0
  %722 = vmatprep.mubr.bf16.mxu0 0
  %723 = vmatmul.mubr.bf16.gmra.mrb[0].mxu0 %v533
  %v724 = vpop.f32.mrb[0].mxu0
  %v725 = vadd.f32 %v676, %v724
  %v726 = vpop.f32.mrb[0].mxu0
  %v727 = vpop.f32.mrb[0].mxu0
  %v728 = vadd.f32 %v679, %v727
  %v729 = vpop.f32.mrb[0].mxu0
  %730 = vdwg.mxu0
  %v731 = vld [vmem:[%s3] sm:$0xf]
  %v732 = vld [vmem:[%s3 + $0x4] sm:$0xf]
  %v733 = vld [vmem:[%s3 + $0x8] sm:$0xf]
  %v734 = vld [vmem:[%s3 + $0xc] sm:$0xf]
  %v735 = vunpack.c.l.bf16 %v731
  %v736 = vunpack.c.l.bf16 %v732
  %v737 = vunpack.c.l.bf16 %v733
  %v738 = vunpack.c.l.bf16 %v734
  %v739 = vadd.f32 %v717, %v735
  %v740 = vadd.f32 %v720, %v736
  %v741 = vadd.f32 %v725, %v737
  %v742 = vadd.f32 %v728, %v738
  %v743 = vmax.f32 %v739, 0.0
  %v744 = vmax.f32 %v740, 0.0
  %v745 = vmax.f32 %v741, 0.0
  %v746 = vmax.f32 %v742, 0.0
  %v747 = vpack.c.bf16 %v744, %v743
  %v748 = vpack.c.bf16 %v746, %v745
  %v751 = vunpack.c.l.b16 %v747
  %v752 = vunpack.c.h.b16 %v747
  %v753 = vunpack.c.l.b16 %v748
  %v754 = vunpack.c.h.b16 %v748
  %v755 = vpack.c.b16 %v751, %v751
  %v756 = vpack.c.b16 %v752, %v752
  %v757 = vpack.c.b16 %v753, %v753
  %v758 = vpack.c.b16 %v754, %v754
  %763 = vst [vmem:[%s4] sm:$0xf] %v755
  %764 = vst [vmem:[%s4 + $0x4] sm:$0xf] %v756
  %765 = vst [vmem:[%s4 + $0x8] sm:$0xf] %v757
  %766 = vst [vmem:[%s4 + $0xc] sm:$0xf] %v758
  // Predicated region
  $region18: #{_lambda_.29} parent=0 // pred_check
    _
  $region19: #{_lambda_.29} parent=0 // pred_check_branch
    %768 = sbr.rel (0) target = $region21
  $region20: #{_lambda_.29} parent=0 // pred_region
    _
  $region21: #{_lambda_.29} parent=0 // pred_fallthru
    _
  // Predicated region
  $region22: #{_lambda_.29} parent=0 // pred_check
    _
  $region23: #{_lambda_.29} parent=0 // pred_check_branch
    %770 = sbr.rel (0) target = $region25
  $region24: #{_lambda_.29} parent=0 // pred_region
    _
  $region25: #{_lambda_.29} parent=0 // pred_fallthru
    _

// kernel: _lambda_.30
$region0: #{_lambda_.30}
  #allocation0 [shape = 'u32[]', space=smem, size = 0x4, offset = 0x4, fixed_abs, tag = 'smem constant byte address 0x4 - core index']
  #allocation1 [shape = 'u32[144,128]{1,0:T(1,128)}', space=vmem, size = 0x12000, scoped, tag = 'internal scratch']
  %s0 = inlined_call_operand.vmem [shape: bf16[32,800], index: 0, kind: input, shape index: {}]
  %s1 = inlined_call_operand.vmem [shape: bf16[800,128], index: 1, kind: input, shape index: {}]
  %s2 = inlined_call_operand.vmem [shape: f32[32,1], index: 2, kind: input, shape index: {}]
  %s3 = inlined_call_operand.vmem [shape: bf16[32,128], index: 3, kind: output, shape index: {}]
  %s4 = sld [smem:[#allocation0]]
  $region22: #{_lambda_.30} parent=0
    _
  %s6 = ssub.s32 1, %s4
  %s7 = scalar_select 0, %s6, %s4
  // Predicated region
  $region2: #{_lambda_.30} parent=0 // pred_check
    _
  $region3: #{_lambda_.30} parent=0 // pred_check_branch
    %9 = sbr.rel (0) target = $region5
  $region4: #{_lambda_.30} parent=0 // pred_region
    _
  $region5: #{_lambda_.30} parent=0 // pred_fallthru
    _
  // Predicated region
  $region6: #{_lambda_.30} parent=0 // pred_check
    _
  $region7: #{_lambda_.30} parent=0 // pred_check_branch
    %11 = sbr.rel (0) target = $region9
  $region8: #{_lambda_.30} parent=0 // pred_region
    _
  $region9: #{_lambda_.30} parent=0 // pred_fallthru
    _
  // Predicated region
  $region10: #{_lambda_.30} parent=0 // pred_check
    _
  $region11: #{_lambda_.30} parent=0 // pred_check_branch
    %13 = sbr.rel (0) target = $region13
  $region12: #{_lambda_.30} parent=0 // pred_region
    _
  $region13: #{_lambda_.30} parent=0 // pred_fallthru
    _
  %v15 = vld [vmem:[%s0] sm:$0xff]
  %v16 = vld [vmem:[%s0 + $0x8] sm:$0xff]
  %v17 = vld [vmem:[%s0 + $0x10] sm:$0xff]
  %v18 = vld [vmem:[%s0 + $0x18] sm:$0xf]
  %v19 = vld [vmem:[%s0 + $0x1c] sm:$0xff]
  %v20 = vld [vmem:[%s0 + $0x24] sm:$0xff]
  %v21 = vld [vmem:[%s0 + $0x2c] sm:$0xff]
  %v22 = vld [vmem:[%s0 + $0x34] sm:$0xf]
  %v23 = vld [vmem:[%s0 + $0x38] sm:$0xff]
  %v24 = vld [vmem:[%s0 + $0x40] sm:$0xff]
  %v25 = vld [vmem:[%s0 + $0x48] sm:$0xff]
  %v26 = vld [vmem:[%s0 + $0x50] sm:$0xf]
  %v27 = vld [vmem:[%s0 + $0x54] sm:$0xff]
  %v28 = vld [vmem:[%s0 + $0x5c] sm:$0xff]
  %v29 = vld [vmem:[%s0 + $0x64] sm:$0xff]
  %v30 = vld [vmem:[%s0 + $0x6c] sm:$0xf]
  %v31 = vld [vmem:[%s1] sm:$0xf]
  %v32 = vld [vmem:[%s1 + $0x4] sm:$0xf]
  %v33 = vld [vmem:[%s1 + $0x8] sm:$0xf]
  %v34 = vld [vmem:[%s1 + $0xc] sm:$0xf]
  %v35 = vld [vmem:[%s1 + $0x10] sm:$0xf]
  %v36 = vld [vmem:[%s1 + $0x14] sm:$0xf]
  %v37 = vld [vmem:[%s1 + $0x18] sm:$0xf]
  %v38 = vld [vmem:[%s1 + $0x1c] sm:$0xf]
  %v39 = vld [vmem:[%s1 + $0x20] sm:$0xf]
  %v40 = vld [vmem:[%s1 + $0x24] sm:$0xf]
  %v41 = vld [vmem:[%s1 + $0x28] sm:$0xf]
  %v42 = vld [vmem:[%s1 + $0x2c] sm:$0xf]
  %v43 = vld [vmem:[%s1 + $0x30] sm:$0xf]
  %v44 = vld [vmem:[%s1 + $0x34] sm:$0xf]
  %v45 = vld [vmem:[%s1 + $0x38] sm:$0xf]
  %v46 = vld [vmem:[%s1 + $0x3c] sm:$0xf]
  %v47 = vld [vmem:[%s1 + $0x40] sm:$0xf]
  %v48 = vld [vmem:[%s1 + $0x44] sm:$0xf]
  %v49 = vld [vmem:[%s1 + $0x48] sm:$0xf]
  %v50 = vld [vmem:[%s1 + $0x4c] sm:$0xf]
  %v51 = vld [vmem:[%s1 + $0x50] sm:$0xf]
  %v52 = vld [vmem:[%s1 + $0x54] sm:$0xf]
  %v53 = vld [vmem:[%s1 + $0x58] sm:$0xf]
  %v54 = vld [vmem:[%s1 + $0x5c] sm:$0xf]
  %v55 = vld [vmem:[%s1 + $0x60] sm:$0xf]
  %v56 = vld [vmem:[%s1 + $0x64] sm:$0xf]
  %v57 = vld [vmem:[%s1 + $0x68] sm:$0xf]
  %v58 = vld [vmem:[%s1 + $0x6c] sm:$0xf]
  %v59 = vld [vmem:[%s1 + $0x70] sm:$0xf]
  %v60 = vld [vmem:[%s1 + $0x74] sm:$0xf]
  %v61 = vld [vmem:[%s1 + $0x78] sm:$0xf]
  %v62 = vld [vmem:[%s1 + $0x7c] sm:$0xf]
  %v63 = vld [vmem:[%s1 + $0x80] sm:$0xf]
  %v64 = vld [vmem:[%s1 + $0x84] sm:$0xf]
  %v65 = vld [vmem:[%s1 + $0x88] sm:$0xf]
  %v66 = vld [vmem:[%s1 + $0x8c] sm:$0xf]
  %v67 = vld [vmem:[%s1 + $0x90] sm:$0xf]
  %v68 = vld [vmem:[%s1 + $0x94] sm:$0xf]
  %v69 = vld [vmem:[%s1 + $0x98] sm:$0xf]
  %v70 = vld [vmem:[%s1 + $0x9c] sm:$0xf]
  %v71 = vld [vmem:[%s1 + $0xa0] sm:$0xf]
  %v72 = vld [vmem:[%s1 + $0xa4] sm:$0xf]
  %v73 = vld [vmem:[%s1 + $0xa8] sm:$0xf]
  %v74 = vld [vmem:[%s1 + $0xac] sm:$0xf]
  %v75 = vld [vmem:[%s1 + $0xb0] sm:$0xf]
  %v76 = vld [vmem:[%s1 + $0xb4] sm:$0xf]
  %v77 = vld [vmem:[%s1 + $0xb8] sm:$0xf]
  %v78 = vld [vmem:[%s1 + $0xbc] sm:$0xf]
  %v79 = vld [vmem:[%s1 + $0xc0] sm:$0xf]
  %v80 = vld [vmem:[%s1 + $0xc4] sm:$0xf]
  %v81 = vld [vmem:[%s1 + $0xc8] sm:$0xf]
  %v82 = vld [vmem:[%s1 + $0xcc] sm:$0xf]
  %v83 = vld [vmem:[%s1 + $0xd0] sm:$0xf]
  %v84 = vld [vmem:[%s1 + $0xd4] sm:$0xf]
  %v85 = vld [vmem:[%s1 + $0xd8] sm:$0xf]
  %v86 = vld [vmem:[%s1 + $0xdc] sm:$0xf]
  %v87 = vld [vmem:[%s1 + $0xe0] sm:$0xf]
  %v88 = vld [vmem:[%s1 + $0xe4] sm:$0xf]
  %v89 = vld [vmem:[%s1 + $0xe8] sm:$0xf]
  %v90 = vld [vmem:[%s1 + $0xec] sm:$0xf]
  %v91 = vld [vmem:[%s1 + $0xf0] sm:$0xf]
  %v92 = vld [vmem:[%s1 + $0xf4] sm:$0xf]
  %v93 = vld [vmem:[%s1 + $0xf8] sm:$0xf]
  %v94 = vld [vmem:[%s1 + $0xfc] sm:$0xf]
  %v95 = vld [vmem:[%s1 + $0x100] sm:$0xf]
  %v96 = vld [vmem:[%s1 + $0x104] sm:$0xf]
  %v97 = vld [vmem:[%s1 + $0x108] sm:$0xf]
  %v98 = vld [vmem:[%s1 + $0x10c] sm:$0xf]
  %v99 = vld [vmem:[%s1 + $0x110] sm:$0xf]
  %v100 = vld [vmem:[%s1 + $0x114] sm:$0xf]
  %v101 = vld [vmem:[%s1 + $0x118] sm:$0xf]
  %v102 = vld [vmem:[%s1 + $0x11c] sm:$0xf]
  %v103 = vld [vmem:[%s1 + $0x120] sm:$0xf]
  %v104 = vld [vmem:[%s1 + $0x124] sm:$0xf]
  %v105 = vld [vmem:[%s1 + $0x128] sm:$0xf]
  %v106 = vld [vmem:[%s1 + $0x12c] sm:$0xf]
  %v107 = vld [vmem:[%s1 + $0x130] sm:$0xf]
  %v108 = vld [vmem:[%s1 + $0x134] sm:$0xf]
  %v109 = vld [vmem:[%s1 + $0x138] sm:$0xf]
  %v110 = vld [vmem:[%s1 + $0x13c] sm:$0xf]
  %v111 = vld [vmem:[%s1 + $0x140] sm:$0xf]
  %v112 = vld [vmem:[%s1 + $0x144] sm:$0xf]
  %v113 = vld [vmem:[%s1 + $0x148] sm:$0xf]
  %v114 = vld [vmem:[%s1 + $0x14c] sm:$0xf]
  %v115 = vld [vmem:[%s1 + $0x150] sm:$0xf]
  %v116 = vld [vmem:[%s1 + $0x154] sm:$0xf]
  %v117 = vld [vmem:[%s1 + $0x158] sm:$0xf]
  %v118 = vld [vmem:[%s1 + $0x15c] sm:$0xf]
  %v119 = vld [vmem:[%s1 + $0x160] sm:$0xf]
  %v120 = vld [vmem:[%s1 + $0x164] sm:$0xf]
  %v121 = vld [vmem:[%s1 + $0x168] sm:$0xf]
  %v122 = vld [vmem:[%s1 + $0x16c] sm:$0xf]
  %v123 = vld [vmem:[%s1 + $0x170] sm:$0xf]
  %v124 = vld [vmem:[%s1 + $0x174] sm:$0xf]
  %v125 = vld [vmem:[%s1 + $0x178] sm:$0xf]
  %v126 = vld [vmem:[%s1 + $0x17c] sm:$0xf]
  %v127 = vld [vmem:[%s1 + $0x180] sm:$0xf]
  %v128 = vld [vmem:[%s1 + $0x184] sm:$0xf]
  %v129 = vld [vmem:[%s1 + $0x188] sm:$0xf]
  %v130 = vld [vmem:[%s1 + $0x18c] sm:$0xf]
  %v131 = vld [vmem:[%s2] sm:$0xff]
  %v132 = vld [vmem:[%s2 + $0x8] sm:$0xff]
  %v133 = vld [vmem:[%s2 + $0x10] sm:$0xff]
  %v134 = vld [vmem:[%s2 + $0x18] sm:$0xff]
  %136 = vset.pattern.permute.xlu0 0
  %137 = vperm.xlu0 %136, %v131
  %v138 = vpop.permute.xlu0 %137
  %141 = vset.pattern.permute.xlu0 0
  %142 = vperm.xlu0 %141, %v132
  %v143 = vpop.permute.xlu0 %142
  %146 = vset.pattern.permute.xlu0 0
  %147 = vperm.xlu0 %146, %v133
  %v148 = vpop.permute.xlu0 %147
  %151 = vset.pattern.permute.xlu0 0
  %152 = vperm.xlu0 %151, %v134
  %v153 = vpop.permute.xlu0 %152
  %v171 = vunpack.c.l.b16 %v15
  %v172 = vunpack.c.h.b16 %v15
  %v173 = vunpack.c.l.b16 %v16
  %v174 = vunpack.c.h.b16 %v16
  %v175 = vunpack.c.l.b16 %v17
  %v176 = vunpack.c.h.b16 %v17
  %v177 = vunpack.c.l.b16 %v18
  %v178 = vunpack.c.l.b16 %v19
  %v179 = vunpack.c.h.b16 %v19
  %v180 = vunpack.c.l.b16 %v20
  %v181 = vunpack.c.h.b16 %v20
  %v182 = vunpack.c.l.b16 %v21
  %v183 = vunpack.c.h.b16 %v21
  %v184 = vunpack.c.l.b16 %v22
  %v185 = vunpack.c.l.b16 %v23
  %v186 = vunpack.c.h.b16 %v23
  %v187 = vunpack.c.l.b16 %v24
  %v188 = vunpack.c.h.b16 %v24
  %v189 = vunpack.c.l.b16 %v25
  %v190 = vunpack.c.h.b16 %v25
  %v191 = vunpack.c.l.b16 %v26
  %v192 = vunpack.c.l.b16 %v27
  %v193 = vunpack.c.h.b16 %v27
  %v194 = vunpack.c.l.b16 %v28
  %v195 = vunpack.c.h.b16 %v28
  %v196 = vunpack.c.l.b16 %v29
  %v197 = vunpack.c.h.b16 %v29
  %v198 = vunpack.c.l.b16 %v30
  %v199 = vpack.c.b16 %v178, %v171
  %v200 = vpack.c.b16 %v179, %v172
  %v201 = vpack.c.b16 %v180, %v173
  %v202 = vpack.c.b16 %v181, %v174
  %v203 = vpack.c.b16 %v182, %v175
  %v204 = vpack.c.b16 %v183, %v176
  %v205 = vpack.c.b16 %v184, %v177
  %v206 = vpack.c.b16 %v192, %v185
  %v207 = vpack.c.b16 %v193, %v186
  %v208 = vpack.c.b16 %v194, %v187
  %v209 = vpack.c.b16 %v195, %v188
  %v210 = vpack.c.b16 %v196, %v189
  %v211 = vpack.c.b16 %v197, %v190
  %v212 = vpack.c.b16 %v198, %v191
  %v325 = vunpack.c.l.b16 %v31
  %v326 = vunpack.c.l.b16 %v32
  %v327 = vunpack.c.l.b16 %v33
  %v328 = vunpack.c.l.b16 %v34
  %v329 = vunpack.c.l.b16 %v35
  %v330 = vunpack.c.l.b16 %v36
  %v331 = vunpack.c.l.b16 %v37
  %v332 = vunpack.c.l.b16 %v38
  %v333 = vunpack.c.l.b16 %v39
  %v334 = vunpack.c.l.b16 %v40
  %v335 = vunpack.c.l.b16 %v41
  %v336 = vunpack.c.l.b16 %v42
  %v337 = vunpack.c.l.b16 %v43
  %v338 = vunpack.c.l.b16 %v44
  %v339 = vunpack.c.l.b16 %v45
  %v340 = vunpack.c.l.b16 %v46
  %v341 = vunpack.c.l.b16 %v47
  %v342 = vunpack.c.l.b16 %v48
  %v343 = vunpack.c.l.b16 %v49
  %v344 = vunpack.c.l.b16 %v50
  %v345 = vunpack.c.l.b16 %v51
  %v346 = vunpack.c.l.b16 %v52
  %v347 = vunpack.c.l.b16 %v53
  %v348 = vunpack.c.l.b16 %v54
  %v349 = vunpack.c.l.b16 %v55
  %v350 = vunpack.c.l.b16 %v56
  %v351 = vunpack.c.l.b16 %v57
  %v352 = vunpack.c.l.b16 %v58
  %v353 = vunpack.c.l.b16 %v59
  %v354 = vunpack.c.l.b16 %v60
  %v355 = vunpack.c.l.b16 %v61
  %v356 = vunpack.c.l.b16 %v62
  %v357 = vunpack.c.l.b16 %v63
  %v358 = vunpack.c.l.b16 %v64
  %v359 = vunpack.c.l.b16 %v65
  %v360 = vunpack.c.l.b16 %v66
  %v361 = vunpack.c.l.b16 %v67
  %v362 = vunpack.c.l.b16 %v68
  %v363 = vunpack.c.l.b16 %v69
  %v364 = vunpack.c.l.b16 %v70
  %v365 = vunpack.c.l.b16 %v71
  %v366 = vunpack.c.l.b16 %v72
  %v367 = vunpack.c.l.b16 %v73
  %v368 = vunpack.c.l.b16 %v74
  %v369 = vunpack.c.l.b16 %v75
  %v370 = vunpack.c.l.b16 %v76
  %v371 = vunpack.c.l.b16 %v77
  %v372 = vunpack.c.l.b16 %v78
  %v373 = vunpack.c.l.b16 %v79
  %v374 = vunpack.c.l.b16 %v80
  %v375 = vunpack.c.l.b16 %v81
  %v376 = vunpack.c.l.b16 %v82
  %v377 = vunpack.c.l.b16 %v83
  %v378 = vunpack.c.l.b16 %v84
  %v379 = vunpack.c.l.b16 %v85
  %v380 = vunpack.c.l.b16 %v86
  %v381 = vunpack.c.l.b16 %v87
  %v382 = vunpack.c.l.b16 %v88
  %v383 = vunpack.c.l.b16 %v89
  %v384 = vunpack.c.l.b16 %v90
  %v385 = vunpack.c.l.b16 %v91
  %v386 = vunpack.c.l.b16 %v92
  %v387 = vunpack.c.l.b16 %v93
  %v388 = vunpack.c.l.b16 %v94
  %v389 = vunpack.c.l.b16 %v95
  %v390 = vunpack.c.l.b16 %v96
  %v391 = vunpack.c.l.b16 %v97
  %v392 = vunpack.c.l.b16 %v98
  %v393 = vunpack.c.l.b16 %v99
  %v394 = vunpack.c.l.b16 %v100
  %v395 = vunpack.c.l.b16 %v101
  %v396 = vunpack.c.l.b16 %v102
  %v397 = vunpack.c.l.b16 %v103
  %v398 = vunpack.c.l.b16 %v104
  %v399 = vunpack.c.l.b16 %v105
  %v400 = vunpack.c.l.b16 %v106
  %v401 = vunpack.c.l.b16 %v107
  %v402 = vunpack.c.l.b16 %v108
  %v403 = vunpack.c.l.b16 %v109
  %v404 = vunpack.c.l.b16 %v110
  %v405 = vunpack.c.l.b16 %v111
  %v406 = vunpack.c.l.b16 %v112
  %v407 = vunpack.c.l.b16 %v113
  %v408 = vunpack.c.l.b16 %v114
  %v409 = vunpack.c.l.b16 %v115
  %v410 = vunpack.c.l.b16 %v116
  %v411 = vunpack.c.l.b16 %v117
  %v412 = vunpack.c.l.b16 %v118
  %v413 = vunpack.c.l.b16 %v119
  %v414 = vunpack.c.l.b16 %v120
  %v415 = vunpack.c.l.b16 %v121
  %v416 = vunpack.c.l.b16 %v122
  %v417 = vunpack.c.l.b16 %v123
  %v418 = vunpack.c.l.b16 %v124
  %v419 = vunpack.c.l.b16 %v125
  %v420 = vunpack.c.l.b16 %v126
  %v421 = vunpack.c.l.b16 %v127
  %v422 = vunpack.c.l.b16 %v128
  %v423 = vunpack.c.l.b16 %v129
  %v424 = vunpack.c.l.b16 %v130
  %v425 = vpack.c.b16 %v326, %v325
  %v426 = vpack.c.b16 %v328, %v327
  %v427 = vpack.c.b16 %v330, %v329
  %v428 = vpack.c.b16 %v332, %v331
  %v429 = vpack.c.b16 %v334, %v333
  %v430 = vpack.c.b16 %v336, %v335
  %v431 = vpack.c.b16 %v338, %v337
  %v432 = vpack.c.b16 %v340, %v339
  %v433 = vpack.c.b16 %v342, %v341
  %v434 = vpack.c.b16 %v344, %v343
  %v435 = vpack.c.b16 %v346, %v345
  %v436 = vpack.c.b16 %v348, %v347
  %v437 = vpack.c.b16 %v350, %v349
  %v438 = vpack.c.b16 %v352, %v351
  %v439 = vpack.c.b16 %v354, %v353
  %v440 = vpack.c.b16 %v356, %v355
  %v441 = vpack.c.b16 %v358, %v357
  %v442 = vpack.c.b16 %v360, %v359
  %v443 = vpack.c.b16 %v362, %v361
  %v444 = vpack.c.b16 %v364, %v363
  %v445 = vpack.c.b16 %v366, %v365
  %v446 = vpack.c.b16 %v368, %v367
  %v447 = vpack.c.b16 %v370, %v369
  %v448 = vpack.c.b16 %v372, %v371
  %v449 = vpack.c.b16 %v374, %v373
  %v450 = vpack.c.b16 %v376, %v375
  %v451 = vpack.c.b16 %v378, %v377
  %v452 = vpack.c.b16 %v380, %v379
  %v453 = vpack.c.b16 %v382, %v381
  %v454 = vpack.c.b16 %v384, %v383
  %v455 = vpack.c.b16 %v386, %v385
  %v456 = vpack.c.b16 %v388, %v387
  %v457 = vpack.c.b16 %v390, %v389
  %v458 = vpack.c.b16 %v392, %v391
  %v459 = vpack.c.b16 %v394, %v393
  %v460 = vpack.c.b16 %v396, %v395
  %v461 = vpack.c.b16 %v398, %v397
  %v462 = vpack.c.b16 %v400, %v399
  %v463 = vpack.c.b16 %v402, %v401
  %v464 = vpack.c.b16 %v404, %v403
  %v465 = vpack.c.b16 %v406, %v405
  %v466 = vpack.c.b16 %v408, %v407
  %v467 = vpack.c.b16 %v410, %v409
  %v468 = vpack.c.b16 %v412, %v411
  %v469 = vpack.c.b16 %v414, %v413
  %v470 = vpack.c.b16 %v416, %v415
  %v471 = vpack.c.b16 %v418, %v417
  %v472 = vpack.c.b16 %v420, %v419
  %v473 = vpack.c.b16 %v422, %v421
  %v474 = vpack.c.b16 %v424, %v423
  %vm525 = vcmask 261120
  %v527 = vsel %vm525, %v205, 0
  %v530 = vsel %vm525, %v212, 0
  %532 = vmatprep.subr.bf16.mxu0 0
  %533 = vmatpush1.bf16.msra.mxu0 %v425
  %534 = vmatprep.subr.bf16.mxu0 0
  %535 = vmatpush1.bf16.msra.mxu0 %v426
  %536 = vmatprep.subr.bf16.mxu0 0
  %537 = vmatpush1.bf16.msra.mxu0 %v427
  %538 = vmatprep.subr.bf16.mxu0 0
  %539 = vmatpush1.bf16.msra.mxu0 %v428
  %540 = vmatprep.subr.bf16.mxu0 0
  %541 = vmatpush1.bf16.msra.mxu0 %v429
  %542 = vmatprep.subr.bf16.mxu0 0
  %543 = vmatpush1.bf16.msra.mxu0 %v430
  %544 = vmatprep.subr.bf16.mxu0 0
  %545 = vmatpush1.bf16.msra.mxu0 %v431
  %546 = vmatprep.subr.bf16.mxu0 0
  %547 = vmatpush1.bf16.msra.mxu0 %v432
  %548 = vmatprep.subr.bf16.mxu0 0
  %549 = vmatpush1.bf16.msra.mxu0 %v433
  %550 = vmatprep.subr.bf16.mxu0 0
  %551 = vmatpush1.bf16.msra.mxu0 %v434
  %552 = vmatprep.subr.bf16.mxu0 0
  %553 = vmatpush1.bf16.msra.mxu0 %v435
  %554 = vmatprep.subr.bf16.mxu0 0
  %555 = vmatpush1.bf16.msra.mxu0 %v436
  %556 = vmatprep.subr.bf16.mxu0 0
  %557 = vmatpush1.bf16.msra.mxu0 %v437
  %558 = vmatprep.subr.bf16.mxu0 0
  %559 = vmatpush1.bf16.msra.mxu0 %v438
  %560 = vmatprep.subr.bf16.mxu0 0
  %561 = vmatpush1.bf16.msra.mxu0 %v439
  %562 = vmatprep.subr.bf16.mxu0 0
  %563 = vmatpush1.bf16.msra.mxu0 %v440
  %564 = vmatprep.mubr.bf16.mxu0 %v200
  %565 = vmatmul.mubr.bf16.gmra.mrb[0].mxu0 %v199
  %v566 = vpop.f32.mrb[0].mxu0
  %v567 = vadd.f32 %v138, %v566
  %v568 = vpop.f32.mrb[0].mxu0
  %v569 = vpop.f32.mrb[0].mxu0
  %v570 = vadd.f32 %v143, %v569
  %v571 = vpop.f32.mrb[0].mxu0
  %572 = vmatprep.mubr.bf16.mxu0 %v207
  %573 = vmatmul.mubr.bf16.gmra.mrb[0].mxu0 %v206
  %v574 = vpop.f32.mrb[0].mxu0
  %v575 = vadd.f32 %v148, %v574
  %v576 = vpop.f32.mrb[0].mxu0
  %v577 = vpop.f32.mrb[0].mxu0
  %v578 = vadd.f32 %v153, %v577
  %v579 = vpop.f32.mrb[0].mxu0
  %580 = vdwg.mxu0
  %581 = vmatprep.subr.bf16.mxu0 0
  %582 = vmatpush1.bf16.msra.mxu0 %v441
  %583 = vmatprep.subr.bf16.mxu0 0
  %584 = vmatpush1.bf16.msra.mxu0 %v442
  %585 = vmatprep.subr.bf16.mxu0 0
  %586 = vmatpush1.bf16.msra.mxu0 %v443
  %587 = vmatprep.subr.bf16.mxu0 0
  %588 = vmatpush1.bf16.msra.mxu0 %v444
  %589 = vmatprep.subr.bf16.mxu0 0
  %590 = vmatpush1.bf16.msra.mxu0 %v445
  %591 = vmatprep.subr.bf16.mxu0 0
  %592 = vmatpush1.bf16.msra.mxu0 %v446
  %593 = vmatprep.subr.bf16.mxu0 0
  %594 = vmatpush1.bf16.msra.mxu0 %v447
  %595 = vmatprep.subr.bf16.mxu0 0
  %596 = vmatpush1.bf16.msra.mxu0 %v448
  %597 = vmatprep.subr.bf16.mxu0 0
  %598 = vmatpush1.bf16.msra.mxu0 %v449
  %599 = vmatprep.subr.bf16.mxu0 0
  %600 = vmatpush1.bf16.msra.mxu0 %v450
  %601 = vmatprep.subr.bf16.mxu0 0
  %602 = vmatpush1.bf16.msra.mxu0 %v451
  %603 = vmatprep.subr.bf16.mxu0 0
  %604 = vmatpush1.bf16.msra.mxu0 %v452
  %605 = vmatprep.subr.bf16.mxu0 0
  %606 = vmatpush1.bf16.msra.mxu0 %v453
  %607 = vmatprep.subr.bf16.mxu0 0
  %608 = vmatpush1.bf16.msra.mxu0 %v454
  %609 = vmatprep.subr.bf16.mxu0 0
  %610 = vmatpush1.bf16.msra.mxu0 %v455
  %611 = vmatprep.subr.bf16.mxu0 0
  %612 = vmatpush1.bf16.msra.mxu0 %v456
  %613 = vmatprep.mubr.bf16.mxu0 %v202
  %614 = vmatmul.mubr.bf16.gmra.mrb[0].mxu0 %v201
  %v615 = vpop.f32.mrb[0].mxu0
  %v616 = vadd.f32 %v567, %v615
  %v617 = vpop.f32.mrb[0].mxu0
  %v618 = vpop.f32.mrb[0].mxu0
  %v619 = vadd.f32 %v570, %v618
  %v620 = vpop.f32.mrb[0].mxu0
  %621 = vmatprep.mubr.bf16.mxu0 %v209
  %622 = vmatmul.mubr.bf16.gmra.mrb[0].mxu0 %v208
  %v623 = vpop.f32.mrb[0].mxu0
  %v624 = vadd.f32 %v575, %v623
  %v625 = vpop.f32.mrb[0].mxu0
  %v626 = vpop.f32.mrb[0].mxu0
  %v627 = vadd.f32 %v578, %v626
  %v628 = vpop.f32.mrb[0].mxu0
  %629 = vdwg.mxu0
  %630 = vmatprep.subr.bf16.mxu0 0
  %631 = vmatpush1.bf16.msra.mxu0 %v457
  %632 = vmatprep.subr.bf16.mxu0 0
  %633 = vmatpush1.bf16.msra.mxu0 %v458
  %634 = vmatprep.subr.bf16.mxu0 0
  %635 = vmatpush1.bf16.msra.mxu0 %v459
  %636 = vmatprep.subr.bf16.mxu0 0
  %637 = vmatpush1.bf16.msra.mxu0 %v460
  %638 = vmatprep.subr.bf16.mxu0 0
  %639 = vmatpush1.bf16.msra.mxu0 %v461
  %640 = vmatprep.subr.bf16.mxu0 0
  %641 = vmatpush1.bf16.msra.mxu0 %v462
  %642 = vmatprep.subr.bf16.mxu0 0
  %643 = vmatpush1.bf16.msra.mxu0 %v463
  %644 = vmatprep.subr.bf16.mxu0 0
  %645 = vmatpush1.bf16.msra.mxu0 %v464
  %646 = vmatprep.subr.bf16.mxu0 0
  %647 = vmatpush1.bf16.msra.mxu0 %v465
  %648 = vmatprep.subr.bf16.mxu0 0
  %649 = vmatpush1.bf16.msra.mxu0 %v466
  %650 = vmatprep.subr.bf16.mxu0 0
  %651 = vmatpush1.bf16.msra.mxu0 %v467
  %652 = vmatprep.subr.bf16.mxu0 0
  %653 = vmatpush1.bf16.msra.mxu0 %v468
  %654 = vmatprep.subr.bf16.mxu0 0
  %655 = vmatpush1.bf16.msra.mxu0 %v469
  %656 = vmatprep.subr.bf16.mxu0 0
  %657 = vmatpush1.bf16.msra.mxu0 %v470
  %658 = vmatprep.subr.bf16.mxu0 0
  %659 = vmatpush1.bf16.msra.mxu0 %v471
  %660 = vmatprep.subr.bf16.mxu0 0
  %661 = vmatpush1.bf16.msra.mxu0 %v472
  %662 = vmatprep.mubr.bf16.mxu0 %v204
  %663 = vmatmul.mubr.bf16.gmra.mrb[0].mxu0 %v203
  %v664 = vpop.f32.mrb[0].mxu0
  %v665 = vadd.f32 %v616, %v664
  %v666 = vpop.f32.mrb[0].mxu0
  %v667 = vpop.f32.mrb[0].mxu0
  %v668 = vadd.f32 %v619, %v667
  %v669 = vpop.f32.mrb[0].mxu0
  %670 = vmatprep.mubr.bf16.mxu0 %v211
  %671 = vmatmul.mubr.bf16.gmra.mrb[0].mxu0 %v210
  %v672 = vpop.f32.mrb[0].mxu0
  %v673 = vadd.f32 %v624, %v672
  %v674 = vpop.f32.mrb[0].mxu0
  %v675 = vpop.f32.mrb[0].mxu0
  %v676 = vadd.f32 %v627, %v675
  %v677 = vpop.f32.mrb[0].mxu0
  %678 = vdwg.mxu0
  %679 = vmatprep.subr.bf16.mxu0 0
  %680 = vmatpush1.bf16.msra.mxu0 %v473
  %681 = vmatprep.subr.bf16.mxu0 0
  %682 = vmatpush1.bf16.msra.mxu0 %v474
  %683 = vmatprep.subr.bf16.mxu0 0
  %684 = vmatpush1.bf16.msra.mxu0 0
  %685 = vmatprep.subr.bf16.mxu0 0
  %686 = vmatpush1.bf16.msra.mxu0 0
  %687 = vmatprep.subr.bf16.mxu0 0
  %688 = vmatpush1.bf16.msra.mxu0 0
  %689 = vmatprep.subr.bf16.mxu0 0
  %690 = vmatpush1.bf16.msra.mxu0 0
  %691 = vmatprep.subr.bf16.mxu0 0
  %692 = vmatpush1.bf16.msra.mxu0 0
  %693 = vmatprep.subr.bf16.mxu0 0
  %694 = vmatpush1.bf16.msra.mxu0 0
  %695 = vmatprep.subr.bf16.mxu0 0
  %696 = vmatpush1.bf16.msra.mxu0 0
  %697 = vmatprep.subr.bf16.mxu0 0
  %698 = vmatpush1.bf16.msra.mxu0 0
  %699 = vmatprep.subr.bf16.mxu0 0
  %700 = vmatpush1.bf16.msra.mxu0 0
  %701 = vmatprep.subr.bf16.mxu0 0
  %702 = vmatpush1.bf16.msra.mxu0 0
  %703 = vmatprep.subr.bf16.mxu0 0
  %704 = vmatpush1.bf16.msra.mxu0 0
  %705 = vmatprep.subr.bf16.mxu0 0
  %706 = vmatpush1.bf16.msra.mxu0 0
  %707 = vmatprep.subr.bf16.mxu0 0
  %708 = vmatpush1.bf16.msra.mxu0 0
  %709 = vmatprep.subr.bf16.mxu0 0
  %710 = vmatpush1.bf16.msra.mxu0 0
  %711 = vmatprep.mubr.bf16.mxu0 0
  %712 = vmatmul.mubr.bf16.gmra.mrb[0].mxu0 %v527
  %v713 = vpop.f32.mrb[0].mxu0
  %v714 = vadd.f32 %v665, %v713
  %v715 = vpop.f32.mrb[0].mxu0
  %v716 = vpop.f32.mrb[0].mxu0
  %v717 = vadd.f32 %v668, %v716
  %v718 = vpop.f32.mrb[0].mxu0
  %719 = vmatprep.mubr.bf16.mxu0 0
  %720 = vmatmul.mubr.bf16.gmra.mrb[0].mxu0 %v530
  %v721 = vpop.f32.mrb[0].mxu0
  %v722 = vadd.f32 %v673, %v721
  %v723 = vpop.f32.mrb[0].mxu0
  %v724 = vpop.f32.mrb[0].mxu0
  %v725 = vadd.f32 %v676, %v724
  %v726 = vpop.f32.mrb[0].mxu0
  %727 = vdwg.mxu0
  %v728 = vmax.f32 %v714, 0.0
  %v729 = vmax.f32 %v717, 0.0
  %v730 = vmax.f32 %v722, 0.0
  %v731 = vmax.f32 %v725, 0.0
  %v732 = vpack.c.bf16 %v729, %v728
  %v733 = vpack.c.bf16 %v731, %v730
  %v736 = vunpack.c.l.b16 %v732
  %v737 = vunpack.c.h.b16 %v732
  %v738 = vunpack.c.l.b16 %v733
  %v739 = vunpack.c.h.b16 %v733
  %v740 = vpack.c.b16 %v736, %v736
  %v741 = vpack.c.b16 %v737, %v737
  %v742 = vpack.c.b16 %v738, %v738
  %v743 = vpack.c.b16 %v739, %v739
  %748 = vst [vmem:[%s3] sm:$0xf] %v740
  %749 = vst [vmem:[%s3 + $0x4] sm:$0xf] %v741
  %750 = vst [vmem:[%s3 + $0x8] sm:$0xf] %v742
  %751 = vst [vmem:[%s3 + $0xc] sm:$0xf] %v743
  // Predicated region
  $region14: #{_lambda_.30} parent=0 // pred_check
    _
  $region15: #{_lambda_.30} parent=0 // pred_check_branch
    %753 = sbr.rel (0) target = $region17
  $region16: #{_lambda_.30} parent=0 // pred_region
    _
  $region17: #{_lambda_.30} parent=0 // pred_fallthru
    _
  // Predicated region
  $region18: #{_lambda_.30} parent=0 // pred_check
    _
  $region19: #{_lambda_.30} parent=0 // pred_check_branch
    %755 = sbr.rel (0) target = $region21
  $region20: #{_lambda_.30} parent=0 // pred_region
    _
  $region21: #{_lambda_.30} parent=0 // pred_fallthru
    _

</llo_original>
